<compile_context>
chip_gen: v7x
topology: tpu7x:2x2x1
jax: 0.10.0
libtpu: 0.0.40
codegen_flags: <defaults>
</compile_context>

<pallas_src>
import jax
import jax.numpy as jnp
from jax import lax
from jax.experimental import pallas as pl
from jax.experimental.pallas import tpu as pltpu


# lhs-transposed matmul: contract dim 0 of x with dim 0 of w  ->  (hw, C_out)
_TN_DIMS = (((0,), (0,)), ((), ()))


def _add_conv1x1_kernel(a_ref, b_ref, w_ref, o_ref):
    # a, b : (C_in, H*W)     w : (C_in, tile_co)     o : (H*W, tile_co)
    x = a_ref[...] + b_ref[...]                       # elementwise add (VPU)
    o_ref[...] = lax.dot_general(                     # (a+b)^T @ W  (MXU)
        x, w_ref[...],
        dimension_numbers=_TN_DIMS,
        preferred_element_type=jnp.float32,
        precision=lax.Precision.HIGHEST,              # true f32 conv semantics
    ).astype(o_ref.dtype)


def prepare_weight(weight_oihw):
    """PyTorch conv weight (C_out, C_in, 1, 1) -> (C_in, C_out).

    One-time parameter prep (done at weight-load time in a real model), so the
    transpose is free in steady state.
    """
    c_out, c_in = weight_oihw.shape[:2]
    return weight_oihw.reshape(c_out, c_in).T


def add_conv1x1(x272, x257, w_t):
    """x272, x257: NCHW f32 (N, C_in, H, W); w_t: (C_in, C_out) prepared weight."""
    N, C_in, H, W = x272.shape
    C_out = w_t.shape[1]
    hw = H * W

    # Free (no-copy) reshapes; no wrapper transposes on the activations.
    a = x272.reshape(N, C_in, hw)
    b = x257.reshape(N, C_in, hw)

    # C_out tiling: 640 = 5*128 lanes -> 2 blocks for C_out=1248 (last one ragged).
    tile_co = 640 if C_out > 640 else C_out
    n_co = pl.cdiv(C_out, tile_co)

    flops = 2 * N * hw * C_in * C_out
    bytes_accessed = (2 * N * C_in * hw + C_in * C_out + N * hw * C_out) * 4

    out = pl.pallas_call(
        _add_conv1x1_kernel,
        out_shape=jax.ShapeDtypeStruct((N, hw, C_out), x272.dtype),
        grid=(N, n_co),
        in_specs=[
            # a/b: block index constant along the C_out axis -> fetched once per n.
            pl.BlockSpec((None, C_in, hw), lambda n, j: (n, 0, 0)),
            pl.BlockSpec((None, C_in, hw), lambda n, j: (n, 0, 0)),
            pl.BlockSpec((C_in, tile_co), lambda n, j: (0, j)),
        ],
        out_specs=pl.BlockSpec((None, hw, tile_co), lambda n, j: (n, 0, j)),
        compiler_params=pltpu.CompilerParams(
            # Both axes are independent; on v7x the C_out axis is sharded across
            # the two TensorCores, on v5e/v6e it pipelines sequentially (weight
            # fetch of block k+1 overlaps compute/writeback of block k).
            dimension_semantics=("parallel", "parallel"),
        ),
        cost_estimate=pl.CostEstimate(
            flops=flops, bytes_accessed=bytes_accessed, transcendentals=0
        ),
    )(a, b, w_t)

    # Lane-dense (N, hw, C_out) back to the module's NCHW.  In the full model
    # the consumer would take the channels-last layout directly and this
    # transpose disappears.
    return jnp.transpose(out, (0, 2, 1)).reshape(N, C_out, H, W)


if __name__ == "__main__":
    key = jax.random.PRNGKey(0)
    k1, k2, k3 = jax.random.split(key, 3)

    N, C_in, H, W = 1, 208, 7, 7
    C_out = 1248

    x272 = jax.random.normal(k1, (N, C_in, H, W), dtype=jnp.float32)
    x257 = jax.random.normal(k2, (N, C_in, H, W), dtype=jnp.float32)
    # Deterministic conv weight (kaiming-ish scale), PyTorch layout (C_out, C_in, 1, 1)
    weight = jax.random.normal(k3, (C_out, C_in, 1, 1), dtype=jnp.float32) * (
        1.0 / jnp.sqrt(C_in)
    )

    w_t = prepare_weight(weight)          # one-time weight prep (param transpose)
    out = add_conv1x1(x272, x257, w_t)
    out = jax.block_until_ready(out)

    # Reference: add then 1x1 conv, at matching (full f32) precision.
    ref = jnp.einsum(
        "nchw,oc->nohw", x272 + x257, weight.reshape(C_out, C_in),
        precision=jax.lax.Precision.HIGHEST,
    )
    assert out.shape == (N, C_out, H, W), out.shape
    assert jnp.allclose(out, ref, atol=1e-4, rtol=1e-4), float(
        jnp.max(jnp.abs(out - ref))
    )

    print("KERNEL_OK")
</pallas_src>

<mosaic_0001>
module attributes {stable_mosaic.version = 11 : i64} {
  func.func @_add_conv1x1_kernel(%arg0: i32, %arg1: i32, %arg2: memref<1x208x49xf32, #tpu.memory_space<vmem>>, %arg3: memref<1x208x49xf32, #tpu.memory_space<vmem>>, %arg4: memref<208x640xf32, #tpu.memory_space<vmem>>, %arg5: memref<1x49x640xf32, #tpu.memory_space<vmem>>) attributes {dimension_semantics = [#tpu.dimension_semantics<parallel>, #tpu.dimension_semantics<parallel>], iteration_bounds = array<i64: 1, 2>, scalar_prefetch = 0 : i64, scratch_operands = 0 : i64, tpu.core_type = #tpu.core_type<tc>, window_params = [{transform_indices = @transform_0, window_bounds = array<i64: 1, 208, 49>}, {transform_indices = @transform_1, window_bounds = array<i64: 1, 208, 49>}, {transform_indices = @transform_2, window_bounds = array<i64: 208, 640>}, {transform_indices = @transform_3, window_bounds = array<i64: 1, 49, 640>}]} {
    %c0 = arith.constant 0 : index
    %c0_0 = arith.constant 0 : index
    %c0_1 = arith.constant 0 : index
    %0 = vector.load %arg2[%c0, %c0_0, %c0_1] : memref<1x208x49xf32, #tpu.memory_space<vmem>>, vector<1x208x49xf32>
    %1 = vector.shape_cast %0 : vector<1x208x49xf32> to vector<208x49xf32>
    %c0_2 = arith.constant 0 : index
    %c0_3 = arith.constant 0 : index
    %c0_4 = arith.constant 0 : index
    %2 = vector.load %arg3[%c0_2, %c0_3, %c0_4] : memref<1x208x49xf32, #tpu.memory_space<vmem>>, vector<1x208x49xf32>
    %3 = vector.shape_cast %2 : vector<1x208x49xf32> to vector<208x49xf32>
    %4 = arith.addf %1, %3 : vector<208x49xf32>
    %c0_5 = arith.constant 0 : index
    %c0_6 = arith.constant 0 : index
    %5 = vector.load %arg4[%c0_5, %c0_6] : memref<208x640xf32, #tpu.memory_space<vmem>>, vector<208x640xf32>
    %cst = arith.constant dense<0.000000e+00> : vector<49x640xf32>
    %6 = tpu.matmul %4, %5, %cst {dimension_numbers = #tpu.dot_dimension_numbers<[0], [0], [1], [1], [0, 1, 1, 1], [], []>, precision = #tpu.contract_precision<fp32>} : vector<208x49xf32>, vector<208x640xf32>, vector<49x640xf32> -> vector<49x640xf32>
    %c0_7 = arith.constant 0 : index
    %c0_8 = arith.constant 0 : index
    %c0_9 = arith.constant 0 : index
    %7 = vector.load %arg5[%c0_7, %c0_8, %c0_9] : memref<1x49x640xf32, #tpu.memory_space<vmem>>, vector<1x49x640xf32>
    %8 = vector.shape_cast %7 : vector<1x49x640xf32> to vector<49x640xf32>
    %9 = vector.shape_cast %6 : vector<49x640xf32> to vector<1x49x640xf32>
    tpu.vector_store %arg5[%c0_7, %c0_8, %c0_9], %9 {strides = array<i32>} : memref<1x49x640xf32, #tpu.memory_space<vmem>>, vector<1x49x640xf32>,
    return
  }
  func.func @transform_0(%arg0: i32, %arg1: i32) -> (i32, i32, i32) {
    %c0_i32 = arith.constant 0 : i32
    %c0_i32_0 = arith.constant 0 : i32
    %c0_i32_1 = arith.constant 0 : i32
    return %arg0, %c0_i32, %c0_i32_0 : i32, i32, i32
  }
  func.func @transform_1(%arg0: i32, %arg1: i32) -> (i32, i32, i32) {
    %c0_i32 = arith.constant 0 : i32
    %c0_i32_0 = arith.constant 0 : i32
    %c0_i32_1 = arith.constant 0 : i32
    return %arg0, %c0_i32, %c0_i32_0 : i32, i32, i32
  }
  func.func @transform_2(%arg0: i32, %arg1: i32) -> (i32, i32) {
    %c0_i32 = arith.constant 0 : i32
    %c0_i32_0 = arith.constant 0 : i32
    return %c0_i32, %arg1 : i32, i32
  }
  func.func @transform_3(%arg0: i32, %arg1: i32) -> (i32, i32, i32) {
    %c0_i32 = arith.constant 0 : i32
    %c0_i32_0 = arith.constant 0 : i32
    return %arg0, %c0_i32, %arg1 : i32, i32, i32
  }
}

</mosaic_0001>

<llo_original>
// kernel: tpu_custom_call.1
$region0: #{tpu_custom_call.1}
  #allocation0 [shape = 'u32[]', space=smem, size = 0x4, offset = 0x4, fixed_abs, tag = 'smem constant byte address 0x4 - core index']
  #allocation1 [shape = 'u32[144,128]{1,0:T(1,128)}', space=vmem, size = 0x12000, scoped, tag = 'internal scratch']
  %s0 = inlined_call_operand.vmem [shape: f32[1,208,49], index: 0, kind: input, shape index: {}]
  %s1 = inlined_call_operand.vmem [shape: f32[1,208,49], index: 1, kind: input, shape index: {}]
  %s2 = inlined_call_operand.hbm [shape: f32[208,1248], index: 2, kind: input, shape index: {}]
  %s3 = inlined_call_operand.vmem [shape: f32[1,49,1248], index: 3, kind: output, shape index: {}]
  %s4 = sld [smem:[#allocation0]]
  $region68: #{tpu_custom_call.1} parent=0
    _
  %s6 = ssub.s32 1, %s4
  %s7 = scalar_select 0, %s6, %s4
  $region1: #{tpu_custom_call.1} parent=0
    #allocation2 [shape = 'u8[1064960]{0}', space=vmem, size = 0x104000, scoped, tag = 'input window, operand 2']
    #allocation3 [shape = 's32[2]{0}', space=sflag, size = 0x8, scoped, tag = 'scoped memory for tpu_custom_call.1']
    #allocation4 [shape = 'u8[286720]{0}', space=vmem, size = 0x46000, scoped, tag = 'output window, operand 0']
    %8 = vsyncpa [#allocation3], 0
    %s9 = scalar_lea.sflag [#allocation3], 1
    %10 = vsyncpa %s9, 0
    loop: start=0, step=1, limit=4
    $region2: #{tpu_custom_call.1} parent=1 // loop_pre_header
      _
    $region3: #{tpu_custom_call.1} parent=1 // loop_header
      %s12 = sphi 0, %s16
      %p13 = scmp.ge.s32.totalorder %s12, 4
      %s19 = sphi 0, %s31
      %s20 = sphi 0, %s27
      %s21 = sphi 0, %s19
      %s22 = sphi 0, %s20
      %s23 = sphi 0, %s21
      %s24 = sphi 0, %s22
      %s34 = sphi 0, %s36
      %s37 = sphi 0, %s34
      %s38 = sphi 0, %s37
      %s54 = sphi 0, %s38
      %s60 = sphi 0, %s62
      %s63 = sphi 0, %s60
      %s64 = sphi 0, %s63
      %s80 = sphi 0, %s64
      %s86 = sphi 0, %s88
      %s89 = sphi 0, %s86
      %s90 = sphi 0, %s89
      %s106 = sphi 0, %s90
      %s114 = sphi 0, %s116
      %s117 = sphi 0, %s114
      %s118 = sphi 0, %s117
      %s134 = sphi 0, %s118
    $region4: #{tpu_custom_call.1} parent=1 // loop_header_branch
      %15 = sbr.rel (%p13) target = $region8
    $region5: #{tpu_custom_call.1} parent=1 // loop_body
      %s17 = ssub.s32 %s12, 1
      %s18 = ssub.s32 %s12, 2
      %s25 = sadd.s32 1, %s20
      %p26 = scmp.ge.s32.totalorder %s25, 2
      %s27 = scalar_select %p26, 0, %s25
      %s28 = sadd.s32 1, %s19
      %s29 = scalar_select %p26, %s28, %s19
      %p30 = scmp.ge.s32.totalorder %s29, 1
      %s31 = scalar_select %p30, 0, %s29
      %s32 = ssub.s32 %s19, %s31
      %p33 = scmp.eq.s32.totalorder %s32, 0
      %s35 = sadd.s32 %s34, 1
      %s36 = scalar_select %p33, %s34, %s35
      %p39 = pneg %p33
      %p40 = scmp.eq.s32.totalorder %s12, 1
      %p41 = por %p39, %p40
      %p42 = scmp.ne.s32.totalorder %s34, %s37
      %p43 = scmp.eq.s32.totalorder %s12, 0
      %p44 = por %p42, %p43
      %p45 = scmp.ne.s32.totalorder %s34, %s37
      %p46 = scmp.eq.s32.totalorder %s17, 1
      %p47 = por %p45, %p46
      %p48 = scmp.ne.s32.totalorder %s37, %s38
      %p49 = scmp.eq.s32.totalorder %s17, 0
      %p50 = por %p48, %p49
      %p51 = scmp.ne.s32.totalorder %s37, %s38
      %p52 = scmp.eq.s32.totalorder %s18, 1
      %p53 = por %p51, %p52
      %p55 = scmp.ne.s32.totalorder %s38, %s54
      %p56 = scmp.eq.s32.totalorder %s18, 0
      %p57 = por %p55, %p56
      %s58 = ssub.s32 %s19, %s31
      %p59 = scmp.eq.s32.totalorder %s58, 0
      %s61 = sadd.s32 %s60, 1
      %s62 = scalar_select %p59, %s60, %s61
      %p65 = pneg %p59
      %p66 = scmp.eq.s32.totalorder %s12, 1
      %p67 = por %p65, %p66
      %p68 = scmp.ne.s32.totalorder %s60, %s63
      %p69 = scmp.eq.s32.totalorder %s12, 0
      %p70 = por %p68, %p69
      %p71 = scmp.ne.s32.totalorder %s60, %s63
      %p72 = scmp.eq.s32.totalorder %s17, 1
      %p73 = por %p71, %p72
      %p74 = scmp.ne.s32.totalorder %s63, %s64
      %p75 = scmp.eq.s32.totalorder %s17, 0
      %p76 = por %p74, %p75
      %p77 = scmp.ne.s32.totalorder %s63, %s64
      %p78 = scmp.eq.s32.totalorder %s18, 1
      %p79 = por %p77, %p78
      %p81 = scmp.ne.s32.totalorder %s64, %s80
      %p82 = scmp.eq.s32.totalorder %s18, 0
      %p83 = por %p81, %p82
      %s84 = ssub.s32 %s20, %s27
      %p85 = scmp.eq.s32.totalorder %s84, 0
      %s87 = sadd.s32 %s86, 1
      %s88 = scalar_select %p85, %s86, %s87
      %p91 = pneg %p85
      %p92 = scmp.eq.s32.totalorder %s12, 1
      %p93 = por %p91, %p92
      %p94 = scmp.ne.s32.totalorder %s86, %s89
      %p95 = scmp.eq.s32.totalorder %s12, 0
      %p96 = por %p94, %p95
      %p97 = scmp.ne.s32.totalorder %s86, %s89
      %p98 = scmp.eq.s32.totalorder %s17, 1
      %p99 = por %p97, %p98
      %p100 = scmp.ne.s32.totalorder %s89, %s90
      %p101 = scmp.eq.s32.totalorder %s17, 0
      %p102 = por %p100, %p101
      %p103 = scmp.ne.s32.totalorder %s89, %s90
      %p104 = scmp.eq.s32.totalorder %s18, 1
      %p105 = por %p103, %p104
      %p107 = scmp.ne.s32.totalorder %s90, %s106
      %p108 = scmp.eq.s32.totalorder %s18, 0
      %p109 = por %p107, %p108
      %s110 = ssub.s32 %s19, %s31
      %s111 = ssub.s32 %s20, %s27
      %s112 = sor.u32 %s110, %s111
      %p113 = scmp.eq.s32.totalorder %s112, 0
      %s115 = sadd.s32 %s114, 1
      %s116 = scalar_select %p113, %s114, %s115
      %p119 = pneg %p113
      %p120 = scmp.eq.s32.totalorder %s12, 1
      %p121 = por %p119, %p120
      %p122 = scmp.ne.s32.totalorder %s114, %s117
      %p123 = scmp.eq.s32.totalorder %s12, 0
      %p124 = por %p122, %p123
      %p125 = scmp.ne.s32.totalorder %s114, %s117
      %p126 = scmp.eq.s32.totalorder %s17, 1
      %p127 = por %p125, %p126
      %p128 = scmp.ne.s32.totalorder %s117, %s118
      %p129 = scmp.eq.s32.totalorder %s17, 0
      %p130 = por %p128, %p129
      %p131 = scmp.ne.s32.totalorder %s117, %s118
      %p132 = scmp.eq.s32.totalorder %s18, 1
      %p133 = por %p131, %p132
      %p135 = scmp.ne.s32.totalorder %s118, %s134
      %p136 = scmp.eq.s32.totalorder %s18, 0
      %p137 = por %p135, %p136
      %p138 = scmp.le.s32.totalorder 1, %s12
      %p139 = scmp.lt.s32.totalorder %s12, 3
      %p140 = pnand %p138, %p139
      %p141 = pneg %p140
      // Predicated region
      $region9: #{tpu_custom_call.1} parent=5 // pred_check
        _
      $region10: #{tpu_custom_call.1} parent=5 // pred_check_branch
        %143 = sbr.rel (%p140) target = $region12
      $region11: #{tpu_custom_call.1} parent=5 // pred_region
        %s144 = ssub.s32 %s12, 1
        // Predicated region
        $region13: #{tpu_custom_call.1} parent=11 // pred_check
          %p145 = pneg %p50
        $region14: #{tpu_custom_call.1} parent=11 // pred_check_branch
          %147 = sbr.rel (%p145) target = $region16
        $region15: #{tpu_custom_call.1} parent=11 // pred_region
          %p148 = scmp.lt.s32.totalorder %s21, 0
          %s149 = scalar_select %p148, %s21, 0
          %s150 = smul.addr %s149, 26
          %s151 = smul.addr %s150, 8
          %s152 = scalar_lea.vmem %s0, %s151
        $region16: #{tpu_custom_call.1} parent=11 // pred_fallthru
          _
        // Predicated region
        $region17: #{tpu_custom_call.1} parent=11 // pred_check
          %p153 = pneg %p76
        $region18: #{tpu_custom_call.1} parent=11 // pred_check_branch
          %155 = sbr.rel (%p153) target = $region20
        $region19: #{tpu_custom_call.1} parent=11 // pred_region
          %p156 = scmp.lt.s32.totalorder %s21, 0
          %s157 = scalar_select %p156, %s21, 0
          %s158 = smul.addr %s157, 26
          %s159 = smul.addr %s158, 8
          %s160 = scalar_lea.vmem %s1, %s159
        $region20: #{tpu_custom_call.1} parent=11 // pred_fallthru
          _
      $region12: #{tpu_custom_call.1} parent=5 // pred_fallthru
        _
      %p161 = scmp.lt.s32.totalorder %s12, 2
      // Predicated region
      $region21: #{tpu_custom_call.1} parent=5 // pred_check
        %p162 = pneg %p161
      $region22: #{tpu_custom_call.1} parent=5 // pred_check_branch
        %164 = sbr.rel (%p162) target = $region24
      $region23: #{tpu_custom_call.1} parent=5 // pred_region
        // Predicated region
        $region25: #{tpu_custom_call.1} parent=23 // pred_check
          %p165 = pneg %p96
        $region26: #{tpu_custom_call.1} parent=23 // pred_check_branch
          %167 = sbr.rel (%p165) target = $region28
        $region27: #{tpu_custom_call.1} parent=23 // pred_region
          %s168 = sand.u32 %s86, 1
          %s169 = scalar_lea.sflag [#allocation3], %s168
          %s170 = sand.u32 %s86, 1
          %s171 = smul.addr %s170, 1040
          %s172 = scalar_lea.vmem [#allocation2], %s171
          %s173 = smul.u32 5, %s20
          %s175 = ssub.s32 16640, 16640
          %176 = vsyncadd %s169, %s175
          %s177 = smul.addr %s173, 128
          %s178 = scalar_lea.hbm %s2, %s177
          %s179 = sshll.u32 %s172, 4
          %s180 = int_to_ptr.vmem [resolvable:$true] %s179
          %185 = dma.hbm_to_vmem [thread:$0]  %s178, 16640, %s180, %s169, 1280, 640, 40
        $region28: #{tpu_custom_call.1} parent=23 // pred_fallthru
          _
      $region24: #{tpu_custom_call.1} parent=5 // pred_fallthru
        _
      %p186 = scmp.le.s32.totalorder 1, %s12
      %p187 = scmp.lt.s32.totalorder %s12, 3
      %p188 = pnand %p186, %p187
      %p189 = pneg %p188
      // Predicated region
      $region29: #{tpu_custom_call.1} parent=5 // pred_check
        _
      $region30: #{tpu_custom_call.1} parent=5 // pred_check_branch
        %191 = sbr.rel (%p188) target = $region32
      $region31: #{tpu_custom_call.1} parent=5 // pred_region
        %s192 = ssub.s32 %s12, 1
        %s193 = sand.u32 %s89, 1
        %s194 = scalar_lea.sflag [#allocation3], %s193
        %s195 = sand.u32 %s89, 1
        %s196 = smul.addr %s195, 1040
        %s197 = scalar_lea.vmem [#allocation2], %s196
        // Predicated region
        $region33: #{tpu_custom_call.1} parent=31 // pred_check
          %p198 = pneg %p102
        $region34: #{tpu_custom_call.1} parent=31 // pred_check_branch
          %200 = sbr.rel (%p198) target = $region36
        $region35: #{tpu_custom_call.1} parent=31 // pred_region
          %201 = dma.done %s194, 16640
        $region36: #{tpu_custom_call.1} parent=31 // pred_fallthru
          _
        %p202 = scmp.lt.s32.totalorder %s21, 0
        %s203 = scalar_select %p202, %s21, 0
        %s204 = smul.addr %s203, 26
        %s205 = smul.addr %s204, 8
        %s206 = scalar_lea.vmem %s0, %s205
        %p207 = pneg %p50
        %p208 = pneg %p47
        %p209 = scmp.lt.s32.totalorder %s21, 0
        %s210 = scalar_select %p209, %s21, 0
        %s211 = smul.addr %s210, 26
        %s212 = smul.addr %s211, 8
        %s213 = scalar_lea.vmem %s1, %s212
        %p214 = pneg %p76
        %p215 = pneg %p73
        %s216 = sand.u32 %s89, 1
        %s217 = scalar_lea.sflag [#allocation3], %s216
        %s218 = sand.u32 %s89, 1
        %s219 = smul.addr %s218, 1040
        %s220 = scalar_lea.vmem [#allocation2], %s219
        %p221 = pneg %p102
        %p222 = pneg %p99
        %p223 = pneg %p130
        %p224 = pneg %p127
        %s225 = sand.u32 %s117, 1
        %s226 = sand.u32 %s117, 1
        %s227 = smul.addr %s226, 280
        %s228 = scalar_lea.vmem [#allocation4], %s227
        %p229 = scmp.lt.s32.totalorder %s21, 0
        %s230 = scalar_select %p229, %s21, 0
        %s231 = smul.addr %s230, 26
        %s232 = smul.addr %s231, 8
        %s233 = scalar_lea.vmem %s0, %s232
        %p234 = scmp.lt.s32.totalorder %s21, 0
        %s235 = scalar_select %p234, %s21, 0
        %s236 = smul.addr %s235, 26
        %s237 = smul.addr %s236, 8
        %s238 = scalar_lea.vmem %s1, %s237
        %s239 = smul.u32 5, %s22
        %s240 = smul.u32 5, %s22
        %v241 = vld [vmem:[%s233] sm:$0xff]
        %v242 = vld [vmem:[%s233 + $0x8] sm:$0xff]
        %v243 = vld [vmem:[%s233 + $0x10] sm:$0xff]
        %v244 = vld [vmem:[%s233 + $0x18] sm:$0xff]
        %v245 = vld [vmem:[%s233 + $0x20] sm:$0xff]
        %v246 = vld [vmem:[%s233 + $0x28] sm:$0xff]
        %v247 = vld [vmem:[%s233 + $0x30] sm:$0xff]
        %v248 = vld [vmem:[%s233 + $0x38] sm:$0xff]
        %v249 = vld [vmem:[%s233 + $0x40] sm:$0xff]
        %v250 = vld [vmem:[%s233 + $0x48] sm:$0xff]
        %v251 = vld [vmem:[%s233 + $0x50] sm:$0xff]
        %v252 = vld [vmem:[%s233 + $0x58] sm:$0xff]
        %v253 = vld [vmem:[%s233 + $0x60] sm:$0xff]
        %v254 = vld [vmem:[%s233 + $0x68] sm:$0xff]
        %v255 = vld [vmem:[%s233 + $0x70] sm:$0xff]
        %v256 = vld [vmem:[%s233 + $0x78] sm:$0xff]
        %v257 = vld [vmem:[%s233 + $0x80] sm:$0xff]
        %v258 = vld [vmem:[%s233 + $0x88] sm:$0xff]
        %v259 = vld [vmem:[%s233 + $0x90] sm:$0xff]
        %v260 = vld [vmem:[%s233 + $0x98] sm:$0xff]
        %v261 = vld [vmem:[%s233 + $0xa0] sm:$0xff]
        %v262 = vld [vmem:[%s233 + $0xa8] sm:$0xff]
        %v263 = vld [vmem:[%s233 + $0xb0] sm:$0xff]
        %v264 = vld [vmem:[%s233 + $0xb8] sm:$0xff]
        %v265 = vld [vmem:[%s233 + $0xc0] sm:$0xff]
        %v266 = vld [vmem:[%s233 + $0xc8] sm:$0xff]
        %v267 = vld [vmem:[%s238] sm:$0xff]
        %v268 = vld [vmem:[%s238 + $0x8] sm:$0xff]
        %v269 = vld [vmem:[%s238 + $0x10] sm:$0xff]
        %v270 = vld [vmem:[%s238 + $0x18] sm:$0xff]
        %v271 = vld [vmem:[%s238 + $0x20] sm:$0xff]
        %v272 = vld [vmem:[%s238 + $0x28] sm:$0xff]
        %v273 = vld [vmem:[%s238 + $0x30] sm:$0xff]
        %v274 = vld [vmem:[%s238 + $0x38] sm:$0xff]
        %v275 = vld [vmem:[%s238 + $0x40] sm:$0xff]
        %v276 = vld [vmem:[%s238 + $0x48] sm:$0xff]
        %v277 = vld [vmem:[%s238 + $0x50] sm:$0xff]
        %v278 = vld [vmem:[%s238 + $0x58] sm:$0xff]
        %v279 = vld [vmem:[%s238 + $0x60] sm:$0xff]
        %v280 = vld [vmem:[%s238 + $0x68] sm:$0xff]
        %v281 = vld [vmem:[%s238 + $0x70] sm:$0xff]
        %v282 = vld [vmem:[%s238 + $0x78] sm:$0xff]
        %v283 = vld [vmem:[%s238 + $0x80] sm:$0xff]
        %v284 = vld [vmem:[%s238 + $0x88] sm:$0xff]
        %v285 = vld [vmem:[%s238 + $0x90] sm:$0xff]
        %v286 = vld [vmem:[%s238 + $0x98] sm:$0xff]
        %v287 = vld [vmem:[%s238 + $0xa0] sm:$0xff]
        %v288 = vld [vmem:[%s238 + $0xa8] sm:$0xff]
        %v289 = vld [vmem:[%s238 + $0xb0] sm:$0xff]
        %v290 = vld [vmem:[%s238 + $0xb8] sm:$0xff]
        %v291 = vld [vmem:[%s238 + $0xc0] sm:$0xff]
        %v292 = vld [vmem:[%s238 + $0xc8] sm:$0xff]
        %v293 = vadd.f32 %v241, %v267
        %v294 = vadd.f32 %v242, %v268
        %v295 = vadd.f32 %v243, %v269
        %v296 = vadd.f32 %v244, %v270
        %v297 = vadd.f32 %v245, %v271
        %v298 = vadd.f32 %v246, %v272
        %v299 = vadd.f32 %v247, %v273
        %v300 = vadd.f32 %v248, %v274
        %v301 = vadd.f32 %v249, %v275
        %v302 = vadd.f32 %v250, %v276
        %v303 = vadd.f32 %v251, %v277
        %v304 = vadd.f32 %v252, %v278
        %v305 = vadd.f32 %v253, %v279
        %v306 = vadd.f32 %v254, %v280
        %v307 = vadd.f32 %v255, %v281
        %v308 = vadd.f32 %v256, %v282
        %v309 = vadd.f32 %v257, %v283
        %v310 = vadd.f32 %v258, %v284
        %v311 = vadd.f32 %v259, %v285
        %v312 = vadd.f32 %v260, %v286
        %v313 = vadd.f32 %v261, %v287
        %v314 = vadd.f32 %v262, %v288
        %v315 = vadd.f32 %v263, %v289
        %v316 = vadd.f32 %v264, %v290
        %v317 = vadd.f32 %v265, %v291
        %v318 = vadd.f32 %v266, %v292
        %v319 = vld [vmem:[%s197] sm:$0xff]
        %v320 = vld [vmem:[%s197 + $0x8] sm:$0xff]
        %v321 = vld [vmem:[%s197 + $0x10] sm:$0xff]
        %v322 = vld [vmem:[%s197 + $0x18] sm:$0xff]
        %v323 = vld [vmem:[%s197 + $0x20] sm:$0xff]
        %v324 = vld [vmem:[%s197 + $0x28] sm:$0xff]
        %v325 = vld [vmem:[%s197 + $0x30] sm:$0xff]
        %v326 = vld [vmem:[%s197 + $0x38] sm:$0xff]
        %v327 = vld [vmem:[%s197 + $0x40] sm:$0xff]
        %v328 = vld [vmem:[%s197 + $0x48] sm:$0xff]
        %v329 = vld [vmem:[%s197 + $0x50] sm:$0xff]
        %v330 = vld [vmem:[%s197 + $0x58] sm:$0xff]
        %v331 = vld [vmem:[%s197 + $0x60] sm:$0xff]
        %v332 = vld [vmem:[%s197 + $0x68] sm:$0xff]
        %v333 = vld [vmem:[%s197 + $0x70] sm:$0xff]
        %v334 = vld [vmem:[%s197 + $0x78] sm:$0xff]
        %v335 = vld [vmem:[%s197 + $0x80] sm:$0xff]
        %v336 = vld [vmem:[%s197 + $0x88] sm:$0xff]
        %v337 = vld [vmem:[%s197 + $0x90] sm:$0xff]
        %v338 = vld [vmem:[%s197 + $0x98] sm:$0xff]
        %v339 = vld [vmem:[%s197 + $0xa0] sm:$0xff]
        %v340 = vld [vmem:[%s197 + $0xa8] sm:$0xff]
        %v341 = vld [vmem:[%s197 + $0xb0] sm:$0xff]
        %v342 = vld [vmem:[%s197 + $0xb8] sm:$0xff]
        %v343 = vld [vmem:[%s197 + $0xc0] sm:$0xff]
        %v344 = vld [vmem:[%s197 + $0xc8] sm:$0xff]
        %v345 = vld [vmem:[%s197 + $0xd0] sm:$0xff]
        %v346 = vld [vmem:[%s197 + $0xd8] sm:$0xff]
        %v347 = vld [vmem:[%s197 + $0xe0] sm:$0xff]
        %v348 = vld [vmem:[%s197 + $0xe8] sm:$0xff]
        %v349 = vld [vmem:[%s197 + $0xf0] sm:$0xff]
        %v350 = vld [vmem:[%s197 + $0xf8] sm:$0xff]
        %v351 = vld [vmem:[%s197 + $0x100] sm:$0xff]
        %v352 = vld [vmem:[%s197 + $0x108] sm:$0xff]
        %v353 = vld [vmem:[%s197 + $0x110] sm:$0xff]
        %v354 = vld [vmem:[%s197 + $0x118] sm:$0xff]
        %v355 = vld [vmem:[%s197 + $0x120] sm:$0xff]
        %v356 = vld [vmem:[%s197 + $0x128] sm:$0xff]
        %v357 = vld [vmem:[%s197 + $0x130] sm:$0xff]
        %v358 = vld [vmem:[%s197 + $0x138] sm:$0xff]
        %v359 = vld [vmem:[%s197 + $0x140] sm:$0xff]
        %v360 = vld [vmem:[%s197 + $0x148] sm:$0xff]
        %v361 = vld [vmem:[%s197 + $0x150] sm:$0xff]
        %v362 = vld [vmem:[%s197 + $0x158] sm:$0xff]
        %v363 = vld [vmem:[%s197 + $0x160] sm:$0xff]
        %v364 = vld [vmem:[%s197 + $0x168] sm:$0xff]
        %v365 = vld [vmem:[%s197 + $0x170] sm:$0xff]
        %v366 = vld [vmem:[%s197 + $0x178] sm:$0xff]
        %v367 = vld [vmem:[%s197 + $0x180] sm:$0xff]
        %v368 = vld [vmem:[%s197 + $0x188] sm:$0xff]
        %v369 = vld [vmem:[%s197 + $0x190] sm:$0xff]
        %v370 = vld [vmem:[%s197 + $0x198] sm:$0xff]
        %v371 = vld [vmem:[%s197 + $0x1a0] sm:$0xff]
        %v372 = vld [vmem:[%s197 + $0x1a8] sm:$0xff]
        %v373 = vld [vmem:[%s197 + $0x1b0] sm:$0xff]
        %v374 = vld [vmem:[%s197 + $0x1b8] sm:$0xff]
        %v375 = vld [vmem:[%s197 + $0x1c0] sm:$0xff]
        %v376 = vld [vmem:[%s197 + $0x1c8] sm:$0xff]
        %v377 = vld [vmem:[%s197 + $0x1d0] sm:$0xff]
        %v378 = vld [vmem:[%s197 + $0x1d8] sm:$0xff]
        %v379 = vld [vmem:[%s197 + $0x1e0] sm:$0xff]
        %v380 = vld [vmem:[%s197 + $0x1e8] sm:$0xff]
        %v381 = vld [vmem:[%s197 + $0x1f0] sm:$0xff]
        %v382 = vld [vmem:[%s197 + $0x1f8] sm:$0xff]
        %v383 = vld [vmem:[%s197 + $0x200] sm:$0xff]
        %v384 = vld [vmem:[%s197 + $0x208] sm:$0xff]
        %v385 = vld [vmem:[%s197 + $0x210] sm:$0xff]
        %v386 = vld [vmem:[%s197 + $0x218] sm:$0xff]
        %v387 = vld [vmem:[%s197 + $0x220] sm:$0xff]
        %v388 = vld [vmem:[%s197 + $0x228] sm:$0xff]
        %v389 = vld [vmem:[%s197 + $0x230] sm:$0xff]
        %v390 = vld [vmem:[%s197 + $0x238] sm:$0xff]
        %v391 = vld [vmem:[%s197 + $0x240] sm:$0xff]
        %v392 = vld [vmem:[%s197 + $0x248] sm:$0xff]
        %v393 = vld [vmem:[%s197 + $0x250] sm:$0xff]
        %v394 = vld [vmem:[%s197 + $0x258] sm:$0xff]
        %v395 = vld [vmem:[%s197 + $0x260] sm:$0xff]
        %v396 = vld [vmem:[%s197 + $0x268] sm:$0xff]
        %v397 = vld [vmem:[%s197 + $0x270] sm:$0xff]
        %v398 = vld [vmem:[%s197 + $0x278] sm:$0xff]
        %v399 = vld [vmem:[%s197 + $0x280] sm:$0xff]
        %v400 = vld [vmem:[%s197 + $0x288] sm:$0xff]
        %v401 = vld [vmem:[%s197 + $0x290] sm:$0xff]
        %v402 = vld [vmem:[%s197 + $0x298] sm:$0xff]
        %v403 = vld [vmem:[%s197 + $0x2a0] sm:$0xff]
        %v404 = vld [vmem:[%s197 + $0x2a8] sm:$0xff]
        %v405 = vld [vmem:[%s197 + $0x2b0] sm:$0xff]
        %v406 = vld [vmem:[%s197 + $0x2b8] sm:$0xff]
        %v407 = vld [vmem:[%s197 + $0x2c0] sm:$0xff]
        %v408 = vld [vmem:[%s197 + $0x2c8] sm:$0xff]
        %v409 = vld [vmem:[%s197 + $0x2d0] sm:$0xff]
        %v410 = vld [vmem:[%s197 + $0x2d8] sm:$0xff]
        %v411 = vld [vmem:[%s197 + $0x2e0] sm:$0xff]
        %v412 = vld [vmem:[%s197 + $0x2e8] sm:$0xff]
        %v413 = vld [vmem:[%s197 + $0x2f0] sm:$0xff]
        %v414 = vld [vmem:[%s197 + $0x2f8] sm:$0xff]
        %v415 = vld [vmem:[%s197 + $0x300] sm:$0xff]
        %v416 = vld [vmem:[%s197 + $0x308] sm:$0xff]
        %v417 = vld [vmem:[%s197 + $0x310] sm:$0xff]
        %v418 = vld [vmem:[%s197 + $0x318] sm:$0xff]
        %v419 = vld [vmem:[%s197 + $0x320] sm:$0xff]
        %v420 = vld [vmem:[%s197 + $0x328] sm:$0xff]
        %v421 = vld [vmem:[%s197 + $0x330] sm:$0xff]
        %v422 = vld [vmem:[%s197 + $0x338] sm:$0xff]
        %v423 = vld [vmem:[%s197 + $0x340] sm:$0xff]
        %v424 = vld [vmem:[%s197 + $0x348] sm:$0xff]
        %v425 = vld [vmem:[%s197 + $0x350] sm:$0xff]
        %v426 = vld [vmem:[%s197 + $0x358] sm:$0xff]
        %v427 = vld [vmem:[%s197 + $0x360] sm:$0xff]
        %v428 = vld [vmem:[%s197 + $0x368] sm:$0xff]
        %v429 = vld [vmem:[%s197 + $0x370] sm:$0xff]
        %v430 = vld [vmem:[%s197 + $0x378] sm:$0xff]
        %v431 = vld [vmem:[%s197 + $0x380] sm:$0xff]
        %v432 = vld [vmem:[%s197 + $0x388] sm:$0xff]
        %v433 = vld [vmem:[%s197 + $0x390] sm:$0xff]
        %v434 = vld [vmem:[%s197 + $0x398] sm:$0xff]
        %v435 = vld [vmem:[%s197 + $0x3a0] sm:$0xff]
        %v436 = vld [vmem:[%s197 + $0x3a8] sm:$0xff]
        %v437 = vld [vmem:[%s197 + $0x3b0] sm:$0xff]
        %v438 = vld [vmem:[%s197 + $0x3b8] sm:$0xff]
        %v439 = vld [vmem:[%s197 + $0x3c0] sm:$0xff]
        %v440 = vld [vmem:[%s197 + $0x3c8] sm:$0xff]
        %v441 = vld [vmem:[%s197 + $0x3d0] sm:$0xff]
        %v442 = vld [vmem:[%s197 + $0x3d8] sm:$0xff]
        %v443 = vld [vmem:[%s197 + $0x3e0] sm:$0xff]
        %v444 = vld [vmem:[%s197 + $0x3e8] sm:$0xff]
        %v445 = vld [vmem:[%s197 + $0x3f0] sm:$0xff]
        %v446 = vld [vmem:[%s197 + $0x3f8] sm:$0xff]
        %v447 = vld [vmem:[%s197 + $0x400] sm:$0xff]
        %v448 = vld [vmem:[%s197 + $0x408] sm:$0xff]
        %449 = vxpose.xlu0.b32.start [1/16] %v293, 128
        %450 = vxpose.xlu0.b32.cont [2/16] %v294, 128
        %451 = vxpose.xlu0.b32.cont [3/16] %v295, 128
        %452 = vxpose.xlu0.b32.cont [4/16] %v296, 128
        %453 = vxpose.xlu0.b32.cont [5/16] %v297, 128
        %454 = vxpose.xlu0.b32.cont [6/16] %v298, 128
        %455 = vxpose.xlu0.b32.cont [7/16] %v299, 128
        %456 = vxpose.xlu0.b32.cont [8/16] %v300, 128
        %457 = vxpose.xlu0.b32.cont [9/16] %v301, 128
        %458 = vxpose.xlu0.b32.cont [10/16] %v302, 128
        %459 = vxpose.xlu0.b32.cont [11/16] %v303, 128
        %460 = vxpose.xlu0.b32.cont [12/16] %v304, 128
        %461 = vxpose.xlu0.b32.cont [13/16] %v305, 128
        %462 = vxpose.xlu0.b32.cont [14/16] %v306, 128
        %463 = vxpose.xlu0.b32.cont [15/16] %v307, 128
        %464 = vxpose.xlu0.b32.end [16/16] %v308, 128
        %v465 = vpop.trf.xlu0
        %v466 = vpop.trf.xlu0
        %v467 = vpop.trf.xlu0
        %v468 = vpop.trf.xlu0
        %v469 = vpop.trf.xlu0
        %v470 = vpop.trf.xlu0
        %v471 = vpop.trf.xlu0
        %v472 = vpop.trf.xlu0
        %v473 = vpop.trf.xlu0
        %v474 = vpop.trf.xlu0
        %v475 = vpop.trf.xlu0
        %v476 = vpop.trf.xlu0
        %v477 = vpop.trf.xlu0
        %v478 = vpop.trf.xlu0
        %v479 = vpop.trf.xlu0
        %v480 = vpop.trf.xlu0
        %481 = vxpose.xlu0.b32.start [1/16] %v309, 128
        %482 = vxpose.xlu0.b32.cont [2/16] %v310, 128
        %483 = vxpose.xlu0.b32.cont [3/16] %v311, 128
        %484 = vxpose.xlu0.b32.cont [4/16] %v312, 128
        %485 = vxpose.xlu0.b32.cont [5/16] %v313, 128
        %486 = vxpose.xlu0.b32.cont [6/16] %v314, 128
        %487 = vxpose.xlu0.b32.cont [7/16] %v315, 128
        %488 = vxpose.xlu0.b32.cont [8/16] %v316, 128
        %489 = vxpose.xlu0.b32.cont [9/16] %v317, 128
        %490 = vxpose.xlu0.b32.cont [10/16] %v318, 128
        %491 = vxpose.xlu0.b32.cont [11/16] 0.0, 128
        %492 = vxpose.xlu0.b32.cont [12/16] 0.0, 128
        %493 = vxpose.xlu0.b32.cont [13/16] 0.0, 128
        %494 = vxpose.xlu0.b32.cont [14/16] 0.0, 128
        %495 = vxpose.xlu0.b32.cont [15/16] 0.0, 128
        %496 = vxpose.xlu0.b32.end [16/16] 0.0, 128
        %v497 = vpop.trf.xlu0
        %v498 = vpop.trf.xlu0
        %v499 = vpop.trf.xlu0
        %v500 = vpop.trf.xlu0
        %v501 = vpop.trf.xlu0
        %v502 = vpop.trf.xlu0
        %v503 = vpop.trf.xlu0
        %v504 = vpop.trf.xlu0
        %v505 = vpop.trf.xlu0
        %v506 = vpop.trf.xlu0
        %v507 = vpop.trf.xlu0
        %v508 = vpop.trf.xlu0
        %v509 = vpop.trf.xlu0
        %v510 = vpop.trf.xlu0
        %v511 = vpop.trf.xlu0
        %v512 = vpop.trf.xlu0
        %vm513 = vcmask 654336
        %v515 = vsel %vm513, %v497, 0
        %v518 = vsel %vm513, %v498, 0
        %v521 = vsel %vm513, %v499, 0
        %v524 = vsel %vm513, %v500, 0
        %v527 = vsel %vm513, %v501, 0
        %v530 = vsel %vm513, %v502, 0
        %v533 = vsel %vm513, %v503, 0
        %v535 = vand.u32 %v320, 4294901760
        %536 = vmatprep.subr.mxu0 %v535
        %v537 = vand.u32 %v319, 4294901760
        %538 = vmatpush1.msra.mxu0 %v537
        %v539 = vand.u32 %v325, 4294901760
        %540 = vmatprep.subr.mxu0 %v539
        %v541 = vand.u32 %v324, 4294901760
        %542 = vmatpush1.msra.mxu0 %v541
        %v543 = vand.u32 %v330, 4294901760
        %544 = vmatprep.subr.mxu0 %v543
        %v545 = vand.u32 %v329, 4294901760
        %546 = vmatpush1.msra.mxu0 %v545
        %v547 = vand.u32 %v335, 4294901760
        %548 = vmatprep.subr.mxu0 %v547
        %v549 = vand.u32 %v334, 4294901760
        %550 = vmatpush1.msra.mxu0 %v549
        %v551 = vand.u32 %v340, 4294901760
        %552 = vmatprep.subr.mxu0 %v551
        %v553 = vand.u32 %v339, 4294901760
        %554 = vmatpush1.msra.mxu0 %v553
        %v555 = vand.u32 %v345, 4294901760
        %556 = vmatprep.subr.mxu0 %v555
        %v557 = vand.u32 %v344, 4294901760
        %558 = vmatpush1.msra.mxu0 %v557
        %v559 = vand.u32 %v350, 4294901760
        %560 = vmatprep.subr.mxu0 %v559
        %v561 = vand.u32 %v349, 4294901760
        %562 = vmatpush1.msra.mxu0 %v561
        %v563 = vand.u32 %v355, 4294901760
        %564 = vmatprep.subr.mxu0 %v563
        %v565 = vand.u32 %v354, 4294901760
        %566 = vmatpush1.msra.mxu0 %v565
        %v567 = vand.u32 %v360, 4294901760
        %568 = vmatprep.subr.mxu0 %v567
        %v569 = vand.u32 %v359, 4294901760
        %570 = vmatpush1.msra.mxu0 %v569
        %v571 = vand.u32 %v365, 4294901760
        %572 = vmatprep.subr.mxu0 %v571
        %v573 = vand.u32 %v364, 4294901760
        %574 = vmatpush1.msra.mxu0 %v573
        %v575 = vand.u32 %v370, 4294901760
        %576 = vmatprep.subr.mxu0 %v575
        %v577 = vand.u32 %v369, 4294901760
        %578 = vmatpush1.msra.mxu0 %v577
        %v579 = vand.u32 %v375, 4294901760
        %580 = vmatprep.subr.mxu0 %v579
        %v581 = vand.u32 %v374, 4294901760
        %582 = vmatpush1.msra.mxu0 %v581
        %v583 = vand.u32 %v380, 4294901760
        %584 = vmatprep.subr.mxu0 %v583
        %v585 = vand.u32 %v379, 4294901760
        %586 = vmatpush1.msra.mxu0 %v585
        %v587 = vand.u32 %v385, 4294901760
        %588 = vmatprep.subr.mxu0 %v587
        %v589 = vand.u32 %v384, 4294901760
        %590 = vmatpush1.msra.mxu0 %v589
        %v591 = vand.u32 %v390, 4294901760
        %592 = vmatprep.subr.mxu0 %v591
        %v593 = vand.u32 %v389, 4294901760
        %594 = vmatpush1.msra.mxu0 %v593
        %v595 = vand.u32 %v395, 4294901760
        %596 = vmatprep.subr.mxu0 %v595
        %v597 = vand.u32 %v394, 4294901760
        %598 = vmatpush1.msra.mxu0 %v597
        %v599 = vand.u32 %v400, 4294901760
        %600 = vmatprep.subr.mxu0 %v599
        %v601 = vand.u32 %v399, 4294901760
        %602 = vmatpush1.msra.mxu0 %v601
        %v603 = vand.u32 %v405, 4294901760
        %604 = vmatprep.subr.mxu0 %v603
        %v605 = vand.u32 %v404, 4294901760
        %606 = vmatpush1.msra.mxu0 %v605
        %v607 = vand.u32 %v410, 4294901760
        %608 = vmatprep.subr.mxu0 %v607
        %v609 = vand.u32 %v409, 4294901760
        %610 = vmatpush1.msra.mxu0 %v609
        %v611 = vand.u32 %v415, 4294901760
        %612 = vmatprep.subr.mxu0 %v611
        %v613 = vand.u32 %v414, 4294901760
        %614 = vmatpush1.msra.mxu0 %v613
        %v615 = vand.u32 %v420, 4294901760
        %616 = vmatprep.subr.mxu0 %v615
        %v617 = vand.u32 %v419, 4294901760
        %618 = vmatpush1.msra.mxu0 %v617
        %v619 = vand.u32 %v425, 4294901760
        %620 = vmatprep.subr.mxu0 %v619
        %v621 = vand.u32 %v424, 4294901760
        %622 = vmatpush1.msra.mxu0 %v621
        %v623 = vand.u32 %v430, 4294901760
        %624 = vmatprep.subr.mxu0 %v623
        %v625 = vand.u32 %v429, 4294901760
        %626 = vmatpush1.msra.mxu0 %v625
        %v627 = vand.u32 %v435, 4294901760
        %628 = vmatprep.subr.mxu0 %v627
        %v629 = vand.u32 %v434, 4294901760
        %630 = vmatpush1.msra.mxu0 %v629
        %v631 = vand.u32 %v440, 4294901760
        %632 = vmatprep.subr.mxu0 %v631
        %v633 = vand.u32 %v439, 4294901760
        %634 = vmatpush1.msra.mxu0 %v633
        %v635 = vand.u32 %v445, 4294901760
        %636 = vmatprep.subr.mxu0 %v635
        %v637 = vand.u32 %v444, 4294901760
        %638 = vmatpush1.msra.mxu0 %v637
        %639 = vmatprep.subr.mxu0 0.0
        %640 = vmatpush1.msra.mxu0 0.0
        %641 = vmatprep.subr.mxu0 0.0
        %642 = vmatpush1.msra.mxu0 0.0
        %643 = vmatprep.subr.mxu0 0.0
        %644 = vmatpush1.msra.mxu0 0.0
        %645 = vmatprep.subr.mxu0 0.0
        %646 = vmatpush1.msra.mxu0 0.0
        %647 = vmatprep.subr.mxu0 0.0
        %648 = vmatpush1.msra.mxu0 0.0
        %649 = vmatprep.subr.mxu0 0.0
        %650 = vmatpush1.msra.mxu0 0.0
        %v651 = vand.u32 %v515, 4294901760
        %v652 = vsub.f32 %v515, %v651
        %v653 = vand.u32 %v652, 4294901760
        %v654 = vsub.f32 %v652, %v653
        %v655 = vand.u32 %v654, 4294901760
        %656 = vmatprep.mubr.f32.mxu0 %v655
        %v657 = vand.u32 %v465, 4294901760
        %v658 = vsub.f32 %v465, %v657
        %v659 = vand.u32 %v658, 4294901760
        %v660 = vsub.f32 %v658, %v659
        %v661 = vand.u32 %v660, 4294901760
        %662 = vmatmul.mubr.f32.gmra.mrb[0].mxu0 %v661
        %v663 = vpop.f32.mrb[0].mxu0
        %v664 = vadd.f32 0.0, %v663
        %v665 = vpop.f32.mrb[0].mxu0
        %v666 = vadd.f32 0.0, %v665
        %v667 = vand.u32 %v518, 4294901760
        %v668 = vsub.f32 %v518, %v667
        %v669 = vand.u32 %v668, 4294901760
        %v670 = vsub.f32 %v668, %v669
        %v671 = vand.u32 %v670, 4294901760
        %672 = vmatprep.mubr.f32.mxu0 %v671
        %v673 = vand.u32 %v466, 4294901760
        %v674 = vsub.f32 %v466, %v673
        %v675 = vand.u32 %v674, 4294901760
        %v676 = vsub.f32 %v674, %v675
        %v677 = vand.u32 %v676, 4294901760
        %678 = vmatmul.mubr.f32.gmra.mrb[0].mxu0 %v677
        %v679 = vpop.f32.mrb[0].mxu0
        %v680 = vadd.f32 0.0, %v679
        %v681 = vpop.f32.mrb[0].mxu0
        %v682 = vadd.f32 0.0, %v681
        %v683 = vand.u32 %v521, 4294901760
        %v684 = vsub.f32 %v521, %v683
        %v685 = vand.u32 %v684, 4294901760
        %v686 = vsub.f32 %v684, %v685
        %v687 = vand.u32 %v686, 4294901760
        %688 = vmatprep.mubr.f32.mxu0 %v687
        %v689 = vand.u32 %v467, 4294901760
        %v690 = vsub.f32 %v467, %v689
        %v691 = vand.u32 %v690, 4294901760
        %v692 = vsub.f32 %v690, %v691
        %v693 = vand.u32 %v692, 4294901760
        %694 = vmatmul.mubr.f32.gmra.mrb[0].mxu0 %v693
        %v695 = vpop.f32.mrb[0].mxu0
        %v696 = vadd.f32 0.0, %v695
        %v697 = vpop.f32.mrb[0].mxu0
        %v698 = vadd.f32 0.0, %v697
        %v699 = vand.u32 %v524, 4294901760
        %v700 = vsub.f32 %v524, %v699
        %v701 = vand.u32 %v700, 4294901760
        %v702 = vsub.f32 %v700, %v701
        %v703 = vand.u32 %v702, 4294901760
        %704 = vmatprep.mubr.f32.mxu0 %v703
        %v705 = vand.u32 %v468, 4294901760
        %v706 = vsub.f32 %v468, %v705
        %v707 = vand.u32 %v706, 4294901760
        %v708 = vsub.f32 %v706, %v707
        %v709 = vand.u32 %v708, 4294901760
        %710 = vmatmul.mubr.f32.gmra.mrb[0].mxu0 %v709
        %v711 = vpop.f32.mrb[0].mxu0
        %v712 = vadd.f32 0.0, %v711
        %v713 = vpop.f32.mrb[0].mxu0
        %v714 = vadd.f32 0.0, %v713
        %v715 = vand.u32 %v527, 4294901760
        %v716 = vsub.f32 %v527, %v715
        %v717 = vand.u32 %v716, 4294901760
        %v718 = vsub.f32 %v716, %v717
        %v719 = vand.u32 %v718, 4294901760
        %720 = vmatprep.mubr.f32.mxu0 %v719
        %v721 = vand.u32 %v469, 4294901760
        %v722 = vsub.f32 %v469, %v721
        %v723 = vand.u32 %v722, 4294901760
        %v724 = vsub.f32 %v722, %v723
        %v725 = vand.u32 %v724, 4294901760
        %726 = vmatmul.mubr.f32.gmra.mrb[0].mxu0 %v725
        %v727 = vpop.f32.mrb[0].mxu0
        %v728 = vadd.f32 0.0, %v727
        %v729 = vpop.f32.mrb[0].mxu0
        %v730 = vadd.f32 0.0, %v729
        %v731 = vand.u32 %v530, 4294901760
        %v732 = vsub.f32 %v530, %v731
        %v733 = vand.u32 %v732, 4294901760
        %v734 = vsub.f32 %v732, %v733
        %v735 = vand.u32 %v734, 4294901760
        %736 = vmatprep.mubr.f32.mxu0 %v735
        %v737 = vand.u32 %v470, 4294901760
        %v738 = vsub.f32 %v470, %v737
        %v739 = vand.u32 %v738, 4294901760
        %v740 = vsub.f32 %v738, %v739
        %v741 = vand.u32 %v740, 4294901760
        %742 = vmatmul.mubr.f32.gmra.mrb[0].mxu0 %v741
        %v743 = vpop.f32.mrb[0].mxu0
        %v744 = vadd.f32 0.0, %v743
        %v745 = vpop.f32.mrb[0].mxu0
        %v746 = vadd.f32 0.0, %v745
        %v747 = vand.u32 %v533, 4294901760
        %v748 = vsub.f32 %v533, %v747
        %v749 = vand.u32 %v748, 4294901760
        %v750 = vsub.f32 %v748, %v749
        %v751 = vand.u32 %v750, 4294901760
        %752 = vmatprep.mubr.f32.mxu0 %v751
        %v753 = vand.u32 %v471, 4294901760
        %v754 = vsub.f32 %v471, %v753
        %v755 = vand.u32 %v754, 4294901760
        %v756 = vsub.f32 %v754, %v755
        %v757 = vand.u32 %v756, 4294901760
        %758 = vmatmul.mubr.f32.gmra.mrb[0].mxu0 %v757
        %v759 = vpop.f32.mrb[0].mxu0
        %v760 = vadd.f32 0.0, %v759
        %v761 = vpop.f32.mrb[0].mxu0
        %v762 = vadd.f32 0.0, %v761
        %763 = vdwg.mxu0
        %v764 = vand.u32 %v320, 4294901760
        %v765 = vsub.f32 %v320, %v764
        %v766 = vand.u32 %v765, 4294901760
        %v767 = vsub.f32 %v765, %v766
        %v768 = vand.u32 %v767, 4294901760
        %769 = vmatprep.subr.mxu0 %v768
        %v770 = vand.u32 %v319, 4294901760
        %v771 = vsub.f32 %v319, %v770
        %v772 = vand.u32 %v771, 4294901760
        %v773 = vsub.f32 %v771, %v772
        %v774 = vand.u32 %v773, 4294901760
        %775 = vmatpush1.msra.mxu0 %v774
        %v776 = vand.u32 %v325, 4294901760
        %v777 = vsub.f32 %v325, %v776
        %v778 = vand.u32 %v777, 4294901760
        %v779 = vsub.f32 %v777, %v778
        %v780 = vand.u32 %v779, 4294901760
        %781 = vmatprep.subr.mxu0 %v780
        %v782 = vand.u32 %v324, 4294901760
        %v783 = vsub.f32 %v324, %v782
        %v784 = vand.u32 %v783, 4294901760
        %v785 = vsub.f32 %v783, %v784
        %v786 = vand.u32 %v785, 4294901760
        %787 = vmatpush1.msra.mxu0 %v786
        %v788 = vand.u32 %v330, 4294901760
        %v789 = vsub.f32 %v330, %v788
        %v790 = vand.u32 %v789, 4294901760
        %v791 = vsub.f32 %v789, %v790
        %v792 = vand.u32 %v791, 4294901760
        %793 = vmatprep.subr.mxu0 %v792
        %v794 = vand.u32 %v329, 4294901760
        %v795 = vsub.f32 %v329, %v794
        %v796 = vand.u32 %v795, 4294901760
        %v797 = vsub.f32 %v795, %v796
        %v798 = vand.u32 %v797, 4294901760
        %799 = vmatpush1.msra.mxu0 %v798
        %v800 = vand.u32 %v335, 4294901760
        %v801 = vsub.f32 %v335, %v800
        %v802 = vand.u32 %v801, 4294901760
        %v803 = vsub.f32 %v801, %v802
        %v804 = vand.u32 %v803, 4294901760
        %805 = vmatprep.subr.mxu0 %v804
        %v806 = vand.u32 %v334, 4294901760
        %v807 = vsub.f32 %v334, %v806
        %v808 = vand.u32 %v807, 4294901760
        %v809 = vsub.f32 %v807, %v808
        %v810 = vand.u32 %v809, 4294901760
        %811 = vmatpush1.msra.mxu0 %v810
        %v812 = vand.u32 %v340, 4294901760
        %v813 = vsub.f32 %v340, %v812
        %v814 = vand.u32 %v813, 4294901760
        %v815 = vsub.f32 %v813, %v814
        %v816 = vand.u32 %v815, 4294901760
        %817 = vmatprep.subr.mxu0 %v816
        %v818 = vand.u32 %v339, 4294901760
        %v819 = vsub.f32 %v339, %v818
        %v820 = vand.u32 %v819, 4294901760
        %v821 = vsub.f32 %v819, %v820
        %v822 = vand.u32 %v821, 4294901760
        %823 = vmatpush1.msra.mxu0 %v822
        %v824 = vand.u32 %v345, 4294901760
        %v825 = vsub.f32 %v345, %v824
        %v826 = vand.u32 %v825, 4294901760
        %v827 = vsub.f32 %v825, %v826
        %v828 = vand.u32 %v827, 4294901760
        %829 = vmatprep.subr.mxu0 %v828
        %v830 = vand.u32 %v344, 4294901760
        %v831 = vsub.f32 %v344, %v830
        %v832 = vand.u32 %v831, 4294901760
        %v833 = vsub.f32 %v831, %v832
        %v834 = vand.u32 %v833, 4294901760
        %835 = vmatpush1.msra.mxu0 %v834
        %v836 = vand.u32 %v350, 4294901760
        %v837 = vsub.f32 %v350, %v836
        %v838 = vand.u32 %v837, 4294901760
        %v839 = vsub.f32 %v837, %v838
        %v840 = vand.u32 %v839, 4294901760
        %841 = vmatprep.subr.mxu0 %v840
        %v842 = vand.u32 %v349, 4294901760
        %v843 = vsub.f32 %v349, %v842
        %v844 = vand.u32 %v843, 4294901760
        %v845 = vsub.f32 %v843, %v844
        %v846 = vand.u32 %v845, 4294901760
        %847 = vmatpush1.msra.mxu0 %v846
        %v848 = vand.u32 %v355, 4294901760
        %v849 = vsub.f32 %v355, %v848
        %v850 = vand.u32 %v849, 4294901760
        %v851 = vsub.f32 %v849, %v850
        %v852 = vand.u32 %v851, 4294901760
        %853 = vmatprep.subr.mxu0 %v852
        %v854 = vand.u32 %v354, 4294901760
        %v855 = vsub.f32 %v354, %v854
        %v856 = vand.u32 %v855, 4294901760
        %v857 = vsub.f32 %v855, %v856
        %v858 = vand.u32 %v857, 4294901760
        %859 = vmatpush1.msra.mxu0 %v858
        %v860 = vand.u32 %v360, 4294901760
        %v861 = vsub.f32 %v360, %v860
        %v862 = vand.u32 %v861, 4294901760
        %v863 = vsub.f32 %v861, %v862
        %v864 = vand.u32 %v863, 4294901760
        %865 = vmatprep.subr.mxu0 %v864
        %v866 = vand.u32 %v359, 4294901760
        %v867 = vsub.f32 %v359, %v866
        %v868 = vand.u32 %v867, 4294901760
        %v869 = vsub.f32 %v867, %v868
        %v870 = vand.u32 %v869, 4294901760
        %871 = vmatpush1.msra.mxu0 %v870
        %v872 = vand.u32 %v365, 4294901760
        %v873 = vsub.f32 %v365, %v872
        %v874 = vand.u32 %v873, 4294901760
        %v875 = vsub.f32 %v873, %v874
        %v876 = vand.u32 %v875, 4294901760
        %877 = vmatprep.subr.mxu0 %v876
        %v878 = vand.u32 %v364, 4294901760
        %v879 = vsub.f32 %v364, %v878
        %v880 = vand.u32 %v879, 4294901760
        %v881 = vsub.f32 %v879, %v880
        %v882 = vand.u32 %v881, 4294901760
        %883 = vmatpush1.msra.mxu0 %v882
        %v884 = vand.u32 %v370, 4294901760
        %v885 = vsub.f32 %v370, %v884
        %v886 = vand.u32 %v885, 4294901760
        %v887 = vsub.f32 %v885, %v886
        %v888 = vand.u32 %v887, 4294901760
        %889 = vmatprep.subr.mxu0 %v888
        %v890 = vand.u32 %v369, 4294901760
        %v891 = vsub.f32 %v369, %v890
        %v892 = vand.u32 %v891, 4294901760
        %v893 = vsub.f32 %v891, %v892
        %v894 = vand.u32 %v893, 4294901760
        %895 = vmatpush1.msra.mxu0 %v894
        %v896 = vand.u32 %v375, 4294901760
        %v897 = vsub.f32 %v375, %v896
        %v898 = vand.u32 %v897, 4294901760
        %v899 = vsub.f32 %v897, %v898
        %v900 = vand.u32 %v899, 4294901760
        %901 = vmatprep.subr.mxu0 %v900
        %v902 = vand.u32 %v374, 4294901760
        %v903 = vsub.f32 %v374, %v902
        %v904 = vand.u32 %v903, 4294901760
        %v905 = vsub.f32 %v903, %v904
        %v906 = vand.u32 %v905, 4294901760
        %907 = vmatpush1.msra.mxu0 %v906
        %v908 = vand.u32 %v380, 4294901760
        %v909 = vsub.f32 %v380, %v908
        %v910 = vand.u32 %v909, 4294901760
        %v911 = vsub.f32 %v909, %v910
        %v912 = vand.u32 %v911, 4294901760
        %913 = vmatprep.subr.mxu0 %v912
        %v914 = vand.u32 %v379, 4294901760
        %v915 = vsub.f32 %v379, %v914
        %v916 = vand.u32 %v915, 4294901760
        %v917 = vsub.f32 %v915, %v916
        %v918 = vand.u32 %v917, 4294901760
        %919 = vmatpush1.msra.mxu0 %v918
        %v920 = vand.u32 %v385, 4294901760
        %v921 = vsub.f32 %v385, %v920
        %v922 = vand.u32 %v921, 4294901760
        %v923 = vsub.f32 %v921, %v922
        %v924 = vand.u32 %v923, 4294901760
        %925 = vmatprep.subr.mxu0 %v924
        %v926 = vand.u32 %v384, 4294901760
        %v927 = vsub.f32 %v384, %v926
        %v928 = vand.u32 %v927, 4294901760
        %v929 = vsub.f32 %v927, %v928
        %v930 = vand.u32 %v929, 4294901760
        %931 = vmatpush1.msra.mxu0 %v930
        %v932 = vand.u32 %v390, 4294901760
        %v933 = vsub.f32 %v390, %v932
        %v934 = vand.u32 %v933, 4294901760
        %v935 = vsub.f32 %v933, %v934
        %v936 = vand.u32 %v935, 4294901760
        %937 = vmatprep.subr.mxu0 %v936
        %v938 = vand.u32 %v389, 4294901760
        %v939 = vsub.f32 %v389, %v938
        %v940 = vand.u32 %v939, 4294901760
        %v941 = vsub.f32 %v939, %v940
        %v942 = vand.u32 %v941, 4294901760
        %943 = vmatpush1.msra.mxu0 %v942
        %v944 = vand.u32 %v395, 4294901760
        %v945 = vsub.f32 %v395, %v944
        %v946 = vand.u32 %v945, 4294901760
        %v947 = vsub.f32 %v945, %v946
        %v948 = vand.u32 %v947, 4294901760
        %949 = vmatprep.subr.mxu0 %v948
        %v950 = vand.u32 %v394, 4294901760
        %v951 = vsub.f32 %v394, %v950
        %v952 = vand.u32 %v951, 4294901760
        %v953 = vsub.f32 %v951, %v952
        %v954 = vand.u32 %v953, 4294901760
        %955 = vmatpush1.msra.mxu0 %v954
        %v956 = vand.u32 %v400, 4294901760
        %v957 = vsub.f32 %v400, %v956
        %v958 = vand.u32 %v957, 4294901760
        %v959 = vsub.f32 %v957, %v958
        %v960 = vand.u32 %v959, 4294901760
        %961 = vmatprep.subr.mxu0 %v960
        %v962 = vand.u32 %v399, 4294901760
        %v963 = vsub.f32 %v399, %v962
        %v964 = vand.u32 %v963, 4294901760
        %v965 = vsub.f32 %v963, %v964
        %v966 = vand.u32 %v965, 4294901760
        %967 = vmatpush1.msra.mxu0 %v966
        %v968 = vand.u32 %v405, 4294901760
        %v969 = vsub.f32 %v405, %v968
        %v970 = vand.u32 %v969, 4294901760
        %v971 = vsub.f32 %v969, %v970
        %v972 = vand.u32 %v971, 4294901760
        %973 = vmatprep.subr.mxu0 %v972
        %v974 = vand.u32 %v404, 4294901760
        %v975 = vsub.f32 %v404, %v974
        %v976 = vand.u32 %v975, 4294901760
        %v977 = vsub.f32 %v975, %v976
        %v978 = vand.u32 %v977, 4294901760
        %979 = vmatpush1.msra.mxu0 %v978
        %v980 = vand.u32 %v410, 4294901760
        %v981 = vsub.f32 %v410, %v980
        %v982 = vand.u32 %v981, 4294901760
        %v983 = vsub.f32 %v981, %v982
        %v984 = vand.u32 %v983, 4294901760
        %985 = vmatprep.subr.mxu0 %v984
        %v986 = vand.u32 %v409, 4294901760
        %v987 = vsub.f32 %v409, %v986
        %v988 = vand.u32 %v987, 4294901760
        %v989 = vsub.f32 %v987, %v988
        %v990 = vand.u32 %v989, 4294901760
        %991 = vmatpush1.msra.mxu0 %v990
        %v992 = vand.u32 %v415, 4294901760
        %v993 = vsub.f32 %v415, %v992
        %v994 = vand.u32 %v993, 4294901760
        %v995 = vsub.f32 %v993, %v994
        %v996 = vand.u32 %v995, 4294901760
        %997 = vmatprep.subr.mxu0 %v996
        %v998 = vand.u32 %v414, 4294901760
        %v999 = vsub.f32 %v414, %v998
        %v1000 = vand.u32 %v999, 4294901760
        %v1001 = vsub.f32 %v999, %v1000
        %v1002 = vand.u32 %v1001, 4294901760
        %1003 = vmatpush1.msra.mxu0 %v1002
        %v1004 = vand.u32 %v420, 4294901760
        %v1005 = vsub.f32 %v420, %v1004
        %v1006 = vand.u32 %v1005, 4294901760
        %v1007 = vsub.f32 %v1005, %v1006
        %v1008 = vand.u32 %v1007, 4294901760
        %1009 = vmatprep.subr.mxu0 %v1008
        %v1010 = vand.u32 %v419, 4294901760
        %v1011 = vsub.f32 %v419, %v1010
        %v1012 = vand.u32 %v1011, 4294901760
        %v1013 = vsub.f32 %v1011, %v1012
        %v1014 = vand.u32 %v1013, 4294901760
        %1015 = vmatpush1.msra.mxu0 %v1014
        %v1016 = vand.u32 %v425, 4294901760
        %v1017 = vsub.f32 %v425, %v1016
        %v1018 = vand.u32 %v1017, 4294901760
        %v1019 = vsub.f32 %v1017, %v1018
        %v1020 = vand.u32 %v1019, 4294901760
        %1021 = vmatprep.subr.mxu0 %v1020
        %v1022 = vand.u32 %v424, 4294901760
        %v1023 = vsub.f32 %v424, %v1022
        %v1024 = vand.u32 %v1023, 4294901760
        %v1025 = vsub.f32 %v1023, %v1024
        %v1026 = vand.u32 %v1025, 4294901760
        %1027 = vmatpush1.msra.mxu0 %v1026
        %v1028 = vand.u32 %v430, 4294901760
        %v1029 = vsub.f32 %v430, %v1028
        %v1030 = vand.u32 %v1029, 4294901760
        %v1031 = vsub.f32 %v1029, %v1030
        %v1032 = vand.u32 %v1031, 4294901760
        %1033 = vmatprep.subr.mxu0 %v1032
        %v1034 = vand.u32 %v429, 4294901760
        %v1035 = vsub.f32 %v429, %v1034
        %v1036 = vand.u32 %v1035, 4294901760
        %v1037 = vsub.f32 %v1035, %v1036
        %v1038 = vand.u32 %v1037, 4294901760
        %1039 = vmatpush1.msra.mxu0 %v1038
        %v1040 = vand.u32 %v435, 4294901760
        %v1041 = vsub.f32 %v435, %v1040
        %v1042 = vand.u32 %v1041, 4294901760
        %v1043 = vsub.f32 %v1041, %v1042
        %v1044 = vand.u32 %v1043, 4294901760
        %1045 = vmatprep.subr.mxu0 %v1044
        %v1046 = vand.u32 %v434, 4294901760
        %v1047 = vsub.f32 %v434, %v1046
        %v1048 = vand.u32 %v1047, 4294901760
        %v1049 = vsub.f32 %v1047, %v1048
        %v1050 = vand.u32 %v1049, 4294901760
        %1051 = vmatpush1.msra.mxu0 %v1050
        %v1052 = vand.u32 %v440, 4294901760
        %v1053 = vsub.f32 %v440, %v1052
        %v1054 = vand.u32 %v1053, 4294901760
        %v1055 = vsub.f32 %v1053, %v1054
        %v1056 = vand.u32 %v1055, 4294901760
        %1057 = vmatprep.subr.mxu0 %v1056
        %v1058 = vand.u32 %v439, 4294901760
        %v1059 = vsub.f32 %v439, %v1058
        %v1060 = vand.u32 %v1059, 4294901760
        %v1061 = vsub.f32 %v1059, %v1060
        %v1062 = vand.u32 %v1061, 4294901760
        %1063 = vmatpush1.msra.mxu0 %v1062
        %v1064 = vand.u32 %v445, 4294901760
        %v1065 = vsub.f32 %v445, %v1064
        %v1066 = vand.u32 %v1065, 4294901760
        %v1067 = vsub.f32 %v1065, %v1066
        %v1068 = vand.u32 %v1067, 4294901760
        %1069 = vmatprep.subr.mxu0 %v1068
        %v1070 = vand.u32 %v444, 4294901760
        %v1071 = vsub.f32 %v444, %v1070
        %v1072 = vand.u32 %v1071, 4294901760
        %v1073 = vsub.f32 %v1071, %v1072
        %v1074 = vand.u32 %v1073, 4294901760
        %1075 = vmatpush1.msra.mxu0 %v1074
        %1076 = vmatprep.subr.mxu0 0.0
        %1077 = vmatpush1.msra.mxu0 0.0
        %1078 = vmatprep.subr.mxu0 0.0
        %1079 = vmatpush1.msra.mxu0 0.0
        %1080 = vmatprep.subr.mxu0 0.0
        %1081 = vmatpush1.msra.mxu0 0.0
        %1082 = vmatprep.subr.mxu0 0.0
        %1083 = vmatpush1.msra.mxu0 0.0
        %1084 = vmatprep.subr.mxu0 0.0
        %1085 = vmatpush1.msra.mxu0 0.0
        %1086 = vmatprep.subr.mxu0 0.0
        %1087 = vmatpush1.msra.mxu0 0.0
        %v1088 = vand.u32 %v515, 4294901760
        %1089 = vmatprep.mubr.f32.mxu0 %v1088
        %v1090 = vand.u32 %v465, 4294901760
        %1091 = vmatmul.mubr.f32.gmra.mrb[0].mxu0 %v1090
        %v1092 = vpop.f32.mrb[0].mxu0
        %v1093 = vadd.f32 %v664, %v1092
        %v1094 = vpop.f32.mrb[0].mxu0
        %v1095 = vadd.f32 %v666, %v1094
        %v1096 = vand.u32 %v518, 4294901760
        %1097 = vmatprep.mubr.f32.mxu0 %v1096
        %v1098 = vand.u32 %v466, 4294901760
        %1099 = vmatmul.mubr.f32.gmra.mrb[0].mxu0 %v1098
        %v1100 = vpop.f32.mrb[0].mxu0
        %v1101 = vadd.f32 %v680, %v1100
        %v1102 = vpop.f32.mrb[0].mxu0
        %v1103 = vadd.f32 %v682, %v1102
        %v1104 = vand.u32 %v521, 4294901760
        %1105 = vmatprep.mubr.f32.mxu0 %v1104
        %v1106 = vand.u32 %v467, 4294901760
        %1107 = vmatmul.mubr.f32.gmra.mrb[0].mxu0 %v1106
        %v1108 = vpop.f32.mrb[0].mxu0
        %v1109 = vadd.f32 %v696, %v1108
        %v1110 = vpop.f32.mrb[0].mxu0
        %v1111 = vadd.f32 %v698, %v1110
        %v1112 = vand.u32 %v524, 4294901760
        %1113 = vmatprep.mubr.f32.mxu0 %v1112
        %v1114 = vand.u32 %v468, 4294901760
        %1115 = vmatmul.mubr.f32.gmra.mrb[0].mxu0 %v1114
        %v1116 = vpop.f32.mrb[0].mxu0
        %v1117 = vadd.f32 %v712, %v1116
        %v1118 = vpop.f32.mrb[0].mxu0
        %v1119 = vadd.f32 %v714, %v1118
        %v1120 = vand.u32 %v527, 4294901760
        %1121 = vmatprep.mubr.f32.mxu0 %v1120
        %v1122 = vand.u32 %v469, 4294901760
        %1123 = vmatmul.mubr.f32.gmra.mrb[0].mxu0 %v1122
        %v1124 = vpop.f32.mrb[0].mxu0
        %v1125 = vadd.f32 %v728, %v1124
        %v1126 = vpop.f32.mrb[0].mxu0
        %v1127 = vadd.f32 %v730, %v1126
        %v1128 = vand.u32 %v530, 4294901760
        %1129 = vmatprep.mubr.f32.mxu0 %v1128
        %v1130 = vand.u32 %v470, 4294901760
        %1131 = vmatmul.mubr.f32.gmra.mrb[0].mxu0 %v1130
        %v1132 = vpop.f32.mrb[0].mxu0
        %v1133 = vadd.f32 %v744, %v1132
        %v1134 = vpop.f32.mrb[0].mxu0
        %v1135 = vadd.f32 %v746, %v1134
        %v1136 = vand.u32 %v533, 4294901760
        %1137 = vmatprep.mubr.f32.mxu0 %v1136
        %v1138 = vand.u32 %v471, 4294901760
        %1139 = vmatmul.mubr.f32.gmra.mrb[0].mxu0 %v1138
        %v1140 = vpop.f32.mrb[0].mxu0
        %v1141 = vadd.f32 %v760, %v1140
        %v1142 = vpop.f32.mrb[0].mxu0
        %v1143 = vadd.f32 %v762, %v1142
        %1144 = vdwg.mxu0
        %v1145 = vand.u32 %v320, 4294901760
        %v1146 = vsub.f32 %v320, %v1145
        %1147 = vmatprep.subr.mxu0 %v1146
        %v1148 = vand.u32 %v319, 4294901760
        %v1149 = vsub.f32 %v319, %v1148
        %1150 = vmatpush1.msra.mxu0 %v1149
        %v1151 = vand.u32 %v325, 4294901760
        %v1152 = vsub.f32 %v325, %v1151
        %1153 = vmatprep.subr.mxu0 %v1152
        %v1154 = vand.u32 %v324, 4294901760
        %v1155 = vsub.f32 %v324, %v1154
        %1156 = vmatpush1.msra.mxu0 %v1155
        %v1157 = vand.u32 %v330, 4294901760
        %v1158 = vsub.f32 %v330, %v1157
        %1159 = vmatprep.subr.mxu0 %v1158
        %v1160 = vand.u32 %v329, 4294901760
        %v1161 = vsub.f32 %v329, %v1160
        %1162 = vmatpush1.msra.mxu0 %v1161
        %v1163 = vand.u32 %v335, 4294901760
        %v1164 = vsub.f32 %v335, %v1163
        %1165 = vmatprep.subr.mxu0 %v1164
        %v1166 = vand.u32 %v334, 4294901760
        %v1167 = vsub.f32 %v334, %v1166
        %1168 = vmatpush1.msra.mxu0 %v1167
        %v1169 = vand.u32 %v340, 4294901760
        %v1170 = vsub.f32 %v340, %v1169
        %1171 = vmatprep.subr.mxu0 %v1170
        %v1172 = vand.u32 %v339, 4294901760
        %v1173 = vsub.f32 %v339, %v1172
        %1174 = vmatpush1.msra.mxu0 %v1173
        %v1175 = vand.u32 %v345, 4294901760
        %v1176 = vsub.f32 %v345, %v1175
        %1177 = vmatprep.subr.mxu0 %v1176
        %v1178 = vand.u32 %v344, 4294901760
        %v1179 = vsub.f32 %v344, %v1178
        %1180 = vmatpush1.msra.mxu0 %v1179
        %v1181 = vand.u32 %v350, 4294901760
        %v1182 = vsub.f32 %v350, %v1181
        %1183 = vmatprep.subr.mxu0 %v1182
        %v1184 = vand.u32 %v349, 4294901760
        %v1185 = vsub.f32 %v349, %v1184
        %1186 = vmatpush1.msra.mxu0 %v1185
        %v1187 = vand.u32 %v355, 4294901760
        %v1188 = vsub.f32 %v355, %v1187
        %1189 = vmatprep.subr.mxu0 %v1188
        %v1190 = vand.u32 %v354, 4294901760
        %v1191 = vsub.f32 %v354, %v1190
        %1192 = vmatpush1.msra.mxu0 %v1191
        %v1193 = vand.u32 %v360, 4294901760
        %v1194 = vsub.f32 %v360, %v1193
        %1195 = vmatprep.subr.mxu0 %v1194
        %v1196 = vand.u32 %v359, 4294901760
        %v1197 = vsub.f32 %v359, %v1196
        %1198 = vmatpush1.msra.mxu0 %v1197
        %v1199 = vand.u32 %v365, 4294901760
        %v1200 = vsub.f32 %v365, %v1199
        %1201 = vmatprep.subr.mxu0 %v1200
        %v1202 = vand.u32 %v364, 4294901760
        %v1203 = vsub.f32 %v364, %v1202
        %1204 = vmatpush1.msra.mxu0 %v1203
        %v1205 = vand.u32 %v370, 4294901760
        %v1206 = vsub.f32 %v370, %v1205
        %1207 = vmatprep.subr.mxu0 %v1206
        %v1208 = vand.u32 %v369, 4294901760
        %v1209 = vsub.f32 %v369, %v1208
        %1210 = vmatpush1.msra.mxu0 %v1209
        %v1211 = vand.u32 %v375, 4294901760
        %v1212 = vsub.f32 %v375, %v1211
        %1213 = vmatprep.subr.mxu0 %v1212
        %v1214 = vand.u32 %v374, 4294901760
        %v1215 = vsub.f32 %v374, %v1214
        %1216 = vmatpush1.msra.mxu0 %v1215
        %v1217 = vand.u32 %v380, 4294901760
        %v1218 = vsub.f32 %v380, %v1217
        %1219 = vmatprep.subr.mxu0 %v1218
        %v1220 = vand.u32 %v379, 4294901760
        %v1221 = vsub.f32 %v379, %v1220
        %1222 = vmatpush1.msra.mxu0 %v1221
        %v1223 = vand.u32 %v385, 4294901760
        %v1224 = vsub.f32 %v385, %v1223
        %1225 = vmatprep.subr.mxu0 %v1224
        %v1226 = vand.u32 %v384, 4294901760
        %v1227 = vsub.f32 %v384, %v1226
        %1228 = vmatpush1.msra.mxu0 %v1227
        %v1229 = vand.u32 %v390, 4294901760
        %v1230 = vsub.f32 %v390, %v1229
        %1231 = vmatprep.subr.mxu0 %v1230
        %v1232 = vand.u32 %v389, 4294901760
        %v1233 = vsub.f32 %v389, %v1232
        %1234 = vmatpush1.msra.mxu0 %v1233
        %v1235 = vand.u32 %v395, 4294901760
        %v1236 = vsub.f32 %v395, %v1235
        %1237 = vmatprep.subr.mxu0 %v1236
        %v1238 = vand.u32 %v394, 4294901760
        %v1239 = vsub.f32 %v394, %v1238
        %1240 = vmatpush1.msra.mxu0 %v1239
        %v1241 = vand.u32 %v400, 4294901760
        %v1242 = vsub.f32 %v400, %v1241
        %1243 = vmatprep.subr.mxu0 %v1242
        %v1244 = vand.u32 %v399, 4294901760
        %v1245 = vsub.f32 %v399, %v1244
        %1246 = vmatpush1.msra.mxu0 %v1245
        %v1247 = vand.u32 %v405, 4294901760
        %v1248 = vsub.f32 %v405, %v1247
        %1249 = vmatprep.subr.mxu0 %v1248
        %v1250 = vand.u32 %v404, 4294901760
        %v1251 = vsub.f32 %v404, %v1250
        %1252 = vmatpush1.msra.mxu0 %v1251
        %v1253 = vand.u32 %v410, 4294901760
        %v1254 = vsub.f32 %v410, %v1253
        %1255 = vmatprep.subr.mxu0 %v1254
        %v1256 = vand.u32 %v409, 4294901760
        %v1257 = vsub.f32 %v409, %v1256
        %1258 = vmatpush1.msra.mxu0 %v1257
        %v1259 = vand.u32 %v415, 4294901760
        %v1260 = vsub.f32 %v415, %v1259
        %1261 = vmatprep.subr.mxu0 %v1260
        %v1262 = vand.u32 %v414, 4294901760
        %v1263 = vsub.f32 %v414, %v1262
        %1264 = vmatpush1.msra.mxu0 %v1263
        %v1265 = vand.u32 %v420, 4294901760
        %v1266 = vsub.f32 %v420, %v1265
        %1267 = vmatprep.subr.mxu0 %v1266
        %v1268 = vand.u32 %v419, 4294901760
        %v1269 = vsub.f32 %v419, %v1268
        %1270 = vmatpush1.msra.mxu0 %v1269
        %v1271 = vand.u32 %v425, 4294901760
        %v1272 = vsub.f32 %v425, %v1271
        %1273 = vmatprep.subr.mxu0 %v1272
        %v1274 = vand.u32 %v424, 4294901760
        %v1275 = vsub.f32 %v424, %v1274
        %1276 = vmatpush1.msra.mxu0 %v1275
        %v1277 = vand.u32 %v430, 4294901760
        %v1278 = vsub.f32 %v430, %v1277
        %1279 = vmatprep.subr.mxu0 %v1278
        %v1280 = vand.u32 %v429, 4294901760
        %v1281 = vsub.f32 %v429, %v1280
        %1282 = vmatpush1.msra.mxu0 %v1281
        %v1283 = vand.u32 %v435, 4294901760
        %v1284 = vsub.f32 %v435, %v1283
        %1285 = vmatprep.subr.mxu0 %v1284
        %v1286 = vand.u32 %v434, 4294901760
        %v1287 = vsub.f32 %v434, %v1286
        %1288 = vmatpush1.msra.mxu0 %v1287
        %v1289 = vand.u32 %v440, 4294901760
        %v1290 = vsub.f32 %v440, %v1289
        %1291 = vmatprep.subr.mxu0 %v1290
        %v1292 = vand.u32 %v439, 4294901760
        %v1293 = vsub.f32 %v439, %v1292
        %1294 = vmatpush1.msra.mxu0 %v1293
        %v1295 = vand.u32 %v445, 4294901760
        %v1296 = vsub.f32 %v445, %v1295
        %1297 = vmatprep.subr.mxu0 %v1296
        %v1298 = vand.u32 %v444, 4294901760
        %v1299 = vsub.f32 %v444, %v1298
        %1300 = vmatpush1.msra.mxu0 %v1299
        %1301 = vmatprep.subr.mxu0 0.0
        %1302 = vmatpush1.msra.mxu0 0.0
        %1303 = vmatprep.subr.mxu0 0.0
        %1304 = vmatpush1.msra.mxu0 0.0
        %1305 = vmatprep.subr.mxu0 0.0
        %1306 = vmatpush1.msra.mxu0 0.0
        %1307 = vmatprep.subr.mxu0 0.0
        %1308 = vmatpush1.msra.mxu0 0.0
        %1309 = vmatprep.subr.mxu0 0.0
        %1310 = vmatpush1.msra.mxu0 0.0
        %1311 = vmatprep.subr.mxu0 0.0
        %1312 = vmatpush1.msra.mxu0 0.0
        %v1313 = vand.u32 %v515, 4294901760
        %v1314 = vsub.f32 %v515, %v1313
        %1315 = vmatprep.mubr.f32.mxu0 %v1314
        %v1316 = vand.u32 %v465, 4294901760
        %v1317 = vsub.f32 %v465, %v1316
        %1318 = vmatmul.mubr.f32.gmra.mrb[0].mxu0 %v1317
        %v1319 = vpop.f32.mrb[0].mxu0
        %v1320 = vadd.f32 %v1093, %v1319
        %v1321 = vpop.f32.mrb[0].mxu0
        %v1322 = vadd.f32 %v1095, %v1321
        %v1323 = vand.u32 %v518, 4294901760
        %v1324 = vsub.f32 %v518, %v1323
        %1325 = vmatprep.mubr.f32.mxu0 %v1324
        %v1326 = vand.u32 %v466, 4294901760
        %v1327 = vsub.f32 %v466, %v1326
        %1328 = vmatmul.mubr.f32.gmra.mrb[0].mxu0 %v1327
        %v1329 = vpop.f32.mrb[0].mxu0
        %v1330 = vadd.f32 %v1101, %v1329
        %v1331 = vpop.f32.mrb[0].mxu0
        %v1332 = vadd.f32 %v1103, %v1331
        %v1333 = vand.u32 %v521, 4294901760
        %v1334 = vsub.f32 %v521, %v1333
        %1335 = vmatprep.mubr.f32.mxu0 %v1334
        %v1336 = vand.u32 %v467, 4294901760
        %v1337 = vsub.f32 %v467, %v1336
        %1338 = vmatmul.mubr.f32.gmra.mrb[0].mxu0 %v1337
        %v1339 = vpop.f32.mrb[0].mxu0
        %v1340 = vadd.f32 %v1109, %v1339
        %v1341 = vpop.f32.mrb[0].mxu0
        %v1342 = vadd.f32 %v1111, %v1341
        %v1343 = vand.u32 %v524, 4294901760
        %v1344 = vsub.f32 %v524, %v1343
        %1345 = vmatprep.mubr.f32.mxu0 %v1344
        %v1346 = vand.u32 %v468, 4294901760
        %v1347 = vsub.f32 %v468, %v1346
        %1348 = vmatmul.mubr.f32.gmra.mrb[0].mxu0 %v1347
        %v1349 = vpop.f32.mrb[0].mxu0
        %v1350 = vadd.f32 %v1117, %v1349
        %v1351 = vpop.f32.mrb[0].mxu0
        %v1352 = vadd.f32 %v1119, %v1351
        %v1353 = vand.u32 %v527, 4294901760
        %v1354 = vsub.f32 %v527, %v1353
        %1355 = vmatprep.mubr.f32.mxu0 %v1354
        %v1356 = vand.u32 %v469, 4294901760
        %v1357 = vsub.f32 %v469, %v1356
        %1358 = vmatmul.mubr.f32.gmra.mrb[0].mxu0 %v1357
        %v1359 = vpop.f32.mrb[0].mxu0
        %v1360 = vadd.f32 %v1125, %v1359
        %v1361 = vpop.f32.mrb[0].mxu0
        %v1362 = vadd.f32 %v1127, %v1361
        %v1363 = vand.u32 %v530, 4294901760
        %v1364 = vsub.f32 %v530, %v1363
        %1365 = vmatprep.mubr.f32.mxu0 %v1364
        %v1366 = vand.u32 %v470, 4294901760
        %v1367 = vsub.f32 %v470, %v1366
        %1368 = vmatmul.mubr.f32.gmra.mrb[0].mxu0 %v1367
        %v1369 = vpop.f32.mrb[0].mxu0
        %v1370 = vadd.f32 %v1133, %v1369
        %v1371 = vpop.f32.mrb[0].mxu0
        %v1372 = vadd.f32 %v1135, %v1371
        %v1373 = vand.u32 %v533, 4294901760
        %v1374 = vsub.f32 %v533, %v1373
        %1375 = vmatprep.mubr.f32.mxu0 %v1374
        %v1376 = vand.u32 %v471, 4294901760
        %v1377 = vsub.f32 %v471, %v1376
        %1378 = vmatmul.mubr.f32.gmra.mrb[0].mxu0 %v1377
        %v1379 = vpop.f32.mrb[0].mxu0
        %v1380 = vadd.f32 %v1141, %v1379
        %v1381 = vpop.f32.mrb[0].mxu0
        %v1382 = vadd.f32 %v1143, %v1381
        %1383 = vdwg.mxu0
        %v1384 = vand.u32 %v320, 4294901760
        %1385 = vmatprep.subr.mxu0 %v1384
        %v1386 = vand.u32 %v319, 4294901760
        %1387 = vmatpush1.msra.mxu0 %v1386
        %v1388 = vand.u32 %v325, 4294901760
        %1389 = vmatprep.subr.mxu0 %v1388
        %v1390 = vand.u32 %v324, 4294901760
        %1391 = vmatpush1.msra.mxu0 %v1390
        %v1392 = vand.u32 %v330, 4294901760
        %1393 = vmatprep.subr.mxu0 %v1392
        %v1394 = vand.u32 %v329, 4294901760
        %1395 = vmatpush1.msra.mxu0 %v1394
        %v1396 = vand.u32 %v335, 4294901760
        %1397 = vmatprep.subr.mxu0 %v1396
        %v1398 = vand.u32 %v334, 4294901760
        %1399 = vmatpush1.msra.mxu0 %v1398
        %v1400 = vand.u32 %v340, 4294901760
        %1401 = vmatprep.subr.mxu0 %v1400
        %v1402 = vand.u32 %v339, 4294901760
        %1403 = vmatpush1.msra.mxu0 %v1402
        %v1404 = vand.u32 %v345, 4294901760
        %1405 = vmatprep.subr.mxu0 %v1404
        %v1406 = vand.u32 %v344, 4294901760
        %1407 = vmatpush1.msra.mxu0 %v1406
        %v1408 = vand.u32 %v350, 4294901760
        %1409 = vmatprep.subr.mxu0 %v1408
        %v1410 = vand.u32 %v349, 4294901760
        %1411 = vmatpush1.msra.mxu0 %v1410
        %v1412 = vand.u32 %v355, 4294901760
        %1413 = vmatprep.subr.mxu0 %v1412
        %v1414 = vand.u32 %v354, 4294901760
        %1415 = vmatpush1.msra.mxu0 %v1414
        %v1416 = vand.u32 %v360, 4294901760
        %1417 = vmatprep.subr.mxu0 %v1416
        %v1418 = vand.u32 %v359, 4294901760
        %1419 = vmatpush1.msra.mxu0 %v1418
        %v1420 = vand.u32 %v365, 4294901760
        %1421 = vmatprep.subr.mxu0 %v1420
        %v1422 = vand.u32 %v364, 4294901760
        %1423 = vmatpush1.msra.mxu0 %v1422
        %v1424 = vand.u32 %v370, 4294901760
        %1425 = vmatprep.subr.mxu0 %v1424
        %v1426 = vand.u32 %v369, 4294901760
        %1427 = vmatpush1.msra.mxu0 %v1426
        %v1428 = vand.u32 %v375, 4294901760
        %1429 = vmatprep.subr.mxu0 %v1428
        %v1430 = vand.u32 %v374, 4294901760
        %1431 = vmatpush1.msra.mxu0 %v1430
        %v1432 = vand.u32 %v380, 4294901760
        %1433 = vmatprep.subr.mxu0 %v1432
        %v1434 = vand.u32 %v379, 4294901760
        %1435 = vmatpush1.msra.mxu0 %v1434
        %v1436 = vand.u32 %v385, 4294901760
        %1437 = vmatprep.subr.mxu0 %v1436
        %v1438 = vand.u32 %v384, 4294901760
        %1439 = vmatpush1.msra.mxu0 %v1438
        %v1440 = vand.u32 %v390, 4294901760
        %1441 = vmatprep.subr.mxu0 %v1440
        %v1442 = vand.u32 %v389, 4294901760
        %1443 = vmatpush1.msra.mxu0 %v1442
        %v1444 = vand.u32 %v395, 4294901760
        %1445 = vmatprep.subr.mxu0 %v1444
        %v1446 = vand.u32 %v394, 4294901760
        %1447 = vmatpush1.msra.mxu0 %v1446
        %v1448 = vand.u32 %v400, 4294901760
        %1449 = vmatprep.subr.mxu0 %v1448
        %v1450 = vand.u32 %v399, 4294901760
        %1451 = vmatpush1.msra.mxu0 %v1450
        %v1452 = vand.u32 %v405, 4294901760
        %1453 = vmatprep.subr.mxu0 %v1452
        %v1454 = vand.u32 %v404, 4294901760
        %1455 = vmatpush1.msra.mxu0 %v1454
        %v1456 = vand.u32 %v410, 4294901760
        %1457 = vmatprep.subr.mxu0 %v1456
        %v1458 = vand.u32 %v409, 4294901760
        %1459 = vmatpush1.msra.mxu0 %v1458
        %v1460 = vand.u32 %v415, 4294901760
        %1461 = vmatprep.subr.mxu0 %v1460
        %v1462 = vand.u32 %v414, 4294901760
        %1463 = vmatpush1.msra.mxu0 %v1462
        %v1464 = vand.u32 %v420, 4294901760
        %1465 = vmatprep.subr.mxu0 %v1464
        %v1466 = vand.u32 %v419, 4294901760
        %1467 = vmatpush1.msra.mxu0 %v1466
        %v1468 = vand.u32 %v425, 4294901760
        %1469 = vmatprep.subr.mxu0 %v1468
        %v1470 = vand.u32 %v424, 4294901760
        %1471 = vmatpush1.msra.mxu0 %v1470
        %v1472 = vand.u32 %v430, 4294901760
        %1473 = vmatprep.subr.mxu0 %v1472
        %v1474 = vand.u32 %v429, 4294901760
        %1475 = vmatpush1.msra.mxu0 %v1474
        %v1476 = vand.u32 %v435, 4294901760
        %1477 = vmatprep.subr.mxu0 %v1476
        %v1478 = vand.u32 %v434, 4294901760
        %1479 = vmatpush1.msra.mxu0 %v1478
        %v1480 = vand.u32 %v440, 4294901760
        %1481 = vmatprep.subr.mxu0 %v1480
        %v1482 = vand.u32 %v439, 4294901760
        %1483 = vmatpush1.msra.mxu0 %v1482
        %v1484 = vand.u32 %v445, 4294901760
        %1485 = vmatprep.subr.mxu0 %v1484
        %v1486 = vand.u32 %v444, 4294901760
        %1487 = vmatpush1.msra.mxu0 %v1486
        %1488 = vmatprep.subr.mxu0 0.0
        %1489 = vmatpush1.msra.mxu0 0.0
        %1490 = vmatprep.subr.mxu0 0.0
        %1491 = vmatpush1.msra.mxu0 0.0
        %1492 = vmatprep.subr.mxu0 0.0
        %1493 = vmatpush1.msra.mxu0 0.0
        %1494 = vmatprep.subr.mxu0 0.0
        %1495 = vmatpush1.msra.mxu0 0.0
        %1496 = vmatprep.subr.mxu0 0.0
        %1497 = vmatpush1.msra.mxu0 0.0
        %1498 = vmatprep.subr.mxu0 0.0
        %1499 = vmatpush1.msra.mxu0 0.0
        %v1500 = vand.u32 %v515, 4294901760
        %v1501 = vsub.f32 %v515, %v1500
        %v1502 = vand.u32 %v1501, 4294901760
        %1503 = vmatprep.mubr.f32.mxu0 %v1502
        %v1504 = vand.u32 %v465, 4294901760
        %v1505 = vsub.f32 %v465, %v1504
        %v1506 = vand.u32 %v1505, 4294901760
        %1507 = vmatmul.mubr.f32.gmra.mrb[0].mxu0 %v1506
        %v1508 = vpop.f32.mrb[0].mxu0
        %v1509 = vadd.f32 %v1320, %v1508
        %v1510 = vpop.f32.mrb[0].mxu0
        %v1511 = vadd.f32 %v1322, %v1510
        %v1512 = vand.u32 %v518, 4294901760
        %v1513 = vsub.f32 %v518, %v1512
        %v1514 = vand.u32 %v1513, 4294901760
        %1515 = vmatprep.mubr.f32.mxu0 %v1514
        %v1516 = vand.u32 %v466, 4294901760
        %v1517 = vsub.f32 %v466, %v1516
        %v1518 = vand.u32 %v1517, 4294901760
        %1519 = vmatmul.mubr.f32.gmra.mrb[0].mxu0 %v1518
        %v1520 = vpop.f32.mrb[0].mxu0
        %v1521 = vadd.f32 %v1330, %v1520
        %v1522 = vpop.f32.mrb[0].mxu0
        %v1523 = vadd.f32 %v1332, %v1522
        %v1524 = vand.u32 %v521, 4294901760
        %v1525 = vsub.f32 %v521, %v1524
        %v1526 = vand.u32 %v1525, 4294901760
        %1527 = vmatprep.mubr.f32.mxu0 %v1526
        %v1528 = vand.u32 %v467, 4294901760
        %v1529 = vsub.f32 %v467, %v1528
        %v1530 = vand.u32 %v1529, 4294901760
        %1531 = vmatmul.mubr.f32.gmra.mrb[0].mxu0 %v1530
        %v1532 = vpop.f32.mrb[0].mxu0
        %v1533 = vadd.f32 %v1340, %v1532
        %v1534 = vpop.f32.mrb[0].mxu0
        %v1535 = vadd.f32 %v1342, %v1534
        %v1536 = vand.u32 %v524, 4294901760
        %v1537 = vsub.f32 %v524, %v1536
        %v1538 = vand.u32 %v1537, 4294901760
        %1539 = vmatprep.mubr.f32.mxu0 %v1538
        %v1540 = vand.u32 %v468, 4294901760
        %v1541 = vsub.f32 %v468, %v1540
        %v1542 = vand.u32 %v1541, 4294901760
        %1543 = vmatmul.mubr.f32.gmra.mrb[0].mxu0 %v1542
        %v1544 = vpop.f32.mrb[0].mxu0
        %v1545 = vadd.f32 %v1350, %v1544
        %v1546 = vpop.f32.mrb[0].mxu0
        %v1547 = vadd.f32 %v1352, %v1546
        %v1548 = vand.u32 %v527, 4294901760
        %v1549 = vsub.f32 %v527, %v1548
        %v1550 = vand.u32 %v1549, 4294901760
        %1551 = vmatprep.mubr.f32.mxu0 %v1550
        %v1552 = vand.u32 %v469, 4294901760
        %v1553 = vsub.f32 %v469, %v1552
        %v1554 = vand.u32 %v1553, 4294901760
        %1555 = vmatmul.mubr.f32.gmra.mrb[0].mxu0 %v1554
        %v1556 = vpop.f32.mrb[0].mxu0
        %v1557 = vadd.f32 %v1360, %v1556
        %v1558 = vpop.f32.mrb[0].mxu0
        %v1559 = vadd.f32 %v1362, %v1558
        %v1560 = vand.u32 %v530, 4294901760
        %v1561 = vsub.f32 %v530, %v1560
        %v1562 = vand.u32 %v1561, 4294901760
        %1563 = vmatprep.mubr.f32.mxu0 %v1562
        %v1564 = vand.u32 %v470, 4294901760
        %v1565 = vsub.f32 %v470, %v1564
        %v1566 = vand.u32 %v1565, 4294901760
        %1567 = vmatmul.mubr.f32.gmra.mrb[0].mxu0 %v1566
        %v1568 = vpop.f32.mrb[0].mxu0
        %v1569 = vadd.f32 %v1370, %v1568
        %v1570 = vpop.f32.mrb[0].mxu0
        %v1571 = vadd.f32 %v1372, %v1570
        %v1572 = vand.u32 %v533, 4294901760
        %v1573 = vsub.f32 %v533, %v1572
        %v1574 = vand.u32 %v1573, 4294901760
        %1575 = vmatprep.mubr.f32.mxu0 %v1574
        %v1576 = vand.u32 %v471, 4294901760
        %v1577 = vsub.f32 %v471, %v1576
        %v1578 = vand.u32 %v1577, 4294901760
        %1579 = vmatmul.mubr.f32.gmra.mrb[0].mxu0 %v1578
        %v1580 = vpop.f32.mrb[0].mxu0
        %v1581 = vadd.f32 %v1380, %v1580
        %v1582 = vpop.f32.mrb[0].mxu0
        %v1583 = vadd.f32 %v1382, %v1582
        %1584 = vdwg.mxu0
        %v1585 = vand.u32 %v320, 4294901760
        %v1586 = vsub.f32 %v320, %v1585
        %v1587 = vand.u32 %v1586, 4294901760
        %1588 = vmatprep.subr.mxu0 %v1587
        %v1589 = vand.u32 %v319, 4294901760
        %v1590 = vsub.f32 %v319, %v1589
        %v1591 = vand.u32 %v1590, 4294901760
        %1592 = vmatpush1.msra.mxu0 %v1591
        %v1593 = vand.u32 %v325, 4294901760
        %v1594 = vsub.f32 %v325, %v1593
        %v1595 = vand.u32 %v1594, 4294901760
        %1596 = vmatprep.subr.mxu0 %v1595
        %v1597 = vand.u32 %v324, 4294901760
        %v1598 = vsub.f32 %v324, %v1597
        %v1599 = vand.u32 %v1598, 4294901760
        %1600 = vmatpush1.msra.mxu0 %v1599
        %v1601 = vand.u32 %v330, 4294901760
        %v1602 = vsub.f32 %v330, %v1601
        %v1603 = vand.u32 %v1602, 4294901760
        %1604 = vmatprep.subr.mxu0 %v1603
        %v1605 = vand.u32 %v329, 4294901760
        %v1606 = vsub.f32 %v329, %v1605
        %v1607 = vand.u32 %v1606, 4294901760
        %1608 = vmatpush1.msra.mxu0 %v1607
        %v1609 = vand.u32 %v335, 4294901760
        %v1610 = vsub.f32 %v335, %v1609
        %v1611 = vand.u32 %v1610, 4294901760
        %1612 = vmatprep.subr.mxu0 %v1611
        %v1613 = vand.u32 %v334, 4294901760
        %v1614 = vsub.f32 %v334, %v1613
        %v1615 = vand.u32 %v1614, 4294901760
        %1616 = vmatpush1.msra.mxu0 %v1615
        %v1617 = vand.u32 %v340, 4294901760
        %v1618 = vsub.f32 %v340, %v1617
        %v1619 = vand.u32 %v1618, 4294901760
        %1620 = vmatprep.subr.mxu0 %v1619
        %v1621 = vand.u32 %v339, 4294901760
        %v1622 = vsub.f32 %v339, %v1621
        %v1623 = vand.u32 %v1622, 4294901760
        %1624 = vmatpush1.msra.mxu0 %v1623
        %v1625 = vand.u32 %v345, 4294901760
        %v1626 = vsub.f32 %v345, %v1625
        %v1627 = vand.u32 %v1626, 4294901760
        %1628 = vmatprep.subr.mxu0 %v1627
        %v1629 = vand.u32 %v344, 4294901760
        %v1630 = vsub.f32 %v344, %v1629
        %v1631 = vand.u32 %v1630, 4294901760
        %1632 = vmatpush1.msra.mxu0 %v1631
        %v1633 = vand.u32 %v350, 4294901760
        %v1634 = vsub.f32 %v350, %v1633
        %v1635 = vand.u32 %v1634, 4294901760
        %1636 = vmatprep.subr.mxu0 %v1635
        %v1637 = vand.u32 %v349, 4294901760
        %v1638 = vsub.f32 %v349, %v1637
        %v1639 = vand.u32 %v1638, 4294901760
        %1640 = vmatpush1.msra.mxu0 %v1639
        %v1641 = vand.u32 %v355, 4294901760
        %v1642 = vsub.f32 %v355, %v1641
        %v1643 = vand.u32 %v1642, 4294901760
        %1644 = vmatprep.subr.mxu0 %v1643
        %v1645 = vand.u32 %v354, 4294901760
        %v1646 = vsub.f32 %v354, %v1645
        %v1647 = vand.u32 %v1646, 4294901760
        %1648 = vmatpush1.msra.mxu0 %v1647
        %v1649 = vand.u32 %v360, 4294901760
        %v1650 = vsub.f32 %v360, %v1649
        %v1651 = vand.u32 %v1650, 4294901760
        %1652 = vmatprep.subr.mxu0 %v1651
        %v1653 = vand.u32 %v359, 4294901760
        %v1654 = vsub.f32 %v359, %v1653
        %v1655 = vand.u32 %v1654, 4294901760
        %1656 = vmatpush1.msra.mxu0 %v1655
        %v1657 = vand.u32 %v365, 4294901760
        %v1658 = vsub.f32 %v365, %v1657
        %v1659 = vand.u32 %v1658, 4294901760
        %1660 = vmatprep.subr.mxu0 %v1659
        %v1661 = vand.u32 %v364, 4294901760
        %v1662 = vsub.f32 %v364, %v1661
        %v1663 = vand.u32 %v1662, 4294901760
        %1664 = vmatpush1.msra.mxu0 %v1663
        %v1665 = vand.u32 %v370, 4294901760
        %v1666 = vsub.f32 %v370, %v1665
        %v1667 = vand.u32 %v1666, 4294901760
        %1668 = vmatprep.subr.mxu0 %v1667
        %v1669 = vand.u32 %v369, 4294901760
        %v1670 = vsub.f32 %v369, %v1669
        %v1671 = vand.u32 %v1670, 4294901760
        %1672 = vmatpush1.msra.mxu0 %v1671
        %v1673 = vand.u32 %v375, 4294901760
        %v1674 = vsub.f32 %v375, %v1673
        %v1675 = vand.u32 %v1674, 4294901760
        %1676 = vmatprep.subr.mxu0 %v1675
        %v1677 = vand.u32 %v374, 4294901760
        %v1678 = vsub.f32 %v374, %v1677
        %v1679 = vand.u32 %v1678, 4294901760
        %1680 = vmatpush1.msra.mxu0 %v1679
        %v1681 = vand.u32 %v380, 4294901760
        %v1682 = vsub.f32 %v380, %v1681
        %v1683 = vand.u32 %v1682, 4294901760
        %1684 = vmatprep.subr.mxu0 %v1683
        %v1685 = vand.u32 %v379, 4294901760
        %v1686 = vsub.f32 %v379, %v1685
        %v1687 = vand.u32 %v1686, 4294901760
        %1688 = vmatpush1.msra.mxu0 %v1687
        %v1689 = vand.u32 %v385, 4294901760
        %v1690 = vsub.f32 %v385, %v1689
        %v1691 = vand.u32 %v1690, 4294901760
        %1692 = vmatprep.subr.mxu0 %v1691
        %v1693 = vand.u32 %v384, 4294901760
        %v1694 = vsub.f32 %v384, %v1693
        %v1695 = vand.u32 %v1694, 4294901760
        %1696 = vmatpush1.msra.mxu0 %v1695
        %v1697 = vand.u32 %v390, 4294901760
        %v1698 = vsub.f32 %v390, %v1697
        %v1699 = vand.u32 %v1698, 4294901760
        %1700 = vmatprep.subr.mxu0 %v1699
        %v1701 = vand.u32 %v389, 4294901760
        %v1702 = vsub.f32 %v389, %v1701
        %v1703 = vand.u32 %v1702, 4294901760
        %1704 = vmatpush1.msra.mxu0 %v1703
        %v1705 = vand.u32 %v395, 4294901760
        %v1706 = vsub.f32 %v395, %v1705
        %v1707 = vand.u32 %v1706, 4294901760
        %1708 = vmatprep.subr.mxu0 %v1707
        %v1709 = vand.u32 %v394, 4294901760
        %v1710 = vsub.f32 %v394, %v1709
        %v1711 = vand.u32 %v1710, 4294901760
        %1712 = vmatpush1.msra.mxu0 %v1711
        %v1713 = vand.u32 %v400, 4294901760
        %v1714 = vsub.f32 %v400, %v1713
        %v1715 = vand.u32 %v1714, 4294901760
        %1716 = vmatprep.subr.mxu0 %v1715
        %v1717 = vand.u32 %v399, 4294901760
        %v1718 = vsub.f32 %v399, %v1717
        %v1719 = vand.u32 %v1718, 4294901760
        %1720 = vmatpush1.msra.mxu0 %v1719
        %v1721 = vand.u32 %v405, 4294901760
        %v1722 = vsub.f32 %v405, %v1721
        %v1723 = vand.u32 %v1722, 4294901760
        %1724 = vmatprep.subr.mxu0 %v1723
        %v1725 = vand.u32 %v404, 4294901760
        %v1726 = vsub.f32 %v404, %v1725
        %v1727 = vand.u32 %v1726, 4294901760
        %1728 = vmatpush1.msra.mxu0 %v1727
        %v1729 = vand.u32 %v410, 4294901760
        %v1730 = vsub.f32 %v410, %v1729
        %v1731 = vand.u32 %v1730, 4294901760
        %1732 = vmatprep.subr.mxu0 %v1731
        %v1733 = vand.u32 %v409, 4294901760
        %v1734 = vsub.f32 %v409, %v1733
        %v1735 = vand.u32 %v1734, 4294901760
        %1736 = vmatpush1.msra.mxu0 %v1735
        %v1737 = vand.u32 %v415, 4294901760
        %v1738 = vsub.f32 %v415, %v1737
        %v1739 = vand.u32 %v1738, 4294901760
        %1740 = vmatprep.subr.mxu0 %v1739
        %v1741 = vand.u32 %v414, 4294901760
        %v1742 = vsub.f32 %v414, %v1741
        %v1743 = vand.u32 %v1742, 4294901760
        %1744 = vmatpush1.msra.mxu0 %v1743
        %v1745 = vand.u32 %v420, 4294901760
        %v1746 = vsub.f32 %v420, %v1745
        %v1747 = vand.u32 %v1746, 4294901760
        %1748 = vmatprep.subr.mxu0 %v1747
        %v1749 = vand.u32 %v419, 4294901760
        %v1750 = vsub.f32 %v419, %v1749
        %v1751 = vand.u32 %v1750, 4294901760
        %1752 = vmatpush1.msra.mxu0 %v1751
        %v1753 = vand.u32 %v425, 4294901760
        %v1754 = vsub.f32 %v425, %v1753
        %v1755 = vand.u32 %v1754, 4294901760
        %1756 = vmatprep.subr.mxu0 %v1755
        %v1757 = vand.u32 %v424, 4294901760
        %v1758 = vsub.f32 %v424, %v1757
        %v1759 = vand.u32 %v1758, 4294901760
        %1760 = vmatpush1.msra.mxu0 %v1759
        %v1761 = vand.u32 %v430, 4294901760
        %v1762 = vsub.f32 %v430, %v1761
        %v1763 = vand.u32 %v1762, 4294901760
        %1764 = vmatprep.subr.mxu0 %v1763
        %v1765 = vand.u32 %v429, 4294901760
        %v1766 = vsub.f32 %v429, %v1765
        %v1767 = vand.u32 %v1766, 4294901760
        %1768 = vmatpush1.msra.mxu0 %v1767
        %v1769 = vand.u32 %v435, 4294901760
        %v1770 = vsub.f32 %v435, %v1769
        %v1771 = vand.u32 %v1770, 4294901760
        %1772 = vmatprep.subr.mxu0 %v1771
        %v1773 = vand.u32 %v434, 4294901760
        %v1774 = vsub.f32 %v434, %v1773
        %v1775 = vand.u32 %v1774, 4294901760
        %1776 = vmatpush1.msra.mxu0 %v1775
        %v1777 = vand.u32 %v440, 4294901760
        %v1778 = vsub.f32 %v440, %v1777
        %v1779 = vand.u32 %v1778, 4294901760
        %1780 = vmatprep.subr.mxu0 %v1779
        %v1781 = vand.u32 %v439, 4294901760
        %v1782 = vsub.f32 %v439, %v1781
        %v1783 = vand.u32 %v1782, 4294901760
        %1784 = vmatpush1.msra.mxu0 %v1783
        %v1785 = vand.u32 %v445, 4294901760
        %v1786 = vsub.f32 %v445, %v1785
        %v1787 = vand.u32 %v1786, 4294901760
        %1788 = vmatprep.subr.mxu0 %v1787
        %v1789 = vand.u32 %v444, 4294901760
        %v1790 = vsub.f32 %v444, %v1789
        %v1791 = vand.u32 %v1790, 4294901760
        %1792 = vmatpush1.msra.mxu0 %v1791
        %1793 = vmatprep.subr.mxu0 0.0
        %1794 = vmatpush1.msra.mxu0 0.0
        %1795 = vmatprep.subr.mxu0 0.0
        %1796 = vmatpush1.msra.mxu0 0.0
        %1797 = vmatprep.subr.mxu0 0.0
        %1798 = vmatpush1.msra.mxu0 0.0
        %1799 = vmatprep.subr.mxu0 0.0
        %1800 = vmatpush1.msra.mxu0 0.0
        %1801 = vmatprep.subr.mxu0 0.0
        %1802 = vmatpush1.msra.mxu0 0.0
        %1803 = vmatprep.subr.mxu0 0.0
        %1804 = vmatpush1.msra.mxu0 0.0
        %v1805 = vand.u32 %v515, 4294901760
        %1806 = vmatprep.mubr.f32.mxu0 %v1805
        %v1807 = vand.u32 %v465, 4294901760
        %1808 = vmatmul.mubr.f32.gmra.mrb[0].mxu0 %v1807
        %v1809 = vpop.f32.mrb[0].mxu0
        %v1810 = vadd.f32 %v1509, %v1809
        %v1811 = vpop.f32.mrb[0].mxu0
        %v1812 = vadd.f32 %v1511, %v1811
        %v1813 = vand.u32 %v518, 4294901760
        %1814 = vmatprep.mubr.f32.mxu0 %v1813
        %v1815 = vand.u32 %v466, 4294901760
        %1816 = vmatmul.mubr.f32.gmra.mrb[0].mxu0 %v1815
        %v1817 = vpop.f32.mrb[0].mxu0
        %v1818 = vadd.f32 %v1521, %v1817
        %v1819 = vpop.f32.mrb[0].mxu0
        %v1820 = vadd.f32 %v1523, %v1819
        %v1821 = vand.u32 %v521, 4294901760
        %1822 = vmatprep.mubr.f32.mxu0 %v1821
        %v1823 = vand.u32 %v467, 4294901760
        %1824 = vmatmul.mubr.f32.gmra.mrb[0].mxu0 %v1823
        %v1825 = vpop.f32.mrb[0].mxu0
        %v1826 = vadd.f32 %v1533, %v1825
        %v1827 = vpop.f32.mrb[0].mxu0
        %v1828 = vadd.f32 %v1535, %v1827
        %v1829 = vand.u32 %v524, 4294901760
        %1830 = vmatprep.mubr.f32.mxu0 %v1829
        %v1831 = vand.u32 %v468, 4294901760
        %1832 = vmatmul.mubr.f32.gmra.mrb[0].mxu0 %v1831
        %v1833 = vpop.f32.mrb[0].mxu0
        %v1834 = vadd.f32 %v1545, %v1833
        %v1835 = vpop.f32.mrb[0].mxu0
        %v1836 = vadd.f32 %v1547, %v1835
        %v1837 = vand.u32 %v527, 4294901760
        %1838 = vmatprep.mubr.f32.mxu0 %v1837
        %v1839 = vand.u32 %v469, 4294901760
        %1840 = vmatmul.mubr.f32.gmra.mrb[0].mxu0 %v1839
        %v1841 = vpop.f32.mrb[0].mxu0
        %v1842 = vadd.f32 %v1557, %v1841
        %v1843 = vpop.f32.mrb[0].mxu0
        %v1844 = vadd.f32 %v1559, %v1843
        %v1845 = vand.u32 %v530, 4294901760
        %1846 = vmatprep.mubr.f32.mxu0 %v1845
        %v1847 = vand.u32 %v470, 4294901760
        %1848 = vmatmul.mubr.f32.gmra.mrb[0].mxu0 %v1847
        %v1849 = vpop.f32.mrb[0].mxu0
        %v1850 = vadd.f32 %v1569, %v1849
        %v1851 = vpop.f32.mrb[0].mxu0
        %v1852 = vadd.f32 %v1571, %v1851
        %v1853 = vand.u32 %v533, 4294901760
        %1854 = vmatprep.mubr.f32.mxu0 %v1853
        %v1855 = vand.u32 %v471, 4294901760
        %1856 = vmatmul.mubr.f32.gmra.mrb[0].mxu0 %v1855
        %v1857 = vpop.f32.mrb[0].mxu0
        %v1858 = vadd.f32 %v1581, %v1857
        %v1859 = vpop.f32.mrb[0].mxu0
        %v1860 = vadd.f32 %v1583, %v1859
        %1861 = vdwg.mxu0
        %v1862 = vand.u32 %v320, 4294901760
        %1863 = vmatprep.subr.mxu0 %v1862
        %v1864 = vand.u32 %v319, 4294901760
        %1865 = vmatpush1.msra.mxu0 %v1864
        %v1866 = vand.u32 %v325, 4294901760
        %1867 = vmatprep.subr.mxu0 %v1866
        %v1868 = vand.u32 %v324, 4294901760
        %1869 = vmatpush1.msra.mxu0 %v1868
        %v1870 = vand.u32 %v330, 4294901760
        %1871 = vmatprep.subr.mxu0 %v1870
        %v1872 = vand.u32 %v329, 4294901760
        %1873 = vmatpush1.msra.mxu0 %v1872
        %v1874 = vand.u32 %v335, 4294901760
        %1875 = vmatprep.subr.mxu0 %v1874
        %v1876 = vand.u32 %v334, 4294901760
        %1877 = vmatpush1.msra.mxu0 %v1876
        %v1878 = vand.u32 %v340, 4294901760
        %1879 = vmatprep.subr.mxu0 %v1878
        %v1880 = vand.u32 %v339, 4294901760
        %1881 = vmatpush1.msra.mxu0 %v1880
        %v1882 = vand.u32 %v345, 4294901760
        %1883 = vmatprep.subr.mxu0 %v1882
        %v1884 = vand.u32 %v344, 4294901760
        %1885 = vmatpush1.msra.mxu0 %v1884
        %v1886 = vand.u32 %v350, 4294901760
        %1887 = vmatprep.subr.mxu0 %v1886
        %v1888 = vand.u32 %v349, 4294901760
        %1889 = vmatpush1.msra.mxu0 %v1888
        %v1890 = vand.u32 %v355, 4294901760
        %1891 = vmatprep.subr.mxu0 %v1890
        %v1892 = vand.u32 %v354, 4294901760
        %1893 = vmatpush1.msra.mxu0 %v1892
        %v1894 = vand.u32 %v360, 4294901760
        %1895 = vmatprep.subr.mxu0 %v1894
        %v1896 = vand.u32 %v359, 4294901760
        %1897 = vmatpush1.msra.mxu0 %v1896
        %v1898 = vand.u32 %v365, 4294901760
        %1899 = vmatprep.subr.mxu0 %v1898
        %v1900 = vand.u32 %v364, 4294901760
        %1901 = vmatpush1.msra.mxu0 %v1900
        %v1902 = vand.u32 %v370, 4294901760
        %1903 = vmatprep.subr.mxu0 %v1902
        %v1904 = vand.u32 %v369, 4294901760
        %1905 = vmatpush1.msra.mxu0 %v1904
        %v1906 = vand.u32 %v375, 4294901760
        %1907 = vmatprep.subr.mxu0 %v1906
        %v1908 = vand.u32 %v374, 4294901760
        %1909 = vmatpush1.msra.mxu0 %v1908
        %v1910 = vand.u32 %v380, 4294901760
        %1911 = vmatprep.subr.mxu0 %v1910
        %v1912 = vand.u32 %v379, 4294901760
        %1913 = vmatpush1.msra.mxu0 %v1912
        %v1914 = vand.u32 %v385, 4294901760
        %1915 = vmatprep.subr.mxu0 %v1914
        %v1916 = vand.u32 %v384, 4294901760
        %1917 = vmatpush1.msra.mxu0 %v1916
        %v1918 = vand.u32 %v390, 4294901760
        %1919 = vmatprep.subr.mxu0 %v1918
        %v1920 = vand.u32 %v389, 4294901760
        %1921 = vmatpush1.msra.mxu0 %v1920
        %v1922 = vand.u32 %v395, 4294901760
        %1923 = vmatprep.subr.mxu0 %v1922
        %v1924 = vand.u32 %v394, 4294901760
        %1925 = vmatpush1.msra.mxu0 %v1924
        %v1926 = vand.u32 %v400, 4294901760
        %1927 = vmatprep.subr.mxu0 %v1926
        %v1928 = vand.u32 %v399, 4294901760
        %1929 = vmatpush1.msra.mxu0 %v1928
        %v1930 = vand.u32 %v405, 4294901760
        %1931 = vmatprep.subr.mxu0 %v1930
        %v1932 = vand.u32 %v404, 4294901760
        %1933 = vmatpush1.msra.mxu0 %v1932
        %v1934 = vand.u32 %v410, 4294901760
        %1935 = vmatprep.subr.mxu0 %v1934
        %v1936 = vand.u32 %v409, 4294901760
        %1937 = vmatpush1.msra.mxu0 %v1936
        %v1938 = vand.u32 %v415, 4294901760
        %1939 = vmatprep.subr.mxu0 %v1938
        %v1940 = vand.u32 %v414, 4294901760
        %1941 = vmatpush1.msra.mxu0 %v1940
        %v1942 = vand.u32 %v420, 4294901760
        %1943 = vmatprep.subr.mxu0 %v1942
        %v1944 = vand.u32 %v419, 4294901760
        %1945 = vmatpush1.msra.mxu0 %v1944
        %v1946 = vand.u32 %v425, 4294901760
        %1947 = vmatprep.subr.mxu0 %v1946
        %v1948 = vand.u32 %v424, 4294901760
        %1949 = vmatpush1.msra.mxu0 %v1948
        %v1950 = vand.u32 %v430, 4294901760
        %1951 = vmatprep.subr.mxu0 %v1950
        %v1952 = vand.u32 %v429, 4294901760
        %1953 = vmatpush1.msra.mxu0 %v1952
        %v1954 = vand.u32 %v435, 4294901760
        %1955 = vmatprep.subr.mxu0 %v1954
        %v1956 = vand.u32 %v434, 4294901760
        %1957 = vmatpush1.msra.mxu0 %v1956
        %v1958 = vand.u32 %v440, 4294901760
        %1959 = vmatprep.subr.mxu0 %v1958
        %v1960 = vand.u32 %v439, 4294901760
        %1961 = vmatpush1.msra.mxu0 %v1960
        %v1962 = vand.u32 %v445, 4294901760
        %1963 = vmatprep.subr.mxu0 %v1962
        %v1964 = vand.u32 %v444, 4294901760
        %1965 = vmatpush1.msra.mxu0 %v1964
        %1966 = vmatprep.subr.mxu0 0.0
        %1967 = vmatpush1.msra.mxu0 0.0
        %1968 = vmatprep.subr.mxu0 0.0
        %1969 = vmatpush1.msra.mxu0 0.0
        %1970 = vmatprep.subr.mxu0 0.0
        %1971 = vmatpush1.msra.mxu0 0.0
        %1972 = vmatprep.subr.mxu0 0.0
        %1973 = vmatpush1.msra.mxu0 0.0
        %1974 = vmatprep.subr.mxu0 0.0
        %1975 = vmatpush1.msra.mxu0 0.0
        %1976 = vmatprep.subr.mxu0 0.0
        %1977 = vmatpush1.msra.mxu0 0.0
        %v1978 = vand.u32 %v515, 4294901760
        %1979 = vmatprep.mubr.f32.mxu0 %v1978
        %v1980 = vand.u32 %v465, 4294901760
        %1981 = vmatmul.mubr.f32.gmra.mrb[0].mxu0 %v1980
        %v1982 = vpop.f32.mrb[0].mxu0
        %v1983 = vadd.f32 %v1810, %v1982
        %v1984 = vpop.f32.mrb[0].mxu0
        %v1985 = vadd.f32 %v1812, %v1984
        %v1986 = vand.u32 %v518, 4294901760
        %1987 = vmatprep.mubr.f32.mxu0 %v1986
        %v1988 = vand.u32 %v466, 4294901760
        %1989 = vmatmul.mubr.f32.gmra.mrb[0].mxu0 %v1988
        %v1990 = vpop.f32.mrb[0].mxu0
        %v1991 = vadd.f32 %v1818, %v1990
        %v1992 = vpop.f32.mrb[0].mxu0
        %v1993 = vadd.f32 %v1820, %v1992
        %v1994 = vand.u32 %v521, 4294901760
        %1995 = vmatprep.mubr.f32.mxu0 %v1994
        %v1996 = vand.u32 %v467, 4294901760
        %1997 = vmatmul.mubr.f32.gmra.mrb[0].mxu0 %v1996
        %v1998 = vpop.f32.mrb[0].mxu0
        %v1999 = vadd.f32 %v1826, %v1998
        %v2000 = vpop.f32.mrb[0].mxu0
        %v2001 = vadd.f32 %v1828, %v2000
        %v2002 = vand.u32 %v524, 4294901760
        %2003 = vmatprep.mubr.f32.mxu0 %v2002
        %v2004 = vand.u32 %v468, 4294901760
        %2005 = vmatmul.mubr.f32.gmra.mrb[0].mxu0 %v2004
        %v2006 = vpop.f32.mrb[0].mxu0
        %v2007 = vadd.f32 %v1834, %v2006
        %v2008 = vpop.f32.mrb[0].mxu0
        %v2009 = vadd.f32 %v1836, %v2008
        %v2010 = vand.u32 %v527, 4294901760
        %2011 = vmatprep.mubr.f32.mxu0 %v2010
        %v2012 = vand.u32 %v469, 4294901760
        %2013 = vmatmul.mubr.f32.gmra.mrb[0].mxu0 %v2012
        %v2014 = vpop.f32.mrb[0].mxu0
        %v2015 = vadd.f32 %v1842, %v2014
        %v2016 = vpop.f32.mrb[0].mxu0
        %v2017 = vadd.f32 %v1844, %v2016
        %v2018 = vand.u32 %v530, 4294901760
        %2019 = vmatprep.mubr.f32.mxu0 %v2018
        %v2020 = vand.u32 %v470, 4294901760
        %2021 = vmatmul.mubr.f32.gmra.mrb[0].mxu0 %v2020
        %v2022 = vpop.f32.mrb[0].mxu0
        %v2023 = vadd.f32 %v1850, %v2022
        %v2024 = vpop.f32.mrb[0].mxu0
        %v2025 = vadd.f32 %v1852, %v2024
        %v2026 = vand.u32 %v533, 4294901760
        %2027 = vmatprep.mubr.f32.mxu0 %v2026
        %v2028 = vand.u32 %v471, 4294901760
        %2029 = vmatmul.mubr.f32.gmra.mrb[0].mxu0 %v2028
        %v2030 = vpop.f32.mrb[0].mxu0
        %v2031 = vadd.f32 %v1858, %v2030
        %v2032 = vpop.f32.mrb[0].mxu0
        %v2033 = vadd.f32 %v1860, %v2032
        %2034 = vdwg.mxu0
        %v2035 = vand.u32 %v322, 4294901760
        %2036 = vmatprep.subr.mxu0 %v2035
        %v2037 = vand.u32 %v321, 4294901760
        %2038 = vmatpush1.msra.mxu0 %v2037
        %v2039 = vand.u32 %v327, 4294901760
        %2040 = vmatprep.subr.mxu0 %v2039
        %v2041 = vand.u32 %v326, 4294901760
        %2042 = vmatpush1.msra.mxu0 %v2041
        %v2043 = vand.u32 %v332, 4294901760
        %2044 = vmatprep.subr.mxu0 %v2043
        %v2045 = vand.u32 %v331, 4294901760
        %2046 = vmatpush1.msra.mxu0 %v2045
        %v2047 = vand.u32 %v337, 4294901760
        %2048 = vmatprep.subr.mxu0 %v2047
        %v2049 = vand.u32 %v336, 4294901760
        %2050 = vmatpush1.msra.mxu0 %v2049
        %v2051 = vand.u32 %v342, 4294901760
        %2052 = vmatprep.subr.mxu0 %v2051
        %v2053 = vand.u32 %v341, 4294901760
        %2054 = vmatpush1.msra.mxu0 %v2053
        %v2055 = vand.u32 %v347, 4294901760
        %2056 = vmatprep.subr.mxu0 %v2055
        %v2057 = vand.u32 %v346, 4294901760
        %2058 = vmatpush1.msra.mxu0 %v2057
        %v2059 = vand.u32 %v352, 4294901760
        %2060 = vmatprep.subr.mxu0 %v2059
        %v2061 = vand.u32 %v351, 4294901760
        %2062 = vmatpush1.msra.mxu0 %v2061
        %v2063 = vand.u32 %v357, 4294901760
        %2064 = vmatprep.subr.mxu0 %v2063
        %v2065 = vand.u32 %v356, 4294901760
        %2066 = vmatpush1.msra.mxu0 %v2065
        %v2067 = vand.u32 %v362, 4294901760
        %2068 = vmatprep.subr.mxu0 %v2067
        %v2069 = vand.u32 %v361, 4294901760
        %2070 = vmatpush1.msra.mxu0 %v2069
        %v2071 = vand.u32 %v367, 4294901760
        %2072 = vmatprep.subr.mxu0 %v2071
        %v2073 = vand.u32 %v366, 4294901760
        %2074 = vmatpush1.msra.mxu0 %v2073
        %v2075 = vand.u32 %v372, 4294901760
        %2076 = vmatprep.subr.mxu0 %v2075
        %v2077 = vand.u32 %v371, 4294901760
        %2078 = vmatpush1.msra.mxu0 %v2077
        %v2079 = vand.u32 %v377, 4294901760
        %2080 = vmatprep.subr.mxu0 %v2079
        %v2081 = vand.u32 %v376, 4294901760
        %2082 = vmatpush1.msra.mxu0 %v2081
        %v2083 = vand.u32 %v382, 4294901760
        %2084 = vmatprep.subr.mxu0 %v2083
        %v2085 = vand.u32 %v381, 4294901760
        %2086 = vmatpush1.msra.mxu0 %v2085
        %v2087 = vand.u32 %v387, 4294901760
        %2088 = vmatprep.subr.mxu0 %v2087
        %v2089 = vand.u32 %v386, 4294901760
        %2090 = vmatpush1.msra.mxu0 %v2089
        %v2091 = vand.u32 %v392, 4294901760
        %2092 = vmatprep.subr.mxu0 %v2091
        %v2093 = vand.u32 %v391, 4294901760
        %2094 = vmatpush1.msra.mxu0 %v2093
        %v2095 = vand.u32 %v397, 4294901760
        %2096 = vmatprep.subr.mxu0 %v2095
        %v2097 = vand.u32 %v396, 4294901760
        %2098 = vmatpush1.msra.mxu0 %v2097
        %v2099 = vand.u32 %v402, 4294901760
        %2100 = vmatprep.subr.mxu0 %v2099
        %v2101 = vand.u32 %v401, 4294901760
        %2102 = vmatpush1.msra.mxu0 %v2101
        %v2103 = vand.u32 %v407, 4294901760
        %2104 = vmatprep.subr.mxu0 %v2103
        %v2105 = vand.u32 %v406, 4294901760
        %2106 = vmatpush1.msra.mxu0 %v2105
        %v2107 = vand.u32 %v412, 4294901760
        %2108 = vmatprep.subr.mxu0 %v2107
        %v2109 = vand.u32 %v411, 4294901760
        %2110 = vmatpush1.msra.mxu0 %v2109
        %v2111 = vand.u32 %v417, 4294901760
        %2112 = vmatprep.subr.mxu0 %v2111
        %v2113 = vand.u32 %v416, 4294901760
        %2114 = vmatpush1.msra.mxu0 %v2113
        %v2115 = vand.u32 %v422, 4294901760
        %2116 = vmatprep.subr.mxu0 %v2115
        %v2117 = vand.u32 %v421, 4294901760
        %2118 = vmatpush1.msra.mxu0 %v2117
        %v2119 = vand.u32 %v427, 4294901760
        %2120 = vmatprep.subr.mxu0 %v2119
        %v2121 = vand.u32 %v426, 4294901760
        %2122 = vmatpush1.msra.mxu0 %v2121
        %v2123 = vand.u32 %v432, 4294901760
        %2124 = vmatprep.subr.mxu0 %v2123
        %v2125 = vand.u32 %v431, 4294901760
        %2126 = vmatpush1.msra.mxu0 %v2125
        %v2127 = vand.u32 %v437, 4294901760
        %2128 = vmatprep.subr.mxu0 %v2127
        %v2129 = vand.u32 %v436, 4294901760
        %2130 = vmatpush1.msra.mxu0 %v2129
        %v2131 = vand.u32 %v442, 4294901760
        %2132 = vmatprep.subr.mxu0 %v2131
        %v2133 = vand.u32 %v441, 4294901760
        %2134 = vmatpush1.msra.mxu0 %v2133
        %v2135 = vand.u32 %v447, 4294901760
        %2136 = vmatprep.subr.mxu0 %v2135
        %v2137 = vand.u32 %v446, 4294901760
        %2138 = vmatpush1.msra.mxu0 %v2137
        %2139 = vmatprep.subr.mxu0 0.0
        %2140 = vmatpush1.msra.mxu0 0.0
        %2141 = vmatprep.subr.mxu0 0.0
        %2142 = vmatpush1.msra.mxu0 0.0
        %2143 = vmatprep.subr.mxu0 0.0
        %2144 = vmatpush1.msra.mxu0 0.0
        %2145 = vmatprep.subr.mxu0 0.0
        %2146 = vmatpush1.msra.mxu0 0.0
        %2147 = vmatprep.subr.mxu0 0.0
        %2148 = vmatpush1.msra.mxu0 0.0
        %2149 = vmatprep.subr.mxu0 0.0
        %2150 = vmatpush1.msra.mxu0 0.0
        %v2151 = vand.u32 %v515, 4294901760
        %v2152 = vsub.f32 %v515, %v2151
        %v2153 = vand.u32 %v2152, 4294901760
        %v2154 = vsub.f32 %v2152, %v2153
        %v2155 = vand.u32 %v2154, 4294901760
        %2156 = vmatprep.mubr.f32.mxu0 %v2155
        %v2157 = vand.u32 %v465, 4294901760
        %v2158 = vsub.f32 %v465, %v2157
        %v2159 = vand.u32 %v2158, 4294901760
        %v2160 = vsub.f32 %v2158, %v2159
        %v2161 = vand.u32 %v2160, 4294901760
        %2162 = vmatmul.mubr.f32.gmra.mrb[0].mxu0 %v2161
        %v2163 = vpop.f32.mrb[0].mxu0
        %v2164 = vadd.f32 0.0, %v2163
        %v2165 = vpop.f32.mrb[0].mxu0
        %v2166 = vadd.f32 0.0, %v2165
        %v2167 = vand.u32 %v518, 4294901760
        %v2168 = vsub.f32 %v518, %v2167
        %v2169 = vand.u32 %v2168, 4294901760
        %v2170 = vsub.f32 %v2168, %v2169
        %v2171 = vand.u32 %v2170, 4294901760
        %2172 = vmatprep.mubr.f32.mxu0 %v2171
        %v2173 = vand.u32 %v466, 4294901760
        %v2174 = vsub.f32 %v466, %v2173
        %v2175 = vand.u32 %v2174, 4294901760
        %v2176 = vsub.f32 %v2174, %v2175
        %v2177 = vand.u32 %v2176, 4294901760
        %2178 = vmatmul.mubr.f32.gmra.mrb[0].mxu0 %v2177
        %v2179 = vpop.f32.mrb[0].mxu0
        %v2180 = vadd.f32 0.0, %v2179
        %v2181 = vpop.f32.mrb[0].mxu0
        %v2182 = vadd.f32 0.0, %v2181
        %v2183 = vand.u32 %v521, 4294901760
        %v2184 = vsub.f32 %v521, %v2183
        %v2185 = vand.u32 %v2184, 4294901760
        %v2186 = vsub.f32 %v2184, %v2185
        %v2187 = vand.u32 %v2186, 4294901760
        %2188 = vmatprep.mubr.f32.mxu0 %v2187
        %v2189 = vand.u32 %v467, 4294901760
        %v2190 = vsub.f32 %v467, %v2189
        %v2191 = vand.u32 %v2190, 4294901760
        %v2192 = vsub.f32 %v2190, %v2191
        %v2193 = vand.u32 %v2192, 4294901760
        %2194 = vmatmul.mubr.f32.gmra.mrb[0].mxu0 %v2193
        %v2195 = vpop.f32.mrb[0].mxu0
        %v2196 = vadd.f32 0.0, %v2195
        %v2197 = vpop.f32.mrb[0].mxu0
        %v2198 = vadd.f32 0.0, %v2197
        %v2199 = vand.u32 %v524, 4294901760
        %v2200 = vsub.f32 %v524, %v2199
        %v2201 = vand.u32 %v2200, 4294901760
        %v2202 = vsub.f32 %v2200, %v2201
        %v2203 = vand.u32 %v2202, 4294901760
        %2204 = vmatprep.mubr.f32.mxu0 %v2203
        %v2205 = vand.u32 %v468, 4294901760
        %v2206 = vsub.f32 %v468, %v2205
        %v2207 = vand.u32 %v2206, 4294901760
        %v2208 = vsub.f32 %v2206, %v2207
        %v2209 = vand.u32 %v2208, 4294901760
        %2210 = vmatmul.mubr.f32.gmra.mrb[0].mxu0 %v2209
        %v2211 = vpop.f32.mrb[0].mxu0
        %v2212 = vadd.f32 0.0, %v2211
        %v2213 = vpop.f32.mrb[0].mxu0
        %v2214 = vadd.f32 0.0, %v2213
        %v2215 = vand.u32 %v527, 4294901760
        %v2216 = vsub.f32 %v527, %v2215
        %v2217 = vand.u32 %v2216, 4294901760
        %v2218 = vsub.f32 %v2216, %v2217
        %v2219 = vand.u32 %v2218, 4294901760
        %2220 = vmatprep.mubr.f32.mxu0 %v2219
        %v2221 = vand.u32 %v469, 4294901760
        %v2222 = vsub.f32 %v469, %v2221
        %v2223 = vand.u32 %v2222, 4294901760
        %v2224 = vsub.f32 %v2222, %v2223
        %v2225 = vand.u32 %v2224, 4294901760
        %2226 = vmatmul.mubr.f32.gmra.mrb[0].mxu0 %v2225
        %v2227 = vpop.f32.mrb[0].mxu0
        %v2228 = vadd.f32 0.0, %v2227
        %v2229 = vpop.f32.mrb[0].mxu0
        %v2230 = vadd.f32 0.0, %v2229
        %v2231 = vand.u32 %v530, 4294901760
        %v2232 = vsub.f32 %v530, %v2231
        %v2233 = vand.u32 %v2232, 4294901760
        %v2234 = vsub.f32 %v2232, %v2233
        %v2235 = vand.u32 %v2234, 4294901760
        %2236 = vmatprep.mubr.f32.mxu0 %v2235
        %v2237 = vand.u32 %v470, 4294901760
        %v2238 = vsub.f32 %v470, %v2237
        %v2239 = vand.u32 %v2238, 4294901760
        %v2240 = vsub.f32 %v2238, %v2239
        %v2241 = vand.u32 %v2240, 4294901760
        %2242 = vmatmul.mubr.f32.gmra.mrb[0].mxu0 %v2241
        %v2243 = vpop.f32.mrb[0].mxu0
        %v2244 = vadd.f32 0.0, %v2243
        %v2245 = vpop.f32.mrb[0].mxu0
        %v2246 = vadd.f32 0.0, %v2245
        %v2247 = vand.u32 %v533, 4294901760
        %v2248 = vsub.f32 %v533, %v2247
        %v2249 = vand.u32 %v2248, 4294901760
        %v2250 = vsub.f32 %v2248, %v2249
        %v2251 = vand.u32 %v2250, 4294901760
        %2252 = vmatprep.mubr.f32.mxu0 %v2251
        %v2253 = vand.u32 %v471, 4294901760
        %v2254 = vsub.f32 %v471, %v2253
        %v2255 = vand.u32 %v2254, 4294901760
        %v2256 = vsub.f32 %v2254, %v2255
        %v2257 = vand.u32 %v2256, 4294901760
        %2258 = vmatmul.mubr.f32.gmra.mrb[0].mxu0 %v2257
        %v2259 = vpop.f32.mrb[0].mxu0
        %v2260 = vadd.f32 0.0, %v2259
        %v2261 = vpop.f32.mrb[0].mxu0
        %v2262 = vadd.f32 0.0, %v2261
        %2263 = vdwg.mxu0
        %v2264 = vand.u32 %v322, 4294901760
        %v2265 = vsub.f32 %v322, %v2264
        %v2266 = vand.u32 %v2265, 4294901760
        %v2267 = vsub.f32 %v2265, %v2266
        %v2268 = vand.u32 %v2267, 4294901760
        %2269 = vmatprep.subr.mxu0 %v2268
        %v2270 = vand.u32 %v321, 4294901760
        %v2271 = vsub.f32 %v321, %v2270
        %v2272 = vand.u32 %v2271, 4294901760
        %v2273 = vsub.f32 %v2271, %v2272
        %v2274 = vand.u32 %v2273, 4294901760
        %2275 = vmatpush1.msra.mxu0 %v2274
        %v2276 = vand.u32 %v327, 4294901760
        %v2277 = vsub.f32 %v327, %v2276
        %v2278 = vand.u32 %v2277, 4294901760
        %v2279 = vsub.f32 %v2277, %v2278
        %v2280 = vand.u32 %v2279, 4294901760
        %2281 = vmatprep.subr.mxu0 %v2280
        %v2282 = vand.u32 %v326, 4294901760
        %v2283 = vsub.f32 %v326, %v2282
        %v2284 = vand.u32 %v2283, 4294901760
        %v2285 = vsub.f32 %v2283, %v2284
        %v2286 = vand.u32 %v2285, 4294901760
        %2287 = vmatpush1.msra.mxu0 %v2286
        %v2288 = vand.u32 %v332, 4294901760
        %v2289 = vsub.f32 %v332, %v2288
        %v2290 = vand.u32 %v2289, 4294901760
        %v2291 = vsub.f32 %v2289, %v2290
        %v2292 = vand.u32 %v2291, 4294901760
        %2293 = vmatprep.subr.mxu0 %v2292
        %v2294 = vand.u32 %v331, 4294901760
        %v2295 = vsub.f32 %v331, %v2294
        %v2296 = vand.u32 %v2295, 4294901760
        %v2297 = vsub.f32 %v2295, %v2296
        %v2298 = vand.u32 %v2297, 4294901760
        %2299 = vmatpush1.msra.mxu0 %v2298
        %v2300 = vand.u32 %v337, 4294901760
        %v2301 = vsub.f32 %v337, %v2300
        %v2302 = vand.u32 %v2301, 4294901760
        %v2303 = vsub.f32 %v2301, %v2302
        %v2304 = vand.u32 %v2303, 4294901760
        %2305 = vmatprep.subr.mxu0 %v2304
        %v2306 = vand.u32 %v336, 4294901760
        %v2307 = vsub.f32 %v336, %v2306
        %v2308 = vand.u32 %v2307, 4294901760
        %v2309 = vsub.f32 %v2307, %v2308
        %v2310 = vand.u32 %v2309, 4294901760
        %2311 = vmatpush1.msra.mxu0 %v2310
        %v2312 = vand.u32 %v342, 4294901760
        %v2313 = vsub.f32 %v342, %v2312
        %v2314 = vand.u32 %v2313, 4294901760
        %v2315 = vsub.f32 %v2313, %v2314
        %v2316 = vand.u32 %v2315, 4294901760
        %2317 = vmatprep.subr.mxu0 %v2316
        %v2318 = vand.u32 %v341, 4294901760
        %v2319 = vsub.f32 %v341, %v2318
        %v2320 = vand.u32 %v2319, 4294901760
        %v2321 = vsub.f32 %v2319, %v2320
        %v2322 = vand.u32 %v2321, 4294901760
        %2323 = vmatpush1.msra.mxu0 %v2322
        %v2324 = vand.u32 %v347, 4294901760
        %v2325 = vsub.f32 %v347, %v2324
        %v2326 = vand.u32 %v2325, 4294901760
        %v2327 = vsub.f32 %v2325, %v2326
        %v2328 = vand.u32 %v2327, 4294901760
        %2329 = vmatprep.subr.mxu0 %v2328
        %v2330 = vand.u32 %v346, 4294901760
        %v2331 = vsub.f32 %v346, %v2330
        %v2332 = vand.u32 %v2331, 4294901760
        %v2333 = vsub.f32 %v2331, %v2332
        %v2334 = vand.u32 %v2333, 4294901760
        %2335 = vmatpush1.msra.mxu0 %v2334
        %v2336 = vand.u32 %v352, 4294901760
        %v2337 = vsub.f32 %v352, %v2336
        %v2338 = vand.u32 %v2337, 4294901760
        %v2339 = vsub.f32 %v2337, %v2338
        %v2340 = vand.u32 %v2339, 4294901760
        %2341 = vmatprep.subr.mxu0 %v2340
        %v2342 = vand.u32 %v351, 4294901760
        %v2343 = vsub.f32 %v351, %v2342
        %v2344 = vand.u32 %v2343, 4294901760
        %v2345 = vsub.f32 %v2343, %v2344
        %v2346 = vand.u32 %v2345, 4294901760
        %2347 = vmatpush1.msra.mxu0 %v2346
        %v2348 = vand.u32 %v357, 4294901760
        %v2349 = vsub.f32 %v357, %v2348
        %v2350 = vand.u32 %v2349, 4294901760
        %v2351 = vsub.f32 %v2349, %v2350
        %v2352 = vand.u32 %v2351, 4294901760
        %2353 = vmatprep.subr.mxu0 %v2352
        %v2354 = vand.u32 %v356, 4294901760
        %v2355 = vsub.f32 %v356, %v2354
        %v2356 = vand.u32 %v2355, 4294901760
        %v2357 = vsub.f32 %v2355, %v2356
        %v2358 = vand.u32 %v2357, 4294901760
        %2359 = vmatpush1.msra.mxu0 %v2358
        %v2360 = vand.u32 %v362, 4294901760
        %v2361 = vsub.f32 %v362, %v2360
        %v2362 = vand.u32 %v2361, 4294901760
        %v2363 = vsub.f32 %v2361, %v2362
        %v2364 = vand.u32 %v2363, 4294901760
        %2365 = vmatprep.subr.mxu0 %v2364
        %v2366 = vand.u32 %v361, 4294901760
        %v2367 = vsub.f32 %v361, %v2366
        %v2368 = vand.u32 %v2367, 4294901760
        %v2369 = vsub.f32 %v2367, %v2368
        %v2370 = vand.u32 %v2369, 4294901760
        %2371 = vmatpush1.msra.mxu0 %v2370
        %v2372 = vand.u32 %v367, 4294901760
        %v2373 = vsub.f32 %v367, %v2372
        %v2374 = vand.u32 %v2373, 4294901760
        %v2375 = vsub.f32 %v2373, %v2374
        %v2376 = vand.u32 %v2375, 4294901760
        %2377 = vmatprep.subr.mxu0 %v2376
        %v2378 = vand.u32 %v366, 4294901760
        %v2379 = vsub.f32 %v366, %v2378
        %v2380 = vand.u32 %v2379, 4294901760
        %v2381 = vsub.f32 %v2379, %v2380
        %v2382 = vand.u32 %v2381, 4294901760
        %2383 = vmatpush1.msra.mxu0 %v2382
        %v2384 = vand.u32 %v372, 4294901760
        %v2385 = vsub.f32 %v372, %v2384
        %v2386 = vand.u32 %v2385, 4294901760
        %v2387 = vsub.f32 %v2385, %v2386
        %v2388 = vand.u32 %v2387, 4294901760
        %2389 = vmatprep.subr.mxu0 %v2388
        %v2390 = vand.u32 %v371, 4294901760
        %v2391 = vsub.f32 %v371, %v2390
        %v2392 = vand.u32 %v2391, 4294901760
        %v2393 = vsub.f32 %v2391, %v2392
        %v2394 = vand.u32 %v2393, 4294901760
        %2395 = vmatpush1.msra.mxu0 %v2394
        %v2396 = vand.u32 %v377, 4294901760
        %v2397 = vsub.f32 %v377, %v2396
        %v2398 = vand.u32 %v2397, 4294901760
        %v2399 = vsub.f32 %v2397, %v2398
        %v2400 = vand.u32 %v2399, 4294901760
        %2401 = vmatprep.subr.mxu0 %v2400
        %v2402 = vand.u32 %v376, 4294901760
        %v2403 = vsub.f32 %v376, %v2402
        %v2404 = vand.u32 %v2403, 4294901760
        %v2405 = vsub.f32 %v2403, %v2404
        %v2406 = vand.u32 %v2405, 4294901760
        %2407 = vmatpush1.msra.mxu0 %v2406
        %v2408 = vand.u32 %v382, 4294901760
        %v2409 = vsub.f32 %v382, %v2408
        %v2410 = vand.u32 %v2409, 4294901760
        %v2411 = vsub.f32 %v2409, %v2410
        %v2412 = vand.u32 %v2411, 4294901760
        %2413 = vmatprep.subr.mxu0 %v2412
        %v2414 = vand.u32 %v381, 4294901760
        %v2415 = vsub.f32 %v381, %v2414
        %v2416 = vand.u32 %v2415, 4294901760
        %v2417 = vsub.f32 %v2415, %v2416
        %v2418 = vand.u32 %v2417, 4294901760
        %2419 = vmatpush1.msra.mxu0 %v2418
        %v2420 = vand.u32 %v387, 4294901760
        %v2421 = vsub.f32 %v387, %v2420
        %v2422 = vand.u32 %v2421, 4294901760
        %v2423 = vsub.f32 %v2421, %v2422
        %v2424 = vand.u32 %v2423, 4294901760
        %2425 = vmatprep.subr.mxu0 %v2424
        %v2426 = vand.u32 %v386, 4294901760
        %v2427 = vsub.f32 %v386, %v2426
        %v2428 = vand.u32 %v2427, 4294901760
        %v2429 = vsub.f32 %v2427, %v2428
        %v2430 = vand.u32 %v2429, 4294901760
        %2431 = vmatpush1.msra.mxu0 %v2430
        %v2432 = vand.u32 %v392, 4294901760
        %v2433 = vsub.f32 %v392, %v2432
        %v2434 = vand.u32 %v2433, 4294901760
        %v2435 = vsub.f32 %v2433, %v2434
        %v2436 = vand.u32 %v2435, 4294901760
        %2437 = vmatprep.subr.mxu0 %v2436
        %v2438 = vand.u32 %v391, 4294901760
        %v2439 = vsub.f32 %v391, %v2438
        %v2440 = vand.u32 %v2439, 4294901760
        %v2441 = vsub.f32 %v2439, %v2440
        %v2442 = vand.u32 %v2441, 4294901760
        %2443 = vmatpush1.msra.mxu0 %v2442
        %v2444 = vand.u32 %v397, 4294901760
        %v2445 = vsub.f32 %v397, %v2444
        %v2446 = vand.u32 %v2445, 4294901760
        %v2447 = vsub.f32 %v2445, %v2446
        %v2448 = vand.u32 %v2447, 4294901760
        %2449 = vmatprep.subr.mxu0 %v2448
        %v2450 = vand.u32 %v396, 4294901760
        %v2451 = vsub.f32 %v396, %v2450
        %v2452 = vand.u32 %v2451, 4294901760
        %v2453 = vsub.f32 %v2451, %v2452
        %v2454 = vand.u32 %v2453, 4294901760
        %2455 = vmatpush1.msra.mxu0 %v2454
        %v2456 = vand.u32 %v402, 4294901760
        %v2457 = vsub.f32 %v402, %v2456
        %v2458 = vand.u32 %v2457, 4294901760
        %v2459 = vsub.f32 %v2457, %v2458
        %v2460 = vand.u32 %v2459, 4294901760
        %2461 = vmatprep.subr.mxu0 %v2460
        %v2462 = vand.u32 %v401, 4294901760
        %v2463 = vsub.f32 %v401, %v2462
        %v2464 = vand.u32 %v2463, 4294901760
        %v2465 = vsub.f32 %v2463, %v2464
        %v2466 = vand.u32 %v2465, 4294901760
        %2467 = vmatpush1.msra.mxu0 %v2466
        %v2468 = vand.u32 %v407, 4294901760
        %v2469 = vsub.f32 %v407, %v2468
        %v2470 = vand.u32 %v2469, 4294901760
        %v2471 = vsub.f32 %v2469, %v2470
        %v2472 = vand.u32 %v2471, 4294901760
        %2473 = vmatprep.subr.mxu0 %v2472
        %v2474 = vand.u32 %v406, 4294901760
        %v2475 = vsub.f32 %v406, %v2474
        %v2476 = vand.u32 %v2475, 4294901760
        %v2477 = vsub.f32 %v2475, %v2476
        %v2478 = vand.u32 %v2477, 4294901760
        %2479 = vmatpush1.msra.mxu0 %v2478
        %v2480 = vand.u32 %v412, 4294901760
        %v2481 = vsub.f32 %v412, %v2480
        %v2482 = vand.u32 %v2481, 4294901760
        %v2483 = vsub.f32 %v2481, %v2482
        %v2484 = vand.u32 %v2483, 4294901760
        %2485 = vmatprep.subr.mxu0 %v2484
        %v2486 = vand.u32 %v411, 4294901760
        %v2487 = vsub.f32 %v411, %v2486
        %v2488 = vand.u32 %v2487, 4294901760
        %v2489 = vsub.f32 %v2487, %v2488
        %v2490 = vand.u32 %v2489, 4294901760
        %2491 = vmatpush1.msra.mxu0 %v2490
        %v2492 = vand.u32 %v417, 4294901760
        %v2493 = vsub.f32 %v417, %v2492
        %v2494 = vand.u32 %v2493, 4294901760
        %v2495 = vsub.f32 %v2493, %v2494
        %v2496 = vand.u32 %v2495, 4294901760
        %2497 = vmatprep.subr.mxu0 %v2496
        %v2498 = vand.u32 %v416, 4294901760
        %v2499 = vsub.f32 %v416, %v2498
        %v2500 = vand.u32 %v2499, 4294901760
        %v2501 = vsub.f32 %v2499, %v2500
        %v2502 = vand.u32 %v2501, 4294901760
        %2503 = vmatpush1.msra.mxu0 %v2502
        %v2504 = vand.u32 %v422, 4294901760
        %v2505 = vsub.f32 %v422, %v2504
        %v2506 = vand.u32 %v2505, 4294901760
        %v2507 = vsub.f32 %v2505, %v2506
        %v2508 = vand.u32 %v2507, 4294901760
        %2509 = vmatprep.subr.mxu0 %v2508
        %v2510 = vand.u32 %v421, 4294901760
        %v2511 = vsub.f32 %v421, %v2510
        %v2512 = vand.u32 %v2511, 4294901760
        %v2513 = vsub.f32 %v2511, %v2512
        %v2514 = vand.u32 %v2513, 4294901760
        %2515 = vmatpush1.msra.mxu0 %v2514
        %v2516 = vand.u32 %v427, 4294901760
        %v2517 = vsub.f32 %v427, %v2516
        %v2518 = vand.u32 %v2517, 4294901760
        %v2519 = vsub.f32 %v2517, %v2518
        %v2520 = vand.u32 %v2519, 4294901760
        %2521 = vmatprep.subr.mxu0 %v2520
        %v2522 = vand.u32 %v426, 4294901760
        %v2523 = vsub.f32 %v426, %v2522
        %v2524 = vand.u32 %v2523, 4294901760
        %v2525 = vsub.f32 %v2523, %v2524
        %v2526 = vand.u32 %v2525, 4294901760
        %2527 = vmatpush1.msra.mxu0 %v2526
        %v2528 = vand.u32 %v432, 4294901760
        %v2529 = vsub.f32 %v432, %v2528
        %v2530 = vand.u32 %v2529, 4294901760
        %v2531 = vsub.f32 %v2529, %v2530
        %v2532 = vand.u32 %v2531, 4294901760
        %2533 = vmatprep.subr.mxu0 %v2532
        %v2534 = vand.u32 %v431, 4294901760
        %v2535 = vsub.f32 %v431, %v2534
        %v2536 = vand.u32 %v2535, 4294901760
        %v2537 = vsub.f32 %v2535, %v2536
        %v2538 = vand.u32 %v2537, 4294901760
        %2539 = vmatpush1.msra.mxu0 %v2538
        %v2540 = vand.u32 %v437, 4294901760
        %v2541 = vsub.f32 %v437, %v2540
        %v2542 = vand.u32 %v2541, 4294901760
        %v2543 = vsub.f32 %v2541, %v2542
        %v2544 = vand.u32 %v2543, 4294901760
        %2545 = vmatprep.subr.mxu0 %v2544
        %v2546 = vand.u32 %v436, 4294901760
        %v2547 = vsub.f32 %v436, %v2546
        %v2548 = vand.u32 %v2547, 4294901760
        %v2549 = vsub.f32 %v2547, %v2548
        %v2550 = vand.u32 %v2549, 4294901760
        %2551 = vmatpush1.msra.mxu0 %v2550
        %v2552 = vand.u32 %v442, 4294901760
        %v2553 = vsub.f32 %v442, %v2552
        %v2554 = vand.u32 %v2553, 4294901760
        %v2555 = vsub.f32 %v2553, %v2554
        %v2556 = vand.u32 %v2555, 4294901760
        %2557 = vmatprep.subr.mxu0 %v2556
        %v2558 = vand.u32 %v441, 4294901760
        %v2559 = vsub.f32 %v441, %v2558
        %v2560 = vand.u32 %v2559, 4294901760
        %v2561 = vsub.f32 %v2559, %v2560
        %v2562 = vand.u32 %v2561, 4294901760
        %2563 = vmatpush1.msra.mxu0 %v2562
        %v2564 = vand.u32 %v447, 4294901760
        %v2565 = vsub.f32 %v447, %v2564
        %v2566 = vand.u32 %v2565, 4294901760
        %v2567 = vsub.f32 %v2565, %v2566
        %v2568 = vand.u32 %v2567, 4294901760
        %2569 = vmatprep.subr.mxu0 %v2568
        %v2570 = vand.u32 %v446, 4294901760
        %v2571 = vsub.f32 %v446, %v2570
        %v2572 = vand.u32 %v2571, 4294901760
        %v2573 = vsub.f32 %v2571, %v2572
        %v2574 = vand.u32 %v2573, 4294901760
        %2575 = vmatpush1.msra.mxu0 %v2574
        %2576 = vmatprep.subr.mxu0 0.0
        %2577 = vmatpush1.msra.mxu0 0.0
        %2578 = vmatprep.subr.mxu0 0.0
        %2579 = vmatpush1.msra.mxu0 0.0
        %2580 = vmatprep.subr.mxu0 0.0
        %2581 = vmatpush1.msra.mxu0 0.0
        %2582 = vmatprep.subr.mxu0 0.0
        %2583 = vmatpush1.msra.mxu0 0.0
        %2584 = vmatprep.subr.mxu0 0.0
        %2585 = vmatpush1.msra.mxu0 0.0
        %2586 = vmatprep.subr.mxu0 0.0
        %2587 = vmatpush1.msra.mxu0 0.0
        %v2588 = vand.u32 %v515, 4294901760
        %2589 = vmatprep.mubr.f32.mxu0 %v2588
        %v2590 = vand.u32 %v465, 4294901760
        %2591 = vmatmul.mubr.f32.gmra.mrb[0].mxu0 %v2590
        %v2592 = vpop.f32.mrb[0].mxu0
        %v2593 = vadd.f32 %v2164, %v2592
        %v2594 = vpop.f32.mrb[0].mxu0
        %v2595 = vadd.f32 %v2166, %v2594
        %v2596 = vand.u32 %v518, 4294901760
        %2597 = vmatprep.mubr.f32.mxu0 %v2596
        %v2598 = vand.u32 %v466, 4294901760
        %2599 = vmatmul.mubr.f32.gmra.mrb[0].mxu0 %v2598
        %v2600 = vpop.f32.mrb[0].mxu0
        %v2601 = vadd.f32 %v2180, %v2600
        %v2602 = vpop.f32.mrb[0].mxu0
        %v2603 = vadd.f32 %v2182, %v2602
        %v2604 = vand.u32 %v521, 4294901760
        %2605 = vmatprep.mubr.f32.mxu0 %v2604
        %v2606 = vand.u32 %v467, 4294901760
        %2607 = vmatmul.mubr.f32.gmra.mrb[0].mxu0 %v2606
        %v2608 = vpop.f32.mrb[0].mxu0
        %v2609 = vadd.f32 %v2196, %v2608
        %v2610 = vpop.f32.mrb[0].mxu0
        %v2611 = vadd.f32 %v2198, %v2610
        %v2612 = vand.u32 %v524, 4294901760
        %2613 = vmatprep.mubr.f32.mxu0 %v2612
        %v2614 = vand.u32 %v468, 4294901760
        %2615 = vmatmul.mubr.f32.gmra.mrb[0].mxu0 %v2614
        %v2616 = vpop.f32.mrb[0].mxu0
        %v2617 = vadd.f32 %v2212, %v2616
        %v2618 = vpop.f32.mrb[0].mxu0
        %v2619 = vadd.f32 %v2214, %v2618
        %v2620 = vand.u32 %v527, 4294901760
        %2621 = vmatprep.mubr.f32.mxu0 %v2620
        %v2622 = vand.u32 %v469, 4294901760
        %2623 = vmatmul.mubr.f32.gmra.mrb[0].mxu0 %v2622
        %v2624 = vpop.f32.mrb[0].mxu0
        %v2625 = vadd.f32 %v2228, %v2624
        %v2626 = vpop.f32.mrb[0].mxu0
        %v2627 = vadd.f32 %v2230, %v2626
        %v2628 = vand.u32 %v530, 4294901760
        %2629 = vmatprep.mubr.f32.mxu0 %v2628
        %v2630 = vand.u32 %v470, 4294901760
        %2631 = vmatmul.mubr.f32.gmra.mrb[0].mxu0 %v2630
        %v2632 = vpop.f32.mrb[0].mxu0
        %v2633 = vadd.f32 %v2244, %v2632
        %v2634 = vpop.f32.mrb[0].mxu0
        %v2635 = vadd.f32 %v2246, %v2634
        %v2636 = vand.u32 %v533, 4294901760
        %2637 = vmatprep.mubr.f32.mxu0 %v2636
        %v2638 = vand.u32 %v471, 4294901760
        %2639 = vmatmul.mubr.f32.gmra.mrb[0].mxu0 %v2638
        %v2640 = vpop.f32.mrb[0].mxu0
        %v2641 = vadd.f32 %v2260, %v2640
        %v2642 = vpop.f32.mrb[0].mxu0
        %v2643 = vadd.f32 %v2262, %v2642
        %2644 = vdwg.mxu0
        %v2645 = vand.u32 %v322, 4294901760
        %v2646 = vsub.f32 %v322, %v2645
        %2647 = vmatprep.subr.mxu0 %v2646
        %v2648 = vand.u32 %v321, 4294901760
        %v2649 = vsub.f32 %v321, %v2648
        %2650 = vmatpush1.msra.mxu0 %v2649
        %v2651 = vand.u32 %v327, 4294901760
        %v2652 = vsub.f32 %v327, %v2651
        %2653 = vmatprep.subr.mxu0 %v2652
        %v2654 = vand.u32 %v326, 4294901760
        %v2655 = vsub.f32 %v326, %v2654
        %2656 = vmatpush1.msra.mxu0 %v2655
        %v2657 = vand.u32 %v332, 4294901760
        %v2658 = vsub.f32 %v332, %v2657
        %2659 = vmatprep.subr.mxu0 %v2658
        %v2660 = vand.u32 %v331, 4294901760
        %v2661 = vsub.f32 %v331, %v2660
        %2662 = vmatpush1.msra.mxu0 %v2661
        %v2663 = vand.u32 %v337, 4294901760
        %v2664 = vsub.f32 %v337, %v2663
        %2665 = vmatprep.subr.mxu0 %v2664
        %v2666 = vand.u32 %v336, 4294901760
        %v2667 = vsub.f32 %v336, %v2666
        %2668 = vmatpush1.msra.mxu0 %v2667
        %v2669 = vand.u32 %v342, 4294901760
        %v2670 = vsub.f32 %v342, %v2669
        %2671 = vmatprep.subr.mxu0 %v2670
        %v2672 = vand.u32 %v341, 4294901760
        %v2673 = vsub.f32 %v341, %v2672
        %2674 = vmatpush1.msra.mxu0 %v2673
        %v2675 = vand.u32 %v347, 4294901760
        %v2676 = vsub.f32 %v347, %v2675
        %2677 = vmatprep.subr.mxu0 %v2676
        %v2678 = vand.u32 %v346, 4294901760
        %v2679 = vsub.f32 %v346, %v2678
        %2680 = vmatpush1.msra.mxu0 %v2679
        %v2681 = vand.u32 %v352, 4294901760
        %v2682 = vsub.f32 %v352, %v2681
        %2683 = vmatprep.subr.mxu0 %v2682
        %v2684 = vand.u32 %v351, 4294901760
        %v2685 = vsub.f32 %v351, %v2684
        %2686 = vmatpush1.msra.mxu0 %v2685
        %v2687 = vand.u32 %v357, 4294901760
        %v2688 = vsub.f32 %v357, %v2687
        %2689 = vmatprep.subr.mxu0 %v2688
        %v2690 = vand.u32 %v356, 4294901760
        %v2691 = vsub.f32 %v356, %v2690
        %2692 = vmatpush1.msra.mxu0 %v2691
        %v2693 = vand.u32 %v362, 4294901760
        %v2694 = vsub.f32 %v362, %v2693
        %2695 = vmatprep.subr.mxu0 %v2694
        %v2696 = vand.u32 %v361, 4294901760
        %v2697 = vsub.f32 %v361, %v2696
        %2698 = vmatpush1.msra.mxu0 %v2697
        %v2699 = vand.u32 %v367, 4294901760
        %v2700 = vsub.f32 %v367, %v2699
        %2701 = vmatprep.subr.mxu0 %v2700
        %v2702 = vand.u32 %v366, 4294901760
        %v2703 = vsub.f32 %v366, %v2702
        %2704 = vmatpush1.msra.mxu0 %v2703
        %v2705 = vand.u32 %v372, 4294901760
        %v2706 = vsub.f32 %v372, %v2705
        %2707 = vmatprep.subr.mxu0 %v2706
        %v2708 = vand.u32 %v371, 4294901760
        %v2709 = vsub.f32 %v371, %v2708
        %2710 = vmatpush1.msra.mxu0 %v2709
        %v2711 = vand.u32 %v377, 4294901760
        %v2712 = vsub.f32 %v377, %v2711
        %2713 = vmatprep.subr.mxu0 %v2712
        %v2714 = vand.u32 %v376, 4294901760
        %v2715 = vsub.f32 %v376, %v2714
        %2716 = vmatpush1.msra.mxu0 %v2715
        %v2717 = vand.u32 %v382, 4294901760
        %v2718 = vsub.f32 %v382, %v2717
        %2719 = vmatprep.subr.mxu0 %v2718
        %v2720 = vand.u32 %v381, 4294901760
        %v2721 = vsub.f32 %v381, %v2720
        %2722 = vmatpush1.msra.mxu0 %v2721
        %v2723 = vand.u32 %v387, 4294901760
        %v2724 = vsub.f32 %v387, %v2723
        %2725 = vmatprep.subr.mxu0 %v2724
        %v2726 = vand.u32 %v386, 4294901760
        %v2727 = vsub.f32 %v386, %v2726
        %2728 = vmatpush1.msra.mxu0 %v2727
        %v2729 = vand.u32 %v392, 4294901760
        %v2730 = vsub.f32 %v392, %v2729
        %2731 = vmatprep.subr.mxu0 %v2730
        %v2732 = vand.u32 %v391, 4294901760
        %v2733 = vsub.f32 %v391, %v2732
        %2734 = vmatpush1.msra.mxu0 %v2733
        %v2735 = vand.u32 %v397, 4294901760
        %v2736 = vsub.f32 %v397, %v2735
        %2737 = vmatprep.subr.mxu0 %v2736
        %v2738 = vand.u32 %v396, 4294901760
        %v2739 = vsub.f32 %v396, %v2738
        %2740 = vmatpush1.msra.mxu0 %v2739
        %v2741 = vand.u32 %v402, 4294901760
        %v2742 = vsub.f32 %v402, %v2741
        %2743 = vmatprep.subr.mxu0 %v2742
        %v2744 = vand.u32 %v401, 4294901760
        %v2745 = vsub.f32 %v401, %v2744
        %2746 = vmatpush1.msra.mxu0 %v2745
        %v2747 = vand.u32 %v407, 4294901760
        %v2748 = vsub.f32 %v407, %v2747
        %2749 = vmatprep.subr.mxu0 %v2748
        %v2750 = vand.u32 %v406, 4294901760
        %v2751 = vsub.f32 %v406, %v2750
        %2752 = vmatpush1.msra.mxu0 %v2751
        %v2753 = vand.u32 %v412, 4294901760
        %v2754 = vsub.f32 %v412, %v2753
        %2755 = vmatprep.subr.mxu0 %v2754
        %v2756 = vand.u32 %v411, 4294901760
        %v2757 = vsub.f32 %v411, %v2756
        %2758 = vmatpush1.msra.mxu0 %v2757
        %v2759 = vand.u32 %v417, 4294901760
        %v2760 = vsub.f32 %v417, %v2759
        %2761 = vmatprep.subr.mxu0 %v2760
        %v2762 = vand.u32 %v416, 4294901760
        %v2763 = vsub.f32 %v416, %v2762
        %2764 = vmatpush1.msra.mxu0 %v2763
        %v2765 = vand.u32 %v422, 4294901760
        %v2766 = vsub.f32 %v422, %v2765
        %2767 = vmatprep.subr.mxu0 %v2766
        %v2768 = vand.u32 %v421, 4294901760
        %v2769 = vsub.f32 %v421, %v2768
        %2770 = vmatpush1.msra.mxu0 %v2769
        %v2771 = vand.u32 %v427, 4294901760
        %v2772 = vsub.f32 %v427, %v2771
        %2773 = vmatprep.subr.mxu0 %v2772
        %v2774 = vand.u32 %v426, 4294901760
        %v2775 = vsub.f32 %v426, %v2774
        %2776 = vmatpush1.msra.mxu0 %v2775
        %v2777 = vand.u32 %v432, 4294901760
        %v2778 = vsub.f32 %v432, %v2777
        %2779 = vmatprep.subr.mxu0 %v2778
        %v2780 = vand.u32 %v431, 4294901760
        %v2781 = vsub.f32 %v431, %v2780
        %2782 = vmatpush1.msra.mxu0 %v2781
        %v2783 = vand.u32 %v437, 4294901760
        %v2784 = vsub.f32 %v437, %v2783
        %2785 = vmatprep.subr.mxu0 %v2784
        %v2786 = vand.u32 %v436, 4294901760
        %v2787 = vsub.f32 %v436, %v2786
        %2788 = vmatpush1.msra.mxu0 %v2787
        %v2789 = vand.u32 %v442, 4294901760
        %v2790 = vsub.f32 %v442, %v2789
        %2791 = vmatprep.subr.mxu0 %v2790
        %v2792 = vand.u32 %v441, 4294901760
        %v2793 = vsub.f32 %v441, %v2792
        %2794 = vmatpush1.msra.mxu0 %v2793
        %v2795 = vand.u32 %v447, 4294901760
        %v2796 = vsub.f32 %v447, %v2795
        %2797 = vmatprep.subr.mxu0 %v2796
        %v2798 = vand.u32 %v446, 4294901760
        %v2799 = vsub.f32 %v446, %v2798
        %2800 = vmatpush1.msra.mxu0 %v2799
        %2801 = vmatprep.subr.mxu0 0.0
        %2802 = vmatpush1.msra.mxu0 0.0
        %2803 = vmatprep.subr.mxu0 0.0
        %2804 = vmatpush1.msra.mxu0 0.0
        %2805 = vmatprep.subr.mxu0 0.0
        %2806 = vmatpush1.msra.mxu0 0.0
        %2807 = vmatprep.subr.mxu0 0.0
        %2808 = vmatpush1.msra.mxu0 0.0
        %2809 = vmatprep.subr.mxu0 0.0
        %2810 = vmatpush1.msra.mxu0 0.0
        %2811 = vmatprep.subr.mxu0 0.0
        %2812 = vmatpush1.msra.mxu0 0.0
        %v2813 = vand.u32 %v515, 4294901760
        %v2814 = vsub.f32 %v515, %v2813
        %2815 = vmatprep.mubr.f32.mxu0 %v2814
        %v2816 = vand.u32 %v465, 4294901760
        %v2817 = vsub.f32 %v465, %v2816
        %2818 = vmatmul.mubr.f32.gmra.mrb[0].mxu0 %v2817
        %v2819 = vpop.f32.mrb[0].mxu0
        %v2820 = vadd.f32 %v2593, %v2819
        %v2821 = vpop.f32.mrb[0].mxu0
        %v2822 = vadd.f32 %v2595, %v2821
        %v2823 = vand.u32 %v518, 4294901760
        %v2824 = vsub.f32 %v518, %v2823
        %2825 = vmatprep.mubr.f32.mxu0 %v2824
        %v2826 = vand.u32 %v466, 4294901760
        %v2827 = vsub.f32 %v466, %v2826
        %2828 = vmatmul.mubr.f32.gmra.mrb[0].mxu0 %v2827
        %v2829 = vpop.f32.mrb[0].mxu0
        %v2830 = vadd.f32 %v2601, %v2829
        %v2831 = vpop.f32.mrb[0].mxu0
        %v2832 = vadd.f32 %v2603, %v2831
        %v2833 = vand.u32 %v521, 4294901760
        %v2834 = vsub.f32 %v521, %v2833
        %2835 = vmatprep.mubr.f32.mxu0 %v2834
        %v2836 = vand.u32 %v467, 4294901760
        %v2837 = vsub.f32 %v467, %v2836
        %2838 = vmatmul.mubr.f32.gmra.mrb[0].mxu0 %v2837
        %v2839 = vpop.f32.mrb[0].mxu0
        %v2840 = vadd.f32 %v2609, %v2839
        %v2841 = vpop.f32.mrb[0].mxu0
        %v2842 = vadd.f32 %v2611, %v2841
        %v2843 = vand.u32 %v524, 4294901760
        %v2844 = vsub.f32 %v524, %v2843
        %2845 = vmatprep.mubr.f32.mxu0 %v2844
        %v2846 = vand.u32 %v468, 4294901760
        %v2847 = vsub.f32 %v468, %v2846
        %2848 = vmatmul.mubr.f32.gmra.mrb[0].mxu0 %v2847
        %v2849 = vpop.f32.mrb[0].mxu0
        %v2850 = vadd.f32 %v2617, %v2849
        %v2851 = vpop.f32.mrb[0].mxu0
        %v2852 = vadd.f32 %v2619, %v2851
        %v2853 = vand.u32 %v527, 4294901760
        %v2854 = vsub.f32 %v527, %v2853
        %2855 = vmatprep.mubr.f32.mxu0 %v2854
        %v2856 = vand.u32 %v469, 4294901760
        %v2857 = vsub.f32 %v469, %v2856
        %2858 = vmatmul.mubr.f32.gmra.mrb[0].mxu0 %v2857
        %v2859 = vpop.f32.mrb[0].mxu0
        %v2860 = vadd.f32 %v2625, %v2859
        %v2861 = vpop.f32.mrb[0].mxu0
        %v2862 = vadd.f32 %v2627, %v2861
        %v2863 = vand.u32 %v530, 4294901760
        %v2864 = vsub.f32 %v530, %v2863
        %2865 = vmatprep.mubr.f32.mxu0 %v2864
        %v2866 = vand.u32 %v470, 4294901760
        %v2867 = vsub.f32 %v470, %v2866
        %2868 = vmatmul.mubr.f32.gmra.mrb[0].mxu0 %v2867
        %v2869 = vpop.f32.mrb[0].mxu0
        %v2870 = vadd.f32 %v2633, %v2869
        %v2871 = vpop.f32.mrb[0].mxu0
        %v2872 = vadd.f32 %v2635, %v2871
        %v2873 = vand.u32 %v533, 4294901760
        %v2874 = vsub.f32 %v533, %v2873
        %2875 = vmatprep.mubr.f32.mxu0 %v2874
        %v2876 = vand.u32 %v471, 4294901760
        %v2877 = vsub.f32 %v471, %v2876
        %2878 = vmatmul.mubr.f32.gmra.mrb[0].mxu0 %v2877
        %v2879 = vpop.f32.mrb[0].mxu0
        %v2880 = vadd.f32 %v2641, %v2879
        %v2881 = vpop.f32.mrb[0].mxu0
        %v2882 = vadd.f32 %v2643, %v2881
        %2883 = vdwg.mxu0
        %v2884 = vand.u32 %v322, 4294901760
        %2885 = vmatprep.subr.mxu0 %v2884
        %v2886 = vand.u32 %v321, 4294901760
        %2887 = vmatpush1.msra.mxu0 %v2886
        %v2888 = vand.u32 %v327, 4294901760
        %2889 = vmatprep.subr.mxu0 %v2888
        %v2890 = vand.u32 %v326, 4294901760
        %2891 = vmatpush1.msra.mxu0 %v2890
        %v2892 = vand.u32 %v332, 4294901760
        %2893 = vmatprep.subr.mxu0 %v2892
        %v2894 = vand.u32 %v331, 4294901760
        %2895 = vmatpush1.msra.mxu0 %v2894
        %v2896 = vand.u32 %v337, 4294901760
        %2897 = vmatprep.subr.mxu0 %v2896
        %v2898 = vand.u32 %v336, 4294901760
        %2899 = vmatpush1.msra.mxu0 %v2898
        %v2900 = vand.u32 %v342, 4294901760
        %2901 = vmatprep.subr.mxu0 %v2900
        %v2902 = vand.u32 %v341, 4294901760
        %2903 = vmatpush1.msra.mxu0 %v2902
        %v2904 = vand.u32 %v347, 4294901760
        %2905 = vmatprep.subr.mxu0 %v2904
        %v2906 = vand.u32 %v346, 4294901760
        %2907 = vmatpush1.msra.mxu0 %v2906
        %v2908 = vand.u32 %v352, 4294901760
        %2909 = vmatprep.subr.mxu0 %v2908
        %v2910 = vand.u32 %v351, 4294901760
        %2911 = vmatpush1.msra.mxu0 %v2910
        %v2912 = vand.u32 %v357, 4294901760
        %2913 = vmatprep.subr.mxu0 %v2912
        %v2914 = vand.u32 %v356, 4294901760
        %2915 = vmatpush1.msra.mxu0 %v2914
        %v2916 = vand.u32 %v362, 4294901760
        %2917 = vmatprep.subr.mxu0 %v2916
        %v2918 = vand.u32 %v361, 4294901760
        %2919 = vmatpush1.msra.mxu0 %v2918
        %v2920 = vand.u32 %v367, 4294901760
        %2921 = vmatprep.subr.mxu0 %v2920
        %v2922 = vand.u32 %v366, 4294901760
        %2923 = vmatpush1.msra.mxu0 %v2922
        %v2924 = vand.u32 %v372, 4294901760
        %2925 = vmatprep.subr.mxu0 %v2924
        %v2926 = vand.u32 %v371, 4294901760
        %2927 = vmatpush1.msra.mxu0 %v2926
        %v2928 = vand.u32 %v377, 4294901760
        %2929 = vmatprep.subr.mxu0 %v2928
        %v2930 = vand.u32 %v376, 4294901760
        %2931 = vmatpush1.msra.mxu0 %v2930
        %v2932 = vand.u32 %v382, 4294901760
        %2933 = vmatprep.subr.mxu0 %v2932
        %v2934 = vand.u32 %v381, 4294901760
        %2935 = vmatpush1.msra.mxu0 %v2934
        %v2936 = vand.u32 %v387, 4294901760
        %2937 = vmatprep.subr.mxu0 %v2936
        %v2938 = vand.u32 %v386, 4294901760
        %2939 = vmatpush1.msra.mxu0 %v2938
        %v2940 = vand.u32 %v392, 4294901760
        %2941 = vmatprep.subr.mxu0 %v2940
        %v2942 = vand.u32 %v391, 4294901760
        %2943 = vmatpush1.msra.mxu0 %v2942
        %v2944 = vand.u32 %v397, 4294901760
        %2945 = vmatprep.subr.mxu0 %v2944
        %v2946 = vand.u32 %v396, 4294901760
        %2947 = vmatpush1.msra.mxu0 %v2946
        %v2948 = vand.u32 %v402, 4294901760
        %2949 = vmatprep.subr.mxu0 %v2948
        %v2950 = vand.u32 %v401, 4294901760
        %2951 = vmatpush1.msra.mxu0 %v2950
        %v2952 = vand.u32 %v407, 4294901760
        %2953 = vmatprep.subr.mxu0 %v2952
        %v2954 = vand.u32 %v406, 4294901760
        %2955 = vmatpush1.msra.mxu0 %v2954
        %v2956 = vand.u32 %v412, 4294901760
        %2957 = vmatprep.subr.mxu0 %v2956
        %v2958 = vand.u32 %v411, 4294901760
        %2959 = vmatpush1.msra.mxu0 %v2958
        %v2960 = vand.u32 %v417, 4294901760
        %2961 = vmatprep.subr.mxu0 %v2960
        %v2962 = vand.u32 %v416, 4294901760
        %2963 = vmatpush1.msra.mxu0 %v2962
        %v2964 = vand.u32 %v422, 4294901760
        %2965 = vmatprep.subr.mxu0 %v2964
        %v2966 = vand.u32 %v421, 4294901760
        %2967 = vmatpush1.msra.mxu0 %v2966
        %v2968 = vand.u32 %v427, 4294901760
        %2969 = vmatprep.subr.mxu0 %v2968
        %v2970 = vand.u32 %v426, 4294901760
        %2971 = vmatpush1.msra.mxu0 %v2970
        %v2972 = vand.u32 %v432, 4294901760
        %2973 = vmatprep.subr.mxu0 %v2972
        %v2974 = vand.u32 %v431, 4294901760
        %2975 = vmatpush1.msra.mxu0 %v2974
        %v2976 = vand.u32 %v437, 4294901760
        %2977 = vmatprep.subr.mxu0 %v2976
        %v2978 = vand.u32 %v436, 4294901760
        %2979 = vmatpush1.msra.mxu0 %v2978
        %v2980 = vand.u32 %v442, 4294901760
        %2981 = vmatprep.subr.mxu0 %v2980
        %v2982 = vand.u32 %v441, 4294901760
        %2983 = vmatpush1.msra.mxu0 %v2982
        %v2984 = vand.u32 %v447, 4294901760
        %2985 = vmatprep.subr.mxu0 %v2984
        %v2986 = vand.u32 %v446, 4294901760
        %2987 = vmatpush1.msra.mxu0 %v2986
        %2988 = vmatprep.subr.mxu0 0.0
        %2989 = vmatpush1.msra.mxu0 0.0
        %2990 = vmatprep.subr.mxu0 0.0
        %2991 = vmatpush1.msra.mxu0 0.0
        %2992 = vmatprep.subr.mxu0 0.0
        %2993 = vmatpush1.msra.mxu0 0.0
        %2994 = vmatprep.subr.mxu0 0.0
        %2995 = vmatpush1.msra.mxu0 0.0
        %2996 = vmatprep.subr.mxu0 0.0
        %2997 = vmatpush1.msra.mxu0 0.0
        %2998 = vmatprep.subr.mxu0 0.0
        %2999 = vmatpush1.msra.mxu0 0.0
        %v3000 = vand.u32 %v515, 4294901760
        %v3001 = vsub.f32 %v515, %v3000
        %v3002 = vand.u32 %v3001, 4294901760
        %3003 = vmatprep.mubr.f32.mxu0 %v3002
        %v3004 = vand.u32 %v465, 4294901760
        %v3005 = vsub.f32 %v465, %v3004
        %v3006 = vand.u32 %v3005, 4294901760
        %3007 = vmatmul.mubr.f32.gmra.mrb[0].mxu0 %v3006
        %v3008 = vpop.f32.mrb[0].mxu0
        %v3009 = vadd.f32 %v2820, %v3008
        %v3010 = vpop.f32.mrb[0].mxu0
        %v3011 = vadd.f32 %v2822, %v3010
        %v3012 = vand.u32 %v518, 4294901760
        %v3013 = vsub.f32 %v518, %v3012
        %v3014 = vand.u32 %v3013, 4294901760
        %3015 = vmatprep.mubr.f32.mxu0 %v3014
        %v3016 = vand.u32 %v466, 4294901760
        %v3017 = vsub.f32 %v466, %v3016
        %v3018 = vand.u32 %v3017, 4294901760
        %3019 = vmatmul.mubr.f32.gmra.mrb[0].mxu0 %v3018
        %v3020 = vpop.f32.mrb[0].mxu0
        %v3021 = vadd.f32 %v2830, %v3020
        %v3022 = vpop.f32.mrb[0].mxu0
        %v3023 = vadd.f32 %v2832, %v3022
        %v3024 = vand.u32 %v521, 4294901760
        %v3025 = vsub.f32 %v521, %v3024
        %v3026 = vand.u32 %v3025, 4294901760
        %3027 = vmatprep.mubr.f32.mxu0 %v3026
        %v3028 = vand.u32 %v467, 4294901760
        %v3029 = vsub.f32 %v467, %v3028
        %v3030 = vand.u32 %v3029, 4294901760
        %3031 = vmatmul.mubr.f32.gmra.mrb[0].mxu0 %v3030
        %v3032 = vpop.f32.mrb[0].mxu0
        %v3033 = vadd.f32 %v2840, %v3032
        %v3034 = vpop.f32.mrb[0].mxu0
        %v3035 = vadd.f32 %v2842, %v3034
        %v3036 = vand.u32 %v524, 4294901760
        %v3037 = vsub.f32 %v524, %v3036
        %v3038 = vand.u32 %v3037, 4294901760
        %3039 = vmatprep.mubr.f32.mxu0 %v3038
        %v3040 = vand.u32 %v468, 4294901760
        %v3041 = vsub.f32 %v468, %v3040
        %v3042 = vand.u32 %v3041, 4294901760
        %3043 = vmatmul.mubr.f32.gmra.mrb[0].mxu0 %v3042
        %v3044 = vpop.f32.mrb[0].mxu0
        %v3045 = vadd.f32 %v2850, %v3044
        %v3046 = vpop.f32.mrb[0].mxu0
        %v3047 = vadd.f32 %v2852, %v3046
        %v3048 = vand.u32 %v527, 4294901760
        %v3049 = vsub.f32 %v527, %v3048
        %v3050 = vand.u32 %v3049, 4294901760
        %3051 = vmatprep.mubr.f32.mxu0 %v3050
        %v3052 = vand.u32 %v469, 4294901760
        %v3053 = vsub.f32 %v469, %v3052
        %v3054 = vand.u32 %v3053, 4294901760
        %3055 = vmatmul.mubr.f32.gmra.mrb[0].mxu0 %v3054
        %v3056 = vpop.f32.mrb[0].mxu0
        %v3057 = vadd.f32 %v2860, %v3056
        %v3058 = vpop.f32.mrb[0].mxu0
        %v3059 = vadd.f32 %v2862, %v3058
        %v3060 = vand.u32 %v530, 4294901760
        %v3061 = vsub.f32 %v530, %v3060
        %v3062 = vand.u32 %v3061, 4294901760
        %3063 = vmatprep.mubr.f32.mxu0 %v3062
        %v3064 = vand.u32 %v470, 4294901760
        %v3065 = vsub.f32 %v470, %v3064
        %v3066 = vand.u32 %v3065, 4294901760
        %3067 = vmatmul.mubr.f32.gmra.mrb[0].mxu0 %v3066
        %v3068 = vpop.f32.mrb[0].mxu0
        %v3069 = vadd.f32 %v2870, %v3068
        %v3070 = vpop.f32.mrb[0].mxu0
        %v3071 = vadd.f32 %v2872, %v3070
        %v3072 = vand.u32 %v533, 4294901760
        %v3073 = vsub.f32 %v533, %v3072
        %v3074 = vand.u32 %v3073, 4294901760
        %3075 = vmatprep.mubr.f32.mxu0 %v3074
        %v3076 = vand.u32 %v471, 4294901760
        %v3077 = vsub.f32 %v471, %v3076
        %v3078 = vand.u32 %v3077, 4294901760
        %3079 = vmatmul.mubr.f32.gmra.mrb[0].mxu0 %v3078
        %v3080 = vpop.f32.mrb[0].mxu0
        %v3081 = vadd.f32 %v2880, %v3080
        %v3082 = vpop.f32.mrb[0].mxu0
        %v3083 = vadd.f32 %v2882, %v3082
        %3084 = vdwg.mxu0
        %v3085 = vand.u32 %v322, 4294901760
        %v3086 = vsub.f32 %v322, %v3085
        %v3087 = vand.u32 %v3086, 4294901760
        %3088 = vmatprep.subr.mxu0 %v3087
        %v3089 = vand.u32 %v321, 4294901760
        %v3090 = vsub.f32 %v321, %v3089
        %v3091 = vand.u32 %v3090, 4294901760
        %3092 = vmatpush1.msra.mxu0 %v3091
        %v3093 = vand.u32 %v327, 4294901760
        %v3094 = vsub.f32 %v327, %v3093
        %v3095 = vand.u32 %v3094, 4294901760
        %3096 = vmatprep.subr.mxu0 %v3095
        %v3097 = vand.u32 %v326, 4294901760
        %v3098 = vsub.f32 %v326, %v3097
        %v3099 = vand.u32 %v3098, 4294901760
        %3100 = vmatpush1.msra.mxu0 %v3099
        %v3101 = vand.u32 %v332, 4294901760
        %v3102 = vsub.f32 %v332, %v3101
        %v3103 = vand.u32 %v3102, 4294901760
        %3104 = vmatprep.subr.mxu0 %v3103
        %v3105 = vand.u32 %v331, 4294901760
        %v3106 = vsub.f32 %v331, %v3105
        %v3107 = vand.u32 %v3106, 4294901760
        %3108 = vmatpush1.msra.mxu0 %v3107
        %v3109 = vand.u32 %v337, 4294901760
        %v3110 = vsub.f32 %v337, %v3109
        %v3111 = vand.u32 %v3110, 4294901760
        %3112 = vmatprep.subr.mxu0 %v3111
        %v3113 = vand.u32 %v336, 4294901760
        %v3114 = vsub.f32 %v336, %v3113
        %v3115 = vand.u32 %v3114, 4294901760
        %3116 = vmatpush1.msra.mxu0 %v3115
        %v3117 = vand.u32 %v342, 4294901760
        %v3118 = vsub.f32 %v342, %v3117
        %v3119 = vand.u32 %v3118, 4294901760
        %3120 = vmatprep.subr.mxu0 %v3119
        %v3121 = vand.u32 %v341, 4294901760
        %v3122 = vsub.f32 %v341, %v3121
        %v3123 = vand.u32 %v3122, 4294901760
        %3124 = vmatpush1.msra.mxu0 %v3123
        %v3125 = vand.u32 %v347, 4294901760
        %v3126 = vsub.f32 %v347, %v3125
        %v3127 = vand.u32 %v3126, 4294901760
        %3128 = vmatprep.subr.mxu0 %v3127
        %v3129 = vand.u32 %v346, 4294901760
        %v3130 = vsub.f32 %v346, %v3129
        %v3131 = vand.u32 %v3130, 4294901760
        %3132 = vmatpush1.msra.mxu0 %v3131
        %v3133 = vand.u32 %v352, 4294901760
        %v3134 = vsub.f32 %v352, %v3133
        %v3135 = vand.u32 %v3134, 4294901760
        %3136 = vmatprep.subr.mxu0 %v3135
        %v3137 = vand.u32 %v351, 4294901760
        %v3138 = vsub.f32 %v351, %v3137
        %v3139 = vand.u32 %v3138, 4294901760
        %3140 = vmatpush1.msra.mxu0 %v3139
        %v3141 = vand.u32 %v357, 4294901760
        %v3142 = vsub.f32 %v357, %v3141
        %v3143 = vand.u32 %v3142, 4294901760
        %3144 = vmatprep.subr.mxu0 %v3143
        %v3145 = vand.u32 %v356, 4294901760
        %v3146 = vsub.f32 %v356, %v3145
        %v3147 = vand.u32 %v3146, 4294901760
        %3148 = vmatpush1.msra.mxu0 %v3147
        %v3149 = vand.u32 %v362, 4294901760
        %v3150 = vsub.f32 %v362, %v3149
        %v3151 = vand.u32 %v3150, 4294901760
        %3152 = vmatprep.subr.mxu0 %v3151
        %v3153 = vand.u32 %v361, 4294901760
        %v3154 = vsub.f32 %v361, %v3153
        %v3155 = vand.u32 %v3154, 4294901760
        %3156 = vmatpush1.msra.mxu0 %v3155
        %v3157 = vand.u32 %v367, 4294901760
        %v3158 = vsub.f32 %v367, %v3157
        %v3159 = vand.u32 %v3158, 4294901760
        %3160 = vmatprep.subr.mxu0 %v3159
        %v3161 = vand.u32 %v366, 4294901760
        %v3162 = vsub.f32 %v366, %v3161
        %v3163 = vand.u32 %v3162, 4294901760
        %3164 = vmatpush1.msra.mxu0 %v3163
        %v3165 = vand.u32 %v372, 4294901760
        %v3166 = vsub.f32 %v372, %v3165
        %v3167 = vand.u32 %v3166, 4294901760
        %3168 = vmatprep.subr.mxu0 %v3167
        %v3169 = vand.u32 %v371, 4294901760
        %v3170 = vsub.f32 %v371, %v3169
        %v3171 = vand.u32 %v3170, 4294901760
        %3172 = vmatpush1.msra.mxu0 %v3171
        %v3173 = vand.u32 %v377, 4294901760
        %v3174 = vsub.f32 %v377, %v3173
        %v3175 = vand.u32 %v3174, 4294901760
        %3176 = vmatprep.subr.mxu0 %v3175
        %v3177 = vand.u32 %v376, 4294901760
        %v3178 = vsub.f32 %v376, %v3177
        %v3179 = vand.u32 %v3178, 4294901760
        %3180 = vmatpush1.msra.mxu0 %v3179
        %v3181 = vand.u32 %v382, 4294901760
        %v3182 = vsub.f32 %v382, %v3181
        %v3183 = vand.u32 %v3182, 4294901760
        %3184 = vmatprep.subr.mxu0 %v3183
        %v3185 = vand.u32 %v381, 4294901760
        %v3186 = vsub.f32 %v381, %v3185
        %v3187 = vand.u32 %v3186, 4294901760
        %3188 = vmatpush1.msra.mxu0 %v3187
        %v3189 = vand.u32 %v387, 4294901760
        %v3190 = vsub.f32 %v387, %v3189
        %v3191 = vand.u32 %v3190, 4294901760
        %3192 = vmatprep.subr.mxu0 %v3191
        %v3193 = vand.u32 %v386, 4294901760
        %v3194 = vsub.f32 %v386, %v3193
        %v3195 = vand.u32 %v3194, 4294901760
        %3196 = vmatpush1.msra.mxu0 %v3195
        %v3197 = vand.u32 %v392, 4294901760
        %v3198 = vsub.f32 %v392, %v3197
        %v3199 = vand.u32 %v3198, 4294901760
        %3200 = vmatprep.subr.mxu0 %v3199
        %v3201 = vand.u32 %v391, 4294901760
        %v3202 = vsub.f32 %v391, %v3201
        %v3203 = vand.u32 %v3202, 4294901760
        %3204 = vmatpush1.msra.mxu0 %v3203
        %v3205 = vand.u32 %v397, 4294901760
        %v3206 = vsub.f32 %v397, %v3205
        %v3207 = vand.u32 %v3206, 4294901760
        %3208 = vmatprep.subr.mxu0 %v3207
        %v3209 = vand.u32 %v396, 4294901760
        %v3210 = vsub.f32 %v396, %v3209
        %v3211 = vand.u32 %v3210, 4294901760
        %3212 = vmatpush1.msra.mxu0 %v3211
        %v3213 = vand.u32 %v402, 4294901760
        %v3214 = vsub.f32 %v402, %v3213
        %v3215 = vand.u32 %v3214, 4294901760
        %3216 = vmatprep.subr.mxu0 %v3215
        %v3217 = vand.u32 %v401, 4294901760
        %v3218 = vsub.f32 %v401, %v3217
        %v3219 = vand.u32 %v3218, 4294901760
        %3220 = vmatpush1.msra.mxu0 %v3219
        %v3221 = vand.u32 %v407, 4294901760
        %v3222 = vsub.f32 %v407, %v3221
        %v3223 = vand.u32 %v3222, 4294901760
        %3224 = vmatprep.subr.mxu0 %v3223
        %v3225 = vand.u32 %v406, 4294901760
        %v3226 = vsub.f32 %v406, %v3225
        %v3227 = vand.u32 %v3226, 4294901760
        %3228 = vmatpush1.msra.mxu0 %v3227
        %v3229 = vand.u32 %v412, 4294901760
        %v3230 = vsub.f32 %v412, %v3229
        %v3231 = vand.u32 %v3230, 4294901760
        %3232 = vmatprep.subr.mxu0 %v3231
        %v3233 = vand.u32 %v411, 4294901760
        %v3234 = vsub.f32 %v411, %v3233
        %v3235 = vand.u32 %v3234, 4294901760
        %3236 = vmatpush1.msra.mxu0 %v3235
        %v3237 = vand.u32 %v417, 4294901760
        %v3238 = vsub.f32 %v417, %v3237
        %v3239 = vand.u32 %v3238, 4294901760
        %3240 = vmatprep.subr.mxu0 %v3239
        %v3241 = vand.u32 %v416, 4294901760
        %v3242 = vsub.f32 %v416, %v3241
        %v3243 = vand.u32 %v3242, 4294901760
        %3244 = vmatpush1.msra.mxu0 %v3243
        %v3245 = vand.u32 %v422, 4294901760
        %v3246 = vsub.f32 %v422, %v3245
        %v3247 = vand.u32 %v3246, 4294901760
        %3248 = vmatprep.subr.mxu0 %v3247
        %v3249 = vand.u32 %v421, 4294901760
        %v3250 = vsub.f32 %v421, %v3249
        %v3251 = vand.u32 %v3250, 4294901760
        %3252 = vmatpush1.msra.mxu0 %v3251
        %v3253 = vand.u32 %v427, 4294901760
        %v3254 = vsub.f32 %v427, %v3253
        %v3255 = vand.u32 %v3254, 4294901760
        %3256 = vmatprep.subr.mxu0 %v3255
        %v3257 = vand.u32 %v426, 4294901760
        %v3258 = vsub.f32 %v426, %v3257
        %v3259 = vand.u32 %v3258, 4294901760
        %3260 = vmatpush1.msra.mxu0 %v3259
        %v3261 = vand.u32 %v432, 4294901760
        %v3262 = vsub.f32 %v432, %v3261
        %v3263 = vand.u32 %v3262, 4294901760
        %3264 = vmatprep.subr.mxu0 %v3263
        %v3265 = vand.u32 %v431, 4294901760
        %v3266 = vsub.f32 %v431, %v3265
        %v3267 = vand.u32 %v3266, 4294901760
        %3268 = vmatpush1.msra.mxu0 %v3267
        %v3269 = vand.u32 %v437, 4294901760
        %v3270 = vsub.f32 %v437, %v3269
        %v3271 = vand.u32 %v3270, 4294901760
        %3272 = vmatprep.subr.mxu0 %v3271
        %v3273 = vand.u32 %v436, 4294901760
        %v3274 = vsub.f32 %v436, %v3273
        %v3275 = vand.u32 %v3274, 4294901760
        %3276 = vmatpush1.msra.mxu0 %v3275
        %v3277 = vand.u32 %v442, 4294901760
        %v3278 = vsub.f32 %v442, %v3277
        %v3279 = vand.u32 %v3278, 4294901760
        %3280 = vmatprep.subr.mxu0 %v3279
        %v3281 = vand.u32 %v441, 4294901760
        %v3282 = vsub.f32 %v441, %v3281
        %v3283 = vand.u32 %v3282, 4294901760
        %3284 = vmatpush1.msra.mxu0 %v3283
        %v3285 = vand.u32 %v447, 4294901760
        %v3286 = vsub.f32 %v447, %v3285
        %v3287 = vand.u32 %v3286, 4294901760
        %3288 = vmatprep.subr.mxu0 %v3287
        %v3289 = vand.u32 %v446, 4294901760
        %v3290 = vsub.f32 %v446, %v3289
        %v3291 = vand.u32 %v3290, 4294901760
        %3292 = vmatpush1.msra.mxu0 %v3291
        %3293 = vmatprep.subr.mxu0 0.0
        %3294 = vmatpush1.msra.mxu0 0.0
        %3295 = vmatprep.subr.mxu0 0.0
        %3296 = vmatpush1.msra.mxu0 0.0
        %3297 = vmatprep.subr.mxu0 0.0
        %3298 = vmatpush1.msra.mxu0 0.0
        %3299 = vmatprep.subr.mxu0 0.0
        %3300 = vmatpush1.msra.mxu0 0.0
        %3301 = vmatprep.subr.mxu0 0.0
        %3302 = vmatpush1.msra.mxu0 0.0
        %3303 = vmatprep.subr.mxu0 0.0
        %3304 = vmatpush1.msra.mxu0 0.0
        %v3305 = vand.u32 %v515, 4294901760
        %3306 = vmatprep.mubr.f32.mxu0 %v3305
        %v3307 = vand.u32 %v465, 4294901760
        %3308 = vmatmul.mubr.f32.gmra.mrb[0].mxu0 %v3307
        %v3309 = vpop.f32.mrb[0].mxu0
        %v3310 = vadd.f32 %v3009, %v3309
        %v3311 = vpop.f32.mrb[0].mxu0
        %v3312 = vadd.f32 %v3011, %v3311
        %v3313 = vand.u32 %v518, 4294901760
        %3314 = vmatprep.mubr.f32.mxu0 %v3313
        %v3315 = vand.u32 %v466, 4294901760
        %3316 = vmatmul.mubr.f32.gmra.mrb[0].mxu0 %v3315
        %v3317 = vpop.f32.mrb[0].mxu0
        %v3318 = vadd.f32 %v3021, %v3317
        %v3319 = vpop.f32.mrb[0].mxu0
        %v3320 = vadd.f32 %v3023, %v3319
        %v3321 = vand.u32 %v521, 4294901760
        %3322 = vmatprep.mubr.f32.mxu0 %v3321
        %v3323 = vand.u32 %v467, 4294901760
        %3324 = vmatmul.mubr.f32.gmra.mrb[0].mxu0 %v3323
        %v3325 = vpop.f32.mrb[0].mxu0
        %v3326 = vadd.f32 %v3033, %v3325
        %v3327 = vpop.f32.mrb[0].mxu0
        %v3328 = vadd.f32 %v3035, %v3327
        %v3329 = vand.u32 %v524, 4294901760
        %3330 = vmatprep.mubr.f32.mxu0 %v3329
        %v3331 = vand.u32 %v468, 4294901760
        %3332 = vmatmul.mubr.f32.gmra.mrb[0].mxu0 %v3331
        %v3333 = vpop.f32.mrb[0].mxu0
        %v3334 = vadd.f32 %v3045, %v3333
        %v3335 = vpop.f32.mrb[0].mxu0
        %v3336 = vadd.f32 %v3047, %v3335
        %v3337 = vand.u32 %v527, 4294901760
        %3338 = vmatprep.mubr.f32.mxu0 %v3337
        %v3339 = vand.u32 %v469, 4294901760
        %3340 = vmatmul.mubr.f32.gmra.mrb[0].mxu0 %v3339
        %v3341 = vpop.f32.mrb[0].mxu0
        %v3342 = vadd.f32 %v3057, %v3341
        %v3343 = vpop.f32.mrb[0].mxu0
        %v3344 = vadd.f32 %v3059, %v3343
        %v3345 = vand.u32 %v530, 4294901760
        %3346 = vmatprep.mubr.f32.mxu0 %v3345
        %v3347 = vand.u32 %v470, 4294901760
        %3348 = vmatmul.mubr.f32.gmra.mrb[0].mxu0 %v3347
        %v3349 = vpop.f32.mrb[0].mxu0
        %v3350 = vadd.f32 %v3069, %v3349
        %v3351 = vpop.f32.mrb[0].mxu0
        %v3352 = vadd.f32 %v3071, %v3351
        %v3353 = vand.u32 %v533, 4294901760
        %3354 = vmatprep.mubr.f32.mxu0 %v3353
        %v3355 = vand.u32 %v471, 4294901760
        %3356 = vmatmul.mubr.f32.gmra.mrb[0].mxu0 %v3355
        %v3357 = vpop.f32.mrb[0].mxu0
        %v3358 = vadd.f32 %v3081, %v3357
        %v3359 = vpop.f32.mrb[0].mxu0
        %v3360 = vadd.f32 %v3083, %v3359
        %3361 = vdwg.mxu0
        %v3362 = vand.u32 %v322, 4294901760
        %3363 = vmatprep.subr.mxu0 %v3362
        %v3364 = vand.u32 %v321, 4294901760
        %3365 = vmatpush1.msra.mxu0 %v3364
        %v3366 = vand.u32 %v327, 4294901760
        %3367 = vmatprep.subr.mxu0 %v3366
        %v3368 = vand.u32 %v326, 4294901760
        %3369 = vmatpush1.msra.mxu0 %v3368
        %v3370 = vand.u32 %v332, 4294901760
        %3371 = vmatprep.subr.mxu0 %v3370
        %v3372 = vand.u32 %v331, 4294901760
        %3373 = vmatpush1.msra.mxu0 %v3372
        %v3374 = vand.u32 %v337, 4294901760
        %3375 = vmatprep.subr.mxu0 %v3374
        %v3376 = vand.u32 %v336, 4294901760
        %3377 = vmatpush1.msra.mxu0 %v3376
        %v3378 = vand.u32 %v342, 4294901760
        %3379 = vmatprep.subr.mxu0 %v3378
        %v3380 = vand.u32 %v341, 4294901760
        %3381 = vmatpush1.msra.mxu0 %v3380
        %v3382 = vand.u32 %v347, 4294901760
        %3383 = vmatprep.subr.mxu0 %v3382
        %v3384 = vand.u32 %v346, 4294901760
        %3385 = vmatpush1.msra.mxu0 %v3384
        %v3386 = vand.u32 %v352, 4294901760
        %3387 = vmatprep.subr.mxu0 %v3386
        %v3388 = vand.u32 %v351, 4294901760
        %3389 = vmatpush1.msra.mxu0 %v3388
        %v3390 = vand.u32 %v357, 4294901760
        %3391 = vmatprep.subr.mxu0 %v3390
        %v3392 = vand.u32 %v356, 4294901760
        %3393 = vmatpush1.msra.mxu0 %v3392
        %v3394 = vand.u32 %v362, 4294901760
        %3395 = vmatprep.subr.mxu0 %v3394
        %v3396 = vand.u32 %v361, 4294901760
        %3397 = vmatpush1.msra.mxu0 %v3396
        %v3398 = vand.u32 %v367, 4294901760
        %3399 = vmatprep.subr.mxu0 %v3398
        %v3400 = vand.u32 %v366, 4294901760
        %3401 = vmatpush1.msra.mxu0 %v3400
        %v3402 = vand.u32 %v372, 4294901760
        %3403 = vmatprep.subr.mxu0 %v3402
        %v3404 = vand.u32 %v371, 4294901760
        %3405 = vmatpush1.msra.mxu0 %v3404
        %v3406 = vand.u32 %v377, 4294901760
        %3407 = vmatprep.subr.mxu0 %v3406
        %v3408 = vand.u32 %v376, 4294901760
        %3409 = vmatpush1.msra.mxu0 %v3408
        %v3410 = vand.u32 %v382, 4294901760
        %3411 = vmatprep.subr.mxu0 %v3410
        %v3412 = vand.u32 %v381, 4294901760
        %3413 = vmatpush1.msra.mxu0 %v3412
        %v3414 = vand.u32 %v387, 4294901760
        %3415 = vmatprep.subr.mxu0 %v3414
        %v3416 = vand.u32 %v386, 4294901760
        %3417 = vmatpush1.msra.mxu0 %v3416
        %v3418 = vand.u32 %v392, 4294901760
        %3419 = vmatprep.subr.mxu0 %v3418
        %v3420 = vand.u32 %v391, 4294901760
        %3421 = vmatpush1.msra.mxu0 %v3420
        %v3422 = vand.u32 %v397, 4294901760
        %3423 = vmatprep.subr.mxu0 %v3422
        %v3424 = vand.u32 %v396, 4294901760
        %3425 = vmatpush1.msra.mxu0 %v3424
        %v3426 = vand.u32 %v402, 4294901760
        %3427 = vmatprep.subr.mxu0 %v3426
        %v3428 = vand.u32 %v401, 4294901760
        %3429 = vmatpush1.msra.mxu0 %v3428
        %v3430 = vand.u32 %v407, 4294901760
        %3431 = vmatprep.subr.mxu0 %v3430
        %v3432 = vand.u32 %v406, 4294901760
        %3433 = vmatpush1.msra.mxu0 %v3432
        %v3434 = vand.u32 %v412, 4294901760
        %3435 = vmatprep.subr.mxu0 %v3434
        %v3436 = vand.u32 %v411, 4294901760
        %3437 = vmatpush1.msra.mxu0 %v3436
        %v3438 = vand.u32 %v417, 4294901760
        %3439 = vmatprep.subr.mxu0 %v3438
        %v3440 = vand.u32 %v416, 4294901760
        %3441 = vmatpush1.msra.mxu0 %v3440
        %v3442 = vand.u32 %v422, 4294901760
        %3443 = vmatprep.subr.mxu0 %v3442
        %v3444 = vand.u32 %v421, 4294901760
        %3445 = vmatpush1.msra.mxu0 %v3444
        %v3446 = vand.u32 %v427, 4294901760
        %3447 = vmatprep.subr.mxu0 %v3446
        %v3448 = vand.u32 %v426, 4294901760
        %3449 = vmatpush1.msra.mxu0 %v3448
        %v3450 = vand.u32 %v432, 4294901760
        %3451 = vmatprep.subr.mxu0 %v3450
        %v3452 = vand.u32 %v431, 4294901760
        %3453 = vmatpush1.msra.mxu0 %v3452
        %v3454 = vand.u32 %v437, 4294901760
        %3455 = vmatprep.subr.mxu0 %v3454
        %v3456 = vand.u32 %v436, 4294901760
        %3457 = vmatpush1.msra.mxu0 %v3456
        %v3458 = vand.u32 %v442, 4294901760
        %3459 = vmatprep.subr.mxu0 %v3458
        %v3460 = vand.u32 %v441, 4294901760
        %3461 = vmatpush1.msra.mxu0 %v3460
        %v3462 = vand.u32 %v447, 4294901760
        %3463 = vmatprep.subr.mxu0 %v3462
        %v3464 = vand.u32 %v446, 4294901760
        %3465 = vmatpush1.msra.mxu0 %v3464
        %3466 = vmatprep.subr.mxu0 0.0
        %3467 = vmatpush1.msra.mxu0 0.0
        %3468 = vmatprep.subr.mxu0 0.0
        %3469 = vmatpush1.msra.mxu0 0.0
        %3470 = vmatprep.subr.mxu0 0.0
        %3471 = vmatpush1.msra.mxu0 0.0
        %3472 = vmatprep.subr.mxu0 0.0
        %3473 = vmatpush1.msra.mxu0 0.0
        %3474 = vmatprep.subr.mxu0 0.0
        %3475 = vmatpush1.msra.mxu0 0.0
        %3476 = vmatprep.subr.mxu0 0.0
        %3477 = vmatpush1.msra.mxu0 0.0
        %v3478 = vand.u32 %v515, 4294901760
        %3479 = vmatprep.mubr.f32.mxu0 %v3478
        %v3480 = vand.u32 %v465, 4294901760
        %3481 = vmatmul.mubr.f32.gmra.mrb[0].mxu0 %v3480
        %v3482 = vpop.f32.mrb[0].mxu0
        %v3483 = vadd.f32 %v3310, %v3482
        %v3484 = vpop.f32.mrb[0].mxu0
        %v3485 = vadd.f32 %v3312, %v3484
        %v3486 = vand.u32 %v518, 4294901760
        %3487 = vmatprep.mubr.f32.mxu0 %v3486
        %v3488 = vand.u32 %v466, 4294901760
        %3489 = vmatmul.mubr.f32.gmra.mrb[0].mxu0 %v3488
        %v3490 = vpop.f32.mrb[0].mxu0
        %v3491 = vadd.f32 %v3318, %v3490
        %v3492 = vpop.f32.mrb[0].mxu0
        %v3493 = vadd.f32 %v3320, %v3492
        %v3494 = vand.u32 %v521, 4294901760
        %3495 = vmatprep.mubr.f32.mxu0 %v3494
        %v3496 = vand.u32 %v467, 4294901760
        %3497 = vmatmul.mubr.f32.gmra.mrb[0].mxu0 %v3496
        %v3498 = vpop.f32.mrb[0].mxu0
        %v3499 = vadd.f32 %v3326, %v3498
        %v3500 = vpop.f32.mrb[0].mxu0
        %v3501 = vadd.f32 %v3328, %v3500
        %v3502 = vand.u32 %v524, 4294901760
        %3503 = vmatprep.mubr.f32.mxu0 %v3502
        %v3504 = vand.u32 %v468, 4294901760
        %3505 = vmatmul.mubr.f32.gmra.mrb[0].mxu0 %v3504
        %v3506 = vpop.f32.mrb[0].mxu0
        %v3507 = vadd.f32 %v3334, %v3506
        %v3508 = vpop.f32.mrb[0].mxu0
        %v3509 = vadd.f32 %v3336, %v3508
        %v3510 = vand.u32 %v527, 4294901760
        %3511 = vmatprep.mubr.f32.mxu0 %v3510
        %v3512 = vand.u32 %v469, 4294901760
        %3513 = vmatmul.mubr.f32.gmra.mrb[0].mxu0 %v3512
        %v3514 = vpop.f32.mrb[0].mxu0
        %v3515 = vadd.f32 %v3342, %v3514
        %v3516 = vpop.f32.mrb[0].mxu0
        %v3517 = vadd.f32 %v3344, %v3516
        %v3518 = vand.u32 %v530, 4294901760
        %3519 = vmatprep.mubr.f32.mxu0 %v3518
        %v3520 = vand.u32 %v470, 4294901760
        %3521 = vmatmul.mubr.f32.gmra.mrb[0].mxu0 %v3520
        %v3522 = vpop.f32.mrb[0].mxu0
        %v3523 = vadd.f32 %v3350, %v3522
        %v3524 = vpop.f32.mrb[0].mxu0
        %v3525 = vadd.f32 %v3352, %v3524
        %v3526 = vand.u32 %v533, 4294901760
        %3527 = vmatprep.mubr.f32.mxu0 %v3526
        %v3528 = vand.u32 %v471, 4294901760
        %3529 = vmatmul.mubr.f32.gmra.mrb[0].mxu0 %v3528
        %v3530 = vpop.f32.mrb[0].mxu0
        %v3531 = vadd.f32 %v3358, %v3530
        %v3532 = vpop.f32.mrb[0].mxu0
        %v3533 = vadd.f32 %v3360, %v3532
        %3534 = vdwg.mxu0
        %3535 = vmatprep.subr.mxu0 0.0
        %v3536 = vand.u32 %v323, 4294901760
        %3537 = vmatpush1.msra.mxu0 %v3536
        %3538 = vmatprep.subr.mxu0 0.0
        %v3539 = vand.u32 %v328, 4294901760
        %3540 = vmatpush1.msra.mxu0 %v3539
        %3541 = vmatprep.subr.mxu0 0.0
        %v3542 = vand.u32 %v333, 4294901760
        %3543 = vmatpush1.msra.mxu0 %v3542
        %3544 = vmatprep.subr.mxu0 0.0
        %v3545 = vand.u32 %v338, 4294901760
        %3546 = vmatpush1.msra.mxu0 %v3545
        %3547 = vmatprep.subr.mxu0 0.0
        %v3548 = vand.u32 %v343, 4294901760
        %3549 = vmatpush1.msra.mxu0 %v3548
        %3550 = vmatprep.subr.mxu0 0.0
        %v3551 = vand.u32 %v348, 4294901760
        %3552 = vmatpush1.msra.mxu0 %v3551
        %3553 = vmatprep.subr.mxu0 0.0
        %v3554 = vand.u32 %v353, 4294901760
        %3555 = vmatpush1.msra.mxu0 %v3554
        %3556 = vmatprep.subr.mxu0 0.0
        %v3557 = vand.u32 %v358, 4294901760
        %3558 = vmatpush1.msra.mxu0 %v3557
        %3559 = vmatprep.subr.mxu0 0.0
        %v3560 = vand.u32 %v363, 4294901760
        %3561 = vmatpush1.msra.mxu0 %v3560
        %3562 = vmatprep.subr.mxu0 0.0
        %v3563 = vand.u32 %v368, 4294901760
        %3564 = vmatpush1.msra.mxu0 %v3563
        %3565 = vmatprep.subr.mxu0 0.0
        %v3566 = vand.u32 %v373, 4294901760
        %3567 = vmatpush1.msra.mxu0 %v3566
        %3568 = vmatprep.subr.mxu0 0.0
        %v3569 = vand.u32 %v378, 4294901760
        %3570 = vmatpush1.msra.mxu0 %v3569
        %3571 = vmatprep.subr.mxu0 0.0
        %v3572 = vand.u32 %v383, 4294901760
        %3573 = vmatpush1.msra.mxu0 %v3572
        %3574 = vmatprep.subr.mxu0 0.0
        %v3575 = vand.u32 %v388, 4294901760
        %3576 = vmatpush1.msra.mxu0 %v3575
        %3577 = vmatprep.subr.mxu0 0.0
        %v3578 = vand.u32 %v393, 4294901760
        %3579 = vmatpush1.msra.mxu0 %v3578
        %3580 = vmatprep.subr.mxu0 0.0
        %v3581 = vand.u32 %v398, 4294901760
        %3582 = vmatpush1.msra.mxu0 %v3581
        %3583 = vmatprep.subr.mxu0 0.0
        %v3584 = vand.u32 %v403, 4294901760
        %3585 = vmatpush1.msra.mxu0 %v3584
        %3586 = vmatprep.subr.mxu0 0.0
        %v3587 = vand.u32 %v408, 4294901760
        %3588 = vmatpush1.msra.mxu0 %v3587
        %3589 = vmatprep.subr.mxu0 0.0
        %v3590 = vand.u32 %v413, 4294901760
        %3591 = vmatpush1.msra.mxu0 %v3590
        %3592 = vmatprep.subr.mxu0 0.0
        %v3593 = vand.u32 %v418, 4294901760
        %3594 = vmatpush1.msra.mxu0 %v3593
        %3595 = vmatprep.subr.mxu0 0.0
        %v3596 = vand.u32 %v423, 4294901760
        %3597 = vmatpush1.msra.mxu0 %v3596
        %3598 = vmatprep.subr.mxu0 0.0
        %v3599 = vand.u32 %v428, 4294901760
        %3600 = vmatpush1.msra.mxu0 %v3599
        %3601 = vmatprep.subr.mxu0 0.0
        %v3602 = vand.u32 %v433, 4294901760
        %3603 = vmatpush1.msra.mxu0 %v3602
        %3604 = vmatprep.subr.mxu0 0.0
        %v3605 = vand.u32 %v438, 4294901760
        %3606 = vmatpush1.msra.mxu0 %v3605
        %3607 = vmatprep.subr.mxu0 0.0
        %v3608 = vand.u32 %v443, 4294901760
        %3609 = vmatpush1.msra.mxu0 %v3608
        %3610 = vmatprep.subr.mxu0 0.0
        %v3611 = vand.u32 %v448, 4294901760
        %3612 = vmatpush1.msra.mxu0 %v3611
        %3613 = vmatprep.subr.mxu0 0.0
        %3614 = vmatpush1.msra.mxu0 0.0
        %3615 = vmatprep.subr.mxu0 0.0
        %3616 = vmatpush1.msra.mxu0 0.0
        %3617 = vmatprep.subr.mxu0 0.0
        %3618 = vmatpush1.msra.mxu0 0.0
        %3619 = vmatprep.subr.mxu0 0.0
        %3620 = vmatpush1.msra.mxu0 0.0
        %3621 = vmatprep.subr.mxu0 0.0
        %3622 = vmatpush1.msra.mxu0 0.0
        %3623 = vmatprep.subr.mxu0 0.0
        %3624 = vmatpush1.msra.mxu0 0.0
        %v3625 = vand.u32 %v515, 4294901760
        %v3626 = vsub.f32 %v515, %v3625
        %v3627 = vand.u32 %v3626, 4294901760
        %v3628 = vsub.f32 %v3626, %v3627
        %v3629 = vand.u32 %v3628, 4294901760
        %3630 = vmatprep.mubr.f32.mxu0 %v3629
        %v3631 = vand.u32 %v465, 4294901760
        %v3632 = vsub.f32 %v465, %v3631
        %v3633 = vand.u32 %v3632, 4294901760
        %v3634 = vsub.f32 %v3632, %v3633
        %v3635 = vand.u32 %v3634, 4294901760
        %3636 = vmatmul.mubr.f32.gmra.mrb[0].mxu0 %v3635
        %v3637 = vpop.f32.mrb[0].mxu0
        %v3638 = vadd.f32 0.0, %v3637
        %v3639 = vpop.f32.mrb[0].mxu0
        %v3640 = vand.u32 %v518, 4294901760
        %v3641 = vsub.f32 %v518, %v3640
        %v3642 = vand.u32 %v3641, 4294901760
        %v3643 = vsub.f32 %v3641, %v3642
        %v3644 = vand.u32 %v3643, 4294901760
        %3645 = vmatprep.mubr.f32.mxu0 %v3644
        %v3646 = vand.u32 %v466, 4294901760
        %v3647 = vsub.f32 %v466, %v3646
        %v3648 = vand.u32 %v3647, 4294901760
        %v3649 = vsub.f32 %v3647, %v3648
        %v3650 = vand.u32 %v3649, 4294901760
        %3651 = vmatmul.mubr.f32.gmra.mrb[0].mxu0 %v3650
        %v3652 = vpop.f32.mrb[0].mxu0
        %v3653 = vadd.f32 0.0, %v3652
        %v3654 = vpop.f32.mrb[0].mxu0
        %v3655 = vand.u32 %v521, 4294901760
        %v3656 = vsub.f32 %v521, %v3655
        %v3657 = vand.u32 %v3656, 4294901760
        %v3658 = vsub.f32 %v3656, %v3657
        %v3659 = vand.u32 %v3658, 4294901760
        %3660 = vmatprep.mubr.f32.mxu0 %v3659
        %v3661 = vand.u32 %v467, 4294901760
        %v3662 = vsub.f32 %v467, %v3661
        %v3663 = vand.u32 %v3662, 4294901760
        %v3664 = vsub.f32 %v3662, %v3663
        %v3665 = vand.u32 %v3664, 4294901760
        %3666 = vmatmul.mubr.f32.gmra.mrb[0].mxu0 %v3665
        %v3667 = vpop.f32.mrb[0].mxu0
        %v3668 = vadd.f32 0.0, %v3667
        %v3669 = vpop.f32.mrb[0].mxu0
        %v3670 = vand.u32 %v524, 4294901760
        %v3671 = vsub.f32 %v524, %v3670
        %v3672 = vand.u32 %v3671, 4294901760
        %v3673 = vsub.f32 %v3671, %v3672
        %v3674 = vand.u32 %v3673, 4294901760
        %3675 = vmatprep.mubr.f32.mxu0 %v3674
        %v3676 = vand.u32 %v468, 4294901760
        %v3677 = vsub.f32 %v468, %v3676
        %v3678 = vand.u32 %v3677, 4294901760
        %v3679 = vsub.f32 %v3677, %v3678
        %v3680 = vand.u32 %v3679, 4294901760
        %3681 = vmatmul.mubr.f32.gmra.mrb[0].mxu0 %v3680
        %v3682 = vpop.f32.mrb[0].mxu0
        %v3683 = vadd.f32 0.0, %v3682
        %v3684 = vpop.f32.mrb[0].mxu0
        %v3685 = vand.u32 %v527, 4294901760
        %v3686 = vsub.f32 %v527, %v3685
        %v3687 = vand.u32 %v3686, 4294901760
        %v3688 = vsub.f32 %v3686, %v3687
        %v3689 = vand.u32 %v3688, 4294901760
        %3690 = vmatprep.mubr.f32.mxu0 %v3689
        %v3691 = vand.u32 %v469, 4294901760
        %v3692 = vsub.f32 %v469, %v3691
        %v3693 = vand.u32 %v3692, 4294901760
        %v3694 = vsub.f32 %v3692, %v3693
        %v3695 = vand.u32 %v3694, 4294901760
        %3696 = vmatmul.mubr.f32.gmra.mrb[0].mxu0 %v3695
        %v3697 = vpop.f32.mrb[0].mxu0
        %v3698 = vadd.f32 0.0, %v3697
        %v3699 = vpop.f32.mrb[0].mxu0
        %v3700 = vand.u32 %v530, 4294901760
        %v3701 = vsub.f32 %v530, %v3700
        %v3702 = vand.u32 %v3701, 4294901760
        %v3703 = vsub.f32 %v3701, %v3702
        %v3704 = vand.u32 %v3703, 4294901760
        %3705 = vmatprep.mubr.f32.mxu0 %v3704
        %v3706 = vand.u32 %v470, 4294901760
        %v3707 = vsub.f32 %v470, %v3706
        %v3708 = vand.u32 %v3707, 4294901760
        %v3709 = vsub.f32 %v3707, %v3708
        %v3710 = vand.u32 %v3709, 4294901760
        %3711 = vmatmul.mubr.f32.gmra.mrb[0].mxu0 %v3710
        %v3712 = vpop.f32.mrb[0].mxu0
        %v3713 = vadd.f32 0.0, %v3712
        %v3714 = vpop.f32.mrb[0].mxu0
        %v3715 = vand.u32 %v533, 4294901760
        %v3716 = vsub.f32 %v533, %v3715
        %v3717 = vand.u32 %v3716, 4294901760
        %v3718 = vsub.f32 %v3716, %v3717
        %v3719 = vand.u32 %v3718, 4294901760
        %3720 = vmatprep.mubr.f32.mxu0 %v3719
        %v3721 = vand.u32 %v471, 4294901760
        %v3722 = vsub.f32 %v471, %v3721
        %v3723 = vand.u32 %v3722, 4294901760
        %v3724 = vsub.f32 %v3722, %v3723
        %v3725 = vand.u32 %v3724, 4294901760
        %3726 = vmatmul.mubr.f32.gmra.mrb[0].mxu0 %v3725
        %v3727 = vpop.f32.mrb[0].mxu0
        %v3728 = vadd.f32 0.0, %v3727
        %v3729 = vpop.f32.mrb[0].mxu0
        %3730 = vdwg.mxu0
        %3731 = vmatprep.subr.mxu0 0.0
        %v3732 = vand.u32 %v323, 4294901760
        %v3733 = vsub.f32 %v323, %v3732
        %v3734 = vand.u32 %v3733, 4294901760
        %v3735 = vsub.f32 %v3733, %v3734
        %v3736 = vand.u32 %v3735, 4294901760
        %3737 = vmatpush1.msra.mxu0 %v3736
        %3738 = vmatprep.subr.mxu0 0.0
        %v3739 = vand.u32 %v328, 4294901760
        %v3740 = vsub.f32 %v328, %v3739
        %v3741 = vand.u32 %v3740, 4294901760
        %v3742 = vsub.f32 %v3740, %v3741
        %v3743 = vand.u32 %v3742, 4294901760
        %3744 = vmatpush1.msra.mxu0 %v3743
        %3745 = vmatprep.subr.mxu0 0.0
        %v3746 = vand.u32 %v333, 4294901760
        %v3747 = vsub.f32 %v333, %v3746
        %v3748 = vand.u32 %v3747, 4294901760
        %v3749 = vsub.f32 %v3747, %v3748
        %v3750 = vand.u32 %v3749, 4294901760
        %3751 = vmatpush1.msra.mxu0 %v3750
        %3752 = vmatprep.subr.mxu0 0.0
        %v3753 = vand.u32 %v338, 4294901760
        %v3754 = vsub.f32 %v338, %v3753
        %v3755 = vand.u32 %v3754, 4294901760
        %v3756 = vsub.f32 %v3754, %v3755
        %v3757 = vand.u32 %v3756, 4294901760
        %3758 = vmatpush1.msra.mxu0 %v3757
        %3759 = vmatprep.subr.mxu0 0.0
        %v3760 = vand.u32 %v343, 4294901760
        %v3761 = vsub.f32 %v343, %v3760
        %v3762 = vand.u32 %v3761, 4294901760
        %v3763 = vsub.f32 %v3761, %v3762
        %v3764 = vand.u32 %v3763, 4294901760
        %3765 = vmatpush1.msra.mxu0 %v3764
        %3766 = vmatprep.subr.mxu0 0.0
        %v3767 = vand.u32 %v348, 4294901760
        %v3768 = vsub.f32 %v348, %v3767
        %v3769 = vand.u32 %v3768, 4294901760
        %v3770 = vsub.f32 %v3768, %v3769
        %v3771 = vand.u32 %v3770, 4294901760
        %3772 = vmatpush1.msra.mxu0 %v3771
        %3773 = vmatprep.subr.mxu0 0.0
        %v3774 = vand.u32 %v353, 4294901760
        %v3775 = vsub.f32 %v353, %v3774
        %v3776 = vand.u32 %v3775, 4294901760
        %v3777 = vsub.f32 %v3775, %v3776
        %v3778 = vand.u32 %v3777, 4294901760
        %3779 = vmatpush1.msra.mxu0 %v3778
        %3780 = vmatprep.subr.mxu0 0.0
        %v3781 = vand.u32 %v358, 4294901760
        %v3782 = vsub.f32 %v358, %v3781
        %v3783 = vand.u32 %v3782, 4294901760
        %v3784 = vsub.f32 %v3782, %v3783
        %v3785 = vand.u32 %v3784, 4294901760
        %3786 = vmatpush1.msra.mxu0 %v3785
        %3787 = vmatprep.subr.mxu0 0.0
        %v3788 = vand.u32 %v363, 4294901760
        %v3789 = vsub.f32 %v363, %v3788
        %v3790 = vand.u32 %v3789, 4294901760
        %v3791 = vsub.f32 %v3789, %v3790
        %v3792 = vand.u32 %v3791, 4294901760
        %3793 = vmatpush1.msra.mxu0 %v3792
        %3794 = vmatprep.subr.mxu0 0.0
        %v3795 = vand.u32 %v368, 4294901760
        %v3796 = vsub.f32 %v368, %v3795
        %v3797 = vand.u32 %v3796, 4294901760
        %v3798 = vsub.f32 %v3796, %v3797
        %v3799 = vand.u32 %v3798, 4294901760
        %3800 = vmatpush1.msra.mxu0 %v3799
        %3801 = vmatprep.subr.mxu0 0.0
        %v3802 = vand.u32 %v373, 4294901760
        %v3803 = vsub.f32 %v373, %v3802
        %v3804 = vand.u32 %v3803, 4294901760
        %v3805 = vsub.f32 %v3803, %v3804
        %v3806 = vand.u32 %v3805, 4294901760
        %3807 = vmatpush1.msra.mxu0 %v3806
        %3808 = vmatprep.subr.mxu0 0.0
        %v3809 = vand.u32 %v378, 4294901760
        %v3810 = vsub.f32 %v378, %v3809
        %v3811 = vand.u32 %v3810, 4294901760
        %v3812 = vsub.f32 %v3810, %v3811
        %v3813 = vand.u32 %v3812, 4294901760
        %3814 = vmatpush1.msra.mxu0 %v3813
        %3815 = vmatprep.subr.mxu0 0.0
        %v3816 = vand.u32 %v383, 4294901760
        %v3817 = vsub.f32 %v383, %v3816
        %v3818 = vand.u32 %v3817, 4294901760
        %v3819 = vsub.f32 %v3817, %v3818
        %v3820 = vand.u32 %v3819, 4294901760
        %3821 = vmatpush1.msra.mxu0 %v3820
        %3822 = vmatprep.subr.mxu0 0.0
        %v3823 = vand.u32 %v388, 4294901760
        %v3824 = vsub.f32 %v388, %v3823
        %v3825 = vand.u32 %v3824, 4294901760
        %v3826 = vsub.f32 %v3824, %v3825
        %v3827 = vand.u32 %v3826, 4294901760
        %3828 = vmatpush1.msra.mxu0 %v3827
        %3829 = vmatprep.subr.mxu0 0.0
        %v3830 = vand.u32 %v393, 4294901760
        %v3831 = vsub.f32 %v393, %v3830
        %v3832 = vand.u32 %v3831, 4294901760
        %v3833 = vsub.f32 %v3831, %v3832
        %v3834 = vand.u32 %v3833, 4294901760
        %3835 = vmatpush1.msra.mxu0 %v3834
        %3836 = vmatprep.subr.mxu0 0.0
        %v3837 = vand.u32 %v398, 4294901760
        %v3838 = vsub.f32 %v398, %v3837
        %v3839 = vand.u32 %v3838, 4294901760
        %v3840 = vsub.f32 %v3838, %v3839
        %v3841 = vand.u32 %v3840, 4294901760
        %3842 = vmatpush1.msra.mxu0 %v3841
        %3843 = vmatprep.subr.mxu0 0.0
        %v3844 = vand.u32 %v403, 4294901760
        %v3845 = vsub.f32 %v403, %v3844
        %v3846 = vand.u32 %v3845, 4294901760
        %v3847 = vsub.f32 %v3845, %v3846
        %v3848 = vand.u32 %v3847, 4294901760
        %3849 = vmatpush1.msra.mxu0 %v3848
        %3850 = vmatprep.subr.mxu0 0.0
        %v3851 = vand.u32 %v408, 4294901760
        %v3852 = vsub.f32 %v408, %v3851
        %v3853 = vand.u32 %v3852, 4294901760
        %v3854 = vsub.f32 %v3852, %v3853
        %v3855 = vand.u32 %v3854, 4294901760
        %3856 = vmatpush1.msra.mxu0 %v3855
        %3857 = vmatprep.subr.mxu0 0.0
        %v3858 = vand.u32 %v413, 4294901760
        %v3859 = vsub.f32 %v413, %v3858
        %v3860 = vand.u32 %v3859, 4294901760
        %v3861 = vsub.f32 %v3859, %v3860
        %v3862 = vand.u32 %v3861, 4294901760
        %3863 = vmatpush1.msra.mxu0 %v3862
        %3864 = vmatprep.subr.mxu0 0.0
        %v3865 = vand.u32 %v418, 4294901760
        %v3866 = vsub.f32 %v418, %v3865
        %v3867 = vand.u32 %v3866, 4294901760
        %v3868 = vsub.f32 %v3866, %v3867
        %v3869 = vand.u32 %v3868, 4294901760
        %3870 = vmatpush1.msra.mxu0 %v3869
        %3871 = vmatprep.subr.mxu0 0.0
        %v3872 = vand.u32 %v423, 4294901760
        %v3873 = vsub.f32 %v423, %v3872
        %v3874 = vand.u32 %v3873, 4294901760
        %v3875 = vsub.f32 %v3873, %v3874
        %v3876 = vand.u32 %v3875, 4294901760
        %3877 = vmatpush1.msra.mxu0 %v3876
        %3878 = vmatprep.subr.mxu0 0.0
        %v3879 = vand.u32 %v428, 4294901760
        %v3880 = vsub.f32 %v428, %v3879
        %v3881 = vand.u32 %v3880, 4294901760
        %v3882 = vsub.f32 %v3880, %v3881
        %v3883 = vand.u32 %v3882, 4294901760
        %3884 = vmatpush1.msra.mxu0 %v3883
        %3885 = vmatprep.subr.mxu0 0.0
        %v3886 = vand.u32 %v433, 4294901760
        %v3887 = vsub.f32 %v433, %v3886
        %v3888 = vand.u32 %v3887, 4294901760
        %v3889 = vsub.f32 %v3887, %v3888
        %v3890 = vand.u32 %v3889, 4294901760
        %3891 = vmatpush1.msra.mxu0 %v3890
        %3892 = vmatprep.subr.mxu0 0.0
        %v3893 = vand.u32 %v438, 4294901760
        %v3894 = vsub.f32 %v438, %v3893
        %v3895 = vand.u32 %v3894, 4294901760
        %v3896 = vsub.f32 %v3894, %v3895
        %v3897 = vand.u32 %v3896, 4294901760
        %3898 = vmatpush1.msra.mxu0 %v3897
        %3899 = vmatprep.subr.mxu0 0.0
        %v3900 = vand.u32 %v443, 4294901760
        %v3901 = vsub.f32 %v443, %v3900
        %v3902 = vand.u32 %v3901, 4294901760
        %v3903 = vsub.f32 %v3901, %v3902
        %v3904 = vand.u32 %v3903, 4294901760
        %3905 = vmatpush1.msra.mxu0 %v3904
        %3906 = vmatprep.subr.mxu0 0.0
        %v3907 = vand.u32 %v448, 4294901760
        %v3908 = vsub.f32 %v448, %v3907
        %v3909 = vand.u32 %v3908, 4294901760
        %v3910 = vsub.f32 %v3908, %v3909
        %v3911 = vand.u32 %v3910, 4294901760
        %3912 = vmatpush1.msra.mxu0 %v3911
        %3913 = vmatprep.subr.mxu0 0.0
        %3914 = vmatpush1.msra.mxu0 0.0
        %3915 = vmatprep.subr.mxu0 0.0
        %3916 = vmatpush1.msra.mxu0 0.0
        %3917 = vmatprep.subr.mxu0 0.0
        %3918 = vmatpush1.msra.mxu0 0.0
        %3919 = vmatprep.subr.mxu0 0.0
        %3920 = vmatpush1.msra.mxu0 0.0
        %3921 = vmatprep.subr.mxu0 0.0
        %3922 = vmatpush1.msra.mxu0 0.0
        %3923 = vmatprep.subr.mxu0 0.0
        %3924 = vmatpush1.msra.mxu0 0.0
        %v3925 = vand.u32 %v515, 4294901760
        %3926 = vmatprep.mubr.f32.mxu0 %v3925
        %v3927 = vand.u32 %v465, 4294901760
        %3928 = vmatmul.mubr.f32.gmra.mrb[0].mxu0 %v3927
        %v3929 = vpop.f32.mrb[0].mxu0
        %v3930 = vadd.f32 %v3638, %v3929
        %v3931 = vpop.f32.mrb[0].mxu0
        %v3932 = vand.u32 %v518, 4294901760
        %3933 = vmatprep.mubr.f32.mxu0 %v3932
        %v3934 = vand.u32 %v466, 4294901760
        %3935 = vmatmul.mubr.f32.gmra.mrb[0].mxu0 %v3934
        %v3936 = vpop.f32.mrb[0].mxu0
        %v3937 = vadd.f32 %v3653, %v3936
        %v3938 = vpop.f32.mrb[0].mxu0
        %v3939 = vand.u32 %v521, 4294901760
        %3940 = vmatprep.mubr.f32.mxu0 %v3939
        %v3941 = vand.u32 %v467, 4294901760
        %3942 = vmatmul.mubr.f32.gmra.mrb[0].mxu0 %v3941
        %v3943 = vpop.f32.mrb[0].mxu0
        %v3944 = vadd.f32 %v3668, %v3943
        %v3945 = vpop.f32.mrb[0].mxu0
        %v3946 = vand.u32 %v524, 4294901760
        %3947 = vmatprep.mubr.f32.mxu0 %v3946
        %v3948 = vand.u32 %v468, 4294901760
        %3949 = vmatmul.mubr.f32.gmra.mrb[0].mxu0 %v3948
        %v3950 = vpop.f32.mrb[0].mxu0
        %v3951 = vadd.f32 %v3683, %v3950
        %v3952 = vpop.f32.mrb[0].mxu0
        %v3953 = vand.u32 %v527, 4294901760
        %3954 = vmatprep.mubr.f32.mxu0 %v3953
        %v3955 = vand.u32 %v469, 4294901760
        %3956 = vmatmul.mubr.f32.gmra.mrb[0].mxu0 %v3955
        %v3957 = vpop.f32.mrb[0].mxu0
        %v3958 = vadd.f32 %v3698, %v3957
        %v3959 = vpop.f32.mrb[0].mxu0
        %v3960 = vand.u32 %v530, 4294901760
        %3961 = vmatprep.mubr.f32.mxu0 %v3960
        %v3962 = vand.u32 %v470, 4294901760
        %3963 = vmatmul.mubr.f32.gmra.mrb[0].mxu0 %v3962
        %v3964 = vpop.f32.mrb[0].mxu0
        %v3965 = vadd.f32 %v3713, %v3964
        %v3966 = vpop.f32.mrb[0].mxu0
        %v3967 = vand.u32 %v533, 4294901760
        %3968 = vmatprep.mubr.f32.mxu0 %v3967
        %v3969 = vand.u32 %v471, 4294901760
        %3970 = vmatmul.mubr.f32.gmra.mrb[0].mxu0 %v3969
        %v3971 = vpop.f32.mrb[0].mxu0
        %v3972 = vadd.f32 %v3728, %v3971
        %v3973 = vpop.f32.mrb[0].mxu0
        %3974 = vdwg.mxu0
        %3975 = vmatprep.subr.mxu0 0.0
        %v3976 = vand.u32 %v323, 4294901760
        %v3977 = vsub.f32 %v323, %v3976
        %3978 = vmatpush1.msra.mxu0 %v3977
        %3979 = vmatprep.subr.mxu0 0.0
        %v3980 = vand.u32 %v328, 4294901760
        %v3981 = vsub.f32 %v328, %v3980
        %3982 = vmatpush1.msra.mxu0 %v3981
        %3983 = vmatprep.subr.mxu0 0.0
        %v3984 = vand.u32 %v333, 4294901760
        %v3985 = vsub.f32 %v333, %v3984
        %3986 = vmatpush1.msra.mxu0 %v3985
        %3987 = vmatprep.subr.mxu0 0.0
        %v3988 = vand.u32 %v338, 4294901760
        %v3989 = vsub.f32 %v338, %v3988
        %3990 = vmatpush1.msra.mxu0 %v3989
        %3991 = vmatprep.subr.mxu0 0.0
        %v3992 = vand.u32 %v343, 4294901760
        %v3993 = vsub.f32 %v343, %v3992
        %3994 = vmatpush1.msra.mxu0 %v3993
        %3995 = vmatprep.subr.mxu0 0.0
        %v3996 = vand.u32 %v348, 4294901760
        %v3997 = vsub.f32 %v348, %v3996
        %3998 = vmatpush1.msra.mxu0 %v3997
        %3999 = vmatprep.subr.mxu0 0.0
        %v4000 = vand.u32 %v353, 4294901760
        %v4001 = vsub.f32 %v353, %v4000
        %4002 = vmatpush1.msra.mxu0 %v4001
        %4003 = vmatprep.subr.mxu0 0.0
        %v4004 = vand.u32 %v358, 4294901760
        %v4005 = vsub.f32 %v358, %v4004
        %4006 = vmatpush1.msra.mxu0 %v4005
        %4007 = vmatprep.subr.mxu0 0.0
        %v4008 = vand.u32 %v363, 4294901760
        %v4009 = vsub.f32 %v363, %v4008
        %4010 = vmatpush1.msra.mxu0 %v4009
        %4011 = vmatprep.subr.mxu0 0.0
        %v4012 = vand.u32 %v368, 4294901760
        %v4013 = vsub.f32 %v368, %v4012
        %4014 = vmatpush1.msra.mxu0 %v4013
        %4015 = vmatprep.subr.mxu0 0.0
        %v4016 = vand.u32 %v373, 4294901760
        %v4017 = vsub.f32 %v373, %v4016
        %4018 = vmatpush1.msra.mxu0 %v4017
        %4019 = vmatprep.subr.mxu0 0.0
        %v4020 = vand.u32 %v378, 4294901760
        %v4021 = vsub.f32 %v378, %v4020
        %4022 = vmatpush1.msra.mxu0 %v4021
        %4023 = vmatprep.subr.mxu0 0.0
        %v4024 = vand.u32 %v383, 4294901760
        %v4025 = vsub.f32 %v383, %v4024
        %4026 = vmatpush1.msra.mxu0 %v4025
        %4027 = vmatprep.subr.mxu0 0.0
        %v4028 = vand.u32 %v388, 4294901760
        %v4029 = vsub.f32 %v388, %v4028
        %4030 = vmatpush1.msra.mxu0 %v4029
        %4031 = vmatprep.subr.mxu0 0.0
        %v4032 = vand.u32 %v393, 4294901760
        %v4033 = vsub.f32 %v393, %v4032
        %4034 = vmatpush1.msra.mxu0 %v4033
        %4035 = vmatprep.subr.mxu0 0.0
        %v4036 = vand.u32 %v398, 4294901760
        %v4037 = vsub.f32 %v398, %v4036
        %4038 = vmatpush1.msra.mxu0 %v4037
        %4039 = vmatprep.subr.mxu0 0.0
        %v4040 = vand.u32 %v403, 4294901760
        %v4041 = vsub.f32 %v403, %v4040
        %4042 = vmatpush1.msra.mxu0 %v4041
        %4043 = vmatprep.subr.mxu0 0.0
        %v4044 = vand.u32 %v408, 4294901760
        %v4045 = vsub.f32 %v408, %v4044
        %4046 = vmatpush1.msra.mxu0 %v4045
        %4047 = vmatprep.subr.mxu0 0.0
        %v4048 = vand.u32 %v413, 4294901760
        %v4049 = vsub.f32 %v413, %v4048
        %4050 = vmatpush1.msra.mxu0 %v4049
        %4051 = vmatprep.subr.mxu0 0.0
        %v4052 = vand.u32 %v418, 4294901760
        %v4053 = vsub.f32 %v418, %v4052
        %4054 = vmatpush1.msra.mxu0 %v4053
        %4055 = vmatprep.subr.mxu0 0.0
        %v4056 = vand.u32 %v423, 4294901760
        %v4057 = vsub.f32 %v423, %v4056
        %4058 = vmatpush1.msra.mxu0 %v4057
        %4059 = vmatprep.subr.mxu0 0.0
        %v4060 = vand.u32 %v428, 4294901760
        %v4061 = vsub.f32 %v428, %v4060
        %4062 = vmatpush1.msra.mxu0 %v4061
        %4063 = vmatprep.subr.mxu0 0.0
        %v4064 = vand.u32 %v433, 4294901760
        %v4065 = vsub.f32 %v433, %v4064
        %4066 = vmatpush1.msra.mxu0 %v4065
        %4067 = vmatprep.subr.mxu0 0.0
        %v4068 = vand.u32 %v438, 4294901760
        %v4069 = vsub.f32 %v438, %v4068
        %4070 = vmatpush1.msra.mxu0 %v4069
        %4071 = vmatprep.subr.mxu0 0.0
        %v4072 = vand.u32 %v443, 4294901760
        %v4073 = vsub.f32 %v443, %v4072
        %4074 = vmatpush1.msra.mxu0 %v4073
        %4075 = vmatprep.subr.mxu0 0.0
        %v4076 = vand.u32 %v448, 4294901760
        %v4077 = vsub.f32 %v448, %v4076
        %4078 = vmatpush1.msra.mxu0 %v4077
        %4079 = vmatprep.subr.mxu0 0.0
        %4080 = vmatpush1.msra.mxu0 0.0
        %4081 = vmatprep.subr.mxu0 0.0
        %4082 = vmatpush1.msra.mxu0 0.0
        %4083 = vmatprep.subr.mxu0 0.0
        %4084 = vmatpush1.msra.mxu0 0.0
        %4085 = vmatprep.subr.mxu0 0.0
        %4086 = vmatpush1.msra.mxu0 0.0
        %4087 = vmatprep.subr.mxu0 0.0
        %4088 = vmatpush1.msra.mxu0 0.0
        %4089 = vmatprep.subr.mxu0 0.0
        %4090 = vmatpush1.msra.mxu0 0.0
        %v4091 = vand.u32 %v515, 4294901760
        %v4092 = vsub.f32 %v515, %v4091
        %4093 = vmatprep.mubr.f32.mxu0 %v4092
        %v4094 = vand.u32 %v465, 4294901760
        %v4095 = vsub.f32 %v465, %v4094
        %4096 = vmatmul.mubr.f32.gmra.mrb[0].mxu0 %v4095
        %v4097 = vpop.f32.mrb[0].mxu0
        %v4098 = vadd.f32 %v3930, %v4097
        %v4099 = vpop.f32.mrb[0].mxu0
        %v4100 = vand.u32 %v518, 4294901760
        %v4101 = vsub.f32 %v518, %v4100
        %4102 = vmatprep.mubr.f32.mxu0 %v4101
        %v4103 = vand.u32 %v466, 4294901760
        %v4104 = vsub.f32 %v466, %v4103
        %4105 = vmatmul.mubr.f32.gmra.mrb[0].mxu0 %v4104
        %v4106 = vpop.f32.mrb[0].mxu0
        %v4107 = vadd.f32 %v3937, %v4106
        %v4108 = vpop.f32.mrb[0].mxu0
        %v4109 = vand.u32 %v521, 4294901760
        %v4110 = vsub.f32 %v521, %v4109
        %4111 = vmatprep.mubr.f32.mxu0 %v4110
        %v4112 = vand.u32 %v467, 4294901760
        %v4113 = vsub.f32 %v467, %v4112
        %4114 = vmatmul.mubr.f32.gmra.mrb[0].mxu0 %v4113
        %v4115 = vpop.f32.mrb[0].mxu0
        %v4116 = vadd.f32 %v3944, %v4115
        %v4117 = vpop.f32.mrb[0].mxu0
        %v4118 = vand.u32 %v524, 4294901760
        %v4119 = vsub.f32 %v524, %v4118
        %4120 = vmatprep.mubr.f32.mxu0 %v4119
        %v4121 = vand.u32 %v468, 4294901760
        %v4122 = vsub.f32 %v468, %v4121
        %4123 = vmatmul.mubr.f32.gmra.mrb[0].mxu0 %v4122
        %v4124 = vpop.f32.mrb[0].mxu0
        %v4125 = vadd.f32 %v3951, %v4124
        %v4126 = vpop.f32.mrb[0].mxu0
        %v4127 = vand.u32 %v527, 4294901760
        %v4128 = vsub.f32 %v527, %v4127
        %4129 = vmatprep.mubr.f32.mxu0 %v4128
        %v4130 = vand.u32 %v469, 4294901760
        %v4131 = vsub.f32 %v469, %v4130
        %4132 = vmatmul.mubr.f32.gmra.mrb[0].mxu0 %v4131
        %v4133 = vpop.f32.mrb[0].mxu0
        %v4134 = vadd.f32 %v3958, %v4133
        %v4135 = vpop.f32.mrb[0].mxu0
        %v4136 = vand.u32 %v530, 4294901760
        %v4137 = vsub.f32 %v530, %v4136
        %4138 = vmatprep.mubr.f32.mxu0 %v4137
        %v4139 = vand.u32 %v470, 4294901760
        %v4140 = vsub.f32 %v470, %v4139
        %4141 = vmatmul.mubr.f32.gmra.mrb[0].mxu0 %v4140
        %v4142 = vpop.f32.mrb[0].mxu0
        %v4143 = vadd.f32 %v3965, %v4142
        %v4144 = vpop.f32.mrb[0].mxu0
        %v4145 = vand.u32 %v533, 4294901760
        %v4146 = vsub.f32 %v533, %v4145
        %4147 = vmatprep.mubr.f32.mxu0 %v4146
        %v4148 = vand.u32 %v471, 4294901760
        %v4149 = vsub.f32 %v471, %v4148
        %4150 = vmatmul.mubr.f32.gmra.mrb[0].mxu0 %v4149
        %v4151 = vpop.f32.mrb[0].mxu0
        %v4152 = vadd.f32 %v3972, %v4151
        %v4153 = vpop.f32.mrb[0].mxu0
        %4154 = vdwg.mxu0
        %4155 = vmatprep.subr.mxu0 0.0
        %v4156 = vand.u32 %v323, 4294901760
        %4157 = vmatpush1.msra.mxu0 %v4156
        %4158 = vmatprep.subr.mxu0 0.0
        %v4159 = vand.u32 %v328, 4294901760
        %4160 = vmatpush1.msra.mxu0 %v4159
        %4161 = vmatprep.subr.mxu0 0.0
        %v4162 = vand.u32 %v333, 4294901760
        %4163 = vmatpush1.msra.mxu0 %v4162
        %4164 = vmatprep.subr.mxu0 0.0
        %v4165 = vand.u32 %v338, 4294901760
        %4166 = vmatpush1.msra.mxu0 %v4165
        %4167 = vmatprep.subr.mxu0 0.0
        %v4168 = vand.u32 %v343, 4294901760
        %4169 = vmatpush1.msra.mxu0 %v4168
        %4170 = vmatprep.subr.mxu0 0.0
        %v4171 = vand.u32 %v348, 4294901760
        %4172 = vmatpush1.msra.mxu0 %v4171
        %4173 = vmatprep.subr.mxu0 0.0
        %v4174 = vand.u32 %v353, 4294901760
        %4175 = vmatpush1.msra.mxu0 %v4174
        %4176 = vmatprep.subr.mxu0 0.0
        %v4177 = vand.u32 %v358, 4294901760
        %4178 = vmatpush1.msra.mxu0 %v4177
        %4179 = vmatprep.subr.mxu0 0.0
        %v4180 = vand.u32 %v363, 4294901760
        %4181 = vmatpush1.msra.mxu0 %v4180
        %4182 = vmatprep.subr.mxu0 0.0
        %v4183 = vand.u32 %v368, 4294901760
        %4184 = vmatpush1.msra.mxu0 %v4183
        %4185 = vmatprep.subr.mxu0 0.0
        %v4186 = vand.u32 %v373, 4294901760
        %4187 = vmatpush1.msra.mxu0 %v4186
        %4188 = vmatprep.subr.mxu0 0.0
        %v4189 = vand.u32 %v378, 4294901760
        %4190 = vmatpush1.msra.mxu0 %v4189
        %4191 = vmatprep.subr.mxu0 0.0
        %v4192 = vand.u32 %v383, 4294901760
        %4193 = vmatpush1.msra.mxu0 %v4192
        %4194 = vmatprep.subr.mxu0 0.0
        %v4195 = vand.u32 %v388, 4294901760
        %4196 = vmatpush1.msra.mxu0 %v4195
        %4197 = vmatprep.subr.mxu0 0.0
        %v4198 = vand.u32 %v393, 4294901760
        %4199 = vmatpush1.msra.mxu0 %v4198
        %4200 = vmatprep.subr.mxu0 0.0
        %v4201 = vand.u32 %v398, 4294901760
        %4202 = vmatpush1.msra.mxu0 %v4201
        %4203 = vmatprep.subr.mxu0 0.0
        %v4204 = vand.u32 %v403, 4294901760
        %4205 = vmatpush1.msra.mxu0 %v4204
        %4206 = vmatprep.subr.mxu0 0.0
        %v4207 = vand.u32 %v408, 4294901760
        %4208 = vmatpush1.msra.mxu0 %v4207
        %4209 = vmatprep.subr.mxu0 0.0
        %v4210 = vand.u32 %v413, 4294901760
        %4211 = vmatpush1.msra.mxu0 %v4210
        %4212 = vmatprep.subr.mxu0 0.0
        %v4213 = vand.u32 %v418, 4294901760
        %4214 = vmatpush1.msra.mxu0 %v4213
        %4215 = vmatprep.subr.mxu0 0.0
        %v4216 = vand.u32 %v423, 4294901760
        %4217 = vmatpush1.msra.mxu0 %v4216
        %4218 = vmatprep.subr.mxu0 0.0
        %v4219 = vand.u32 %v428, 4294901760
        %4220 = vmatpush1.msra.mxu0 %v4219
        %4221 = vmatprep.subr.mxu0 0.0
        %v4222 = vand.u32 %v433, 4294901760
        %4223 = vmatpush1.msra.mxu0 %v4222
        %4224 = vmatprep.subr.mxu0 0.0
        %v4225 = vand.u32 %v438, 4294901760
        %4226 = vmatpush1.msra.mxu0 %v4225
        %4227 = vmatprep.subr.mxu0 0.0
        %v4228 = vand.u32 %v443, 4294901760
        %4229 = vmatpush1.msra.mxu0 %v4228
        %4230 = vmatprep.subr.mxu0 0.0
        %v4231 = vand.u32 %v448, 4294901760
        %4232 = vmatpush1.msra.mxu0 %v4231
        %4233 = vmatprep.subr.mxu0 0.0
        %4234 = vmatpush1.msra.mxu0 0.0
        %4235 = vmatprep.subr.mxu0 0.0
        %4236 = vmatpush1.msra.mxu0 0.0
        %4237 = vmatprep.subr.mxu0 0.0
        %4238 = vmatpush1.msra.mxu0 0.0
        %4239 = vmatprep.subr.mxu0 0.0
        %4240 = vmatpush1.msra.mxu0 0.0
        %4241 = vmatprep.subr.mxu0 0.0
        %4242 = vmatpush1.msra.mxu0 0.0
        %4243 = vmatprep.subr.mxu0 0.0
        %4244 = vmatpush1.msra.mxu0 0.0
        %v4245 = vand.u32 %v515, 4294901760
        %v4246 = vsub.f32 %v515, %v4245
        %v4247 = vand.u32 %v4246, 4294901760
        %4248 = vmatprep.mubr.f32.mxu0 %v4247
        %v4249 = vand.u32 %v465, 4294901760
        %v4250 = vsub.f32 %v465, %v4249
        %v4251 = vand.u32 %v4250, 4294901760
        %4252 = vmatmul.mubr.f32.gmra.mrb[0].mxu0 %v4251
        %v4253 = vpop.f32.mrb[0].mxu0
        %v4254 = vadd.f32 %v4098, %v4253
        %v4255 = vpop.f32.mrb[0].mxu0
        %v4256 = vand.u32 %v518, 4294901760
        %v4257 = vsub.f32 %v518, %v4256
        %v4258 = vand.u32 %v4257, 4294901760
        %4259 = vmatprep.mubr.f32.mxu0 %v4258
        %v4260 = vand.u32 %v466, 4294901760
        %v4261 = vsub.f32 %v466, %v4260
        %v4262 = vand.u32 %v4261, 4294901760
        %4263 = vmatmul.mubr.f32.gmra.mrb[0].mxu0 %v4262
        %v4264 = vpop.f32.mrb[0].mxu0
        %v4265 = vadd.f32 %v4107, %v4264
        %v4266 = vpop.f32.mrb[0].mxu0
        %v4267 = vand.u32 %v521, 4294901760
        %v4268 = vsub.f32 %v521, %v4267
        %v4269 = vand.u32 %v4268, 4294901760
        %4270 = vmatprep.mubr.f32.mxu0 %v4269
        %v4271 = vand.u32 %v467, 4294901760
        %v4272 = vsub.f32 %v467, %v4271
        %v4273 = vand.u32 %v4272, 4294901760
        %4274 = vmatmul.mubr.f32.gmra.mrb[0].mxu0 %v4273
        %v4275 = vpop.f32.mrb[0].mxu0
        %v4276 = vadd.f32 %v4116, %v4275
        %v4277 = vpop.f32.mrb[0].mxu0
        %v4278 = vand.u32 %v524, 4294901760
        %v4279 = vsub.f32 %v524, %v4278
        %v4280 = vand.u32 %v4279, 4294901760
        %4281 = vmatprep.mubr.f32.mxu0 %v4280
        %v4282 = vand.u32 %v468, 4294901760
        %v4283 = vsub.f32 %v468, %v4282
        %v4284 = vand.u32 %v4283, 4294901760
        %4285 = vmatmul.mubr.f32.gmra.mrb[0].mxu0 %v4284
        %v4286 = vpop.f32.mrb[0].mxu0
        %v4287 = vadd.f32 %v4125, %v4286
        %v4288 = vpop.f32.mrb[0].mxu0
        %v4289 = vand.u32 %v527, 4294901760
        %v4290 = vsub.f32 %v527, %v4289
        %v4291 = vand.u32 %v4290, 4294901760
        %4292 = vmatprep.mubr.f32.mxu0 %v4291
        %v4293 = vand.u32 %v469, 4294901760
        %v4294 = vsub.f32 %v469, %v4293
        %v4295 = vand.u32 %v4294, 4294901760
        %4296 = vmatmul.mubr.f32.gmra.mrb[0].mxu0 %v4295
        %v4297 = vpop.f32.mrb[0].mxu0
        %v4298 = vadd.f32 %v4134, %v4297
        %v4299 = vpop.f32.mrb[0].mxu0
        %v4300 = vand.u32 %v530, 4294901760
        %v4301 = vsub.f32 %v530, %v4300
        %v4302 = vand.u32 %v4301, 4294901760
        %4303 = vmatprep.mubr.f32.mxu0 %v4302
        %v4304 = vand.u32 %v470, 4294901760
        %v4305 = vsub.f32 %v470, %v4304
        %v4306 = vand.u32 %v4305, 4294901760
        %4307 = vmatmul.mubr.f32.gmra.mrb[0].mxu0 %v4306
        %v4308 = vpop.f32.mrb[0].mxu0
        %v4309 = vadd.f32 %v4143, %v4308
        %v4310 = vpop.f32.mrb[0].mxu0
        %v4311 = vand.u32 %v533, 4294901760
        %v4312 = vsub.f32 %v533, %v4311
        %v4313 = vand.u32 %v4312, 4294901760
        %4314 = vmatprep.mubr.f32.mxu0 %v4313
        %v4315 = vand.u32 %v471, 4294901760
        %v4316 = vsub.f32 %v471, %v4315
        %v4317 = vand.u32 %v4316, 4294901760
        %4318 = vmatmul.mubr.f32.gmra.mrb[0].mxu0 %v4317
        %v4319 = vpop.f32.mrb[0].mxu0
        %v4320 = vadd.f32 %v4152, %v4319
        %v4321 = vpop.f32.mrb[0].mxu0
        %4322 = vdwg.mxu0
        %4323 = vmatprep.subr.mxu0 0.0
        %v4324 = vand.u32 %v323, 4294901760
        %v4325 = vsub.f32 %v323, %v4324
        %v4326 = vand.u32 %v4325, 4294901760
        %4327 = vmatpush1.msra.mxu0 %v4326
        %4328 = vmatprep.subr.mxu0 0.0
        %v4329 = vand.u32 %v328, 4294901760
        %v4330 = vsub.f32 %v328, %v4329
        %v4331 = vand.u32 %v4330, 4294901760
        %4332 = vmatpush1.msra.mxu0 %v4331
        %4333 = vmatprep.subr.mxu0 0.0
        %v4334 = vand.u32 %v333, 4294901760
        %v4335 = vsub.f32 %v333, %v4334
        %v4336 = vand.u32 %v4335, 4294901760
        %4337 = vmatpush1.msra.mxu0 %v4336
        %4338 = vmatprep.subr.mxu0 0.0
        %v4339 = vand.u32 %v338, 4294901760
        %v4340 = vsub.f32 %v338, %v4339
        %v4341 = vand.u32 %v4340, 4294901760
        %4342 = vmatpush1.msra.mxu0 %v4341
        %4343 = vmatprep.subr.mxu0 0.0
        %v4344 = vand.u32 %v343, 4294901760
        %v4345 = vsub.f32 %v343, %v4344
        %v4346 = vand.u32 %v4345, 4294901760
        %4347 = vmatpush1.msra.mxu0 %v4346
        %4348 = vmatprep.subr.mxu0 0.0
        %v4349 = vand.u32 %v348, 4294901760
        %v4350 = vsub.f32 %v348, %v4349
        %v4351 = vand.u32 %v4350, 4294901760
        %4352 = vmatpush1.msra.mxu0 %v4351
        %4353 = vmatprep.subr.mxu0 0.0
        %v4354 = vand.u32 %v353, 4294901760
        %v4355 = vsub.f32 %v353, %v4354
        %v4356 = vand.u32 %v4355, 4294901760
        %4357 = vmatpush1.msra.mxu0 %v4356
        %4358 = vmatprep.subr.mxu0 0.0
        %v4359 = vand.u32 %v358, 4294901760
        %v4360 = vsub.f32 %v358, %v4359
        %v4361 = vand.u32 %v4360, 4294901760
        %4362 = vmatpush1.msra.mxu0 %v4361
        %4363 = vmatprep.subr.mxu0 0.0
        %v4364 = vand.u32 %v363, 4294901760
        %v4365 = vsub.f32 %v363, %v4364
        %v4366 = vand.u32 %v4365, 4294901760
        %4367 = vmatpush1.msra.mxu0 %v4366
        %4368 = vmatprep.subr.mxu0 0.0
        %v4369 = vand.u32 %v368, 4294901760
        %v4370 = vsub.f32 %v368, %v4369
        %v4371 = vand.u32 %v4370, 4294901760
        %4372 = vmatpush1.msra.mxu0 %v4371
        %4373 = vmatprep.subr.mxu0 0.0
        %v4374 = vand.u32 %v373, 4294901760
        %v4375 = vsub.f32 %v373, %v4374
        %v4376 = vand.u32 %v4375, 4294901760
        %4377 = vmatpush1.msra.mxu0 %v4376
        %4378 = vmatprep.subr.mxu0 0.0
        %v4379 = vand.u32 %v378, 4294901760
        %v4380 = vsub.f32 %v378, %v4379
        %v4381 = vand.u32 %v4380, 4294901760
        %4382 = vmatpush1.msra.mxu0 %v4381
        %4383 = vmatprep.subr.mxu0 0.0
        %v4384 = vand.u32 %v383, 4294901760
        %v4385 = vsub.f32 %v383, %v4384
        %v4386 = vand.u32 %v4385, 4294901760
        %4387 = vmatpush1.msra.mxu0 %v4386
        %4388 = vmatprep.subr.mxu0 0.0
        %v4389 = vand.u32 %v388, 4294901760
        %v4390 = vsub.f32 %v388, %v4389
        %v4391 = vand.u32 %v4390, 4294901760
        %4392 = vmatpush1.msra.mxu0 %v4391
        %4393 = vmatprep.subr.mxu0 0.0
        %v4394 = vand.u32 %v393, 4294901760
        %v4395 = vsub.f32 %v393, %v4394
        %v4396 = vand.u32 %v4395, 4294901760
        %4397 = vmatpush1.msra.mxu0 %v4396
        %4398 = vmatprep.subr.mxu0 0.0
        %v4399 = vand.u32 %v398, 4294901760
        %v4400 = vsub.f32 %v398, %v4399
        %v4401 = vand.u32 %v4400, 4294901760
        %4402 = vmatpush1.msra.mxu0 %v4401
        %4403 = vmatprep.subr.mxu0 0.0
        %v4404 = vand.u32 %v403, 4294901760
        %v4405 = vsub.f32 %v403, %v4404
        %v4406 = vand.u32 %v4405, 4294901760
        %4407 = vmatpush1.msra.mxu0 %v4406
        %4408 = vmatprep.subr.mxu0 0.0
        %v4409 = vand.u32 %v408, 4294901760
        %v4410 = vsub.f32 %v408, %v4409
        %v4411 = vand.u32 %v4410, 4294901760
        %4412 = vmatpush1.msra.mxu0 %v4411
        %4413 = vmatprep.subr.mxu0 0.0
        %v4414 = vand.u32 %v413, 4294901760
        %v4415 = vsub.f32 %v413, %v4414
        %v4416 = vand.u32 %v4415, 4294901760
        %4417 = vmatpush1.msra.mxu0 %v4416
        %4418 = vmatprep.subr.mxu0 0.0
        %v4419 = vand.u32 %v418, 4294901760
        %v4420 = vsub.f32 %v418, %v4419
        %v4421 = vand.u32 %v4420, 4294901760
        %4422 = vmatpush1.msra.mxu0 %v4421
        %4423 = vmatprep.subr.mxu0 0.0
        %v4424 = vand.u32 %v423, 4294901760
        %v4425 = vsub.f32 %v423, %v4424
        %v4426 = vand.u32 %v4425, 4294901760
        %4427 = vmatpush1.msra.mxu0 %v4426
        %4428 = vmatprep.subr.mxu0 0.0
        %v4429 = vand.u32 %v428, 4294901760
        %v4430 = vsub.f32 %v428, %v4429
        %v4431 = vand.u32 %v4430, 4294901760
        %4432 = vmatpush1.msra.mxu0 %v4431
        %4433 = vmatprep.subr.mxu0 0.0
        %v4434 = vand.u32 %v433, 4294901760
        %v4435 = vsub.f32 %v433, %v4434
        %v4436 = vand.u32 %v4435, 4294901760
        %4437 = vmatpush1.msra.mxu0 %v4436
        %4438 = vmatprep.subr.mxu0 0.0
        %v4439 = vand.u32 %v438, 4294901760
        %v4440 = vsub.f32 %v438, %v4439
        %v4441 = vand.u32 %v4440, 4294901760
        %4442 = vmatpush1.msra.mxu0 %v4441
        %4443 = vmatprep.subr.mxu0 0.0
        %v4444 = vand.u32 %v443, 4294901760
        %v4445 = vsub.f32 %v443, %v4444
        %v4446 = vand.u32 %v4445, 4294901760
        %4447 = vmatpush1.msra.mxu0 %v4446
        %4448 = vmatprep.subr.mxu0 0.0
        %v4449 = vand.u32 %v448, 4294901760
        %v4450 = vsub.f32 %v448, %v4449
        %v4451 = vand.u32 %v4450, 4294901760
        %4452 = vmatpush1.msra.mxu0 %v4451
        %4453 = vmatprep.subr.mxu0 0.0
        %4454 = vmatpush1.msra.mxu0 0.0
        %4455 = vmatprep.subr.mxu0 0.0
        %4456 = vmatpush1.msra.mxu0 0.0
        %4457 = vmatprep.subr.mxu0 0.0
        %4458 = vmatpush1.msra.mxu0 0.0
        %4459 = vmatprep.subr.mxu0 0.0
        %4460 = vmatpush1.msra.mxu0 0.0
        %4461 = vmatprep.subr.mxu0 0.0
        %4462 = vmatpush1.msra.mxu0 0.0
        %4463 = vmatprep.subr.mxu0 0.0
        %4464 = vmatpush1.msra.mxu0 0.0
        %v4465 = vand.u32 %v515, 4294901760
        %4466 = vmatprep.mubr.f32.mxu0 %v4465
        %v4467 = vand.u32 %v465, 4294901760
        %4468 = vmatmul.mubr.f32.gmra.mrb[0].mxu0 %v4467
        %v4469 = vpop.f32.mrb[0].mxu0
        %v4470 = vadd.f32 %v4254, %v4469
        %v4471 = vpop.f32.mrb[0].mxu0
        %v4472 = vand.u32 %v518, 4294901760
        %4473 = vmatprep.mubr.f32.mxu0 %v4472
        %v4474 = vand.u32 %v466, 4294901760
        %4475 = vmatmul.mubr.f32.gmra.mrb[0].mxu0 %v4474
        %v4476 = vpop.f32.mrb[0].mxu0
        %v4477 = vadd.f32 %v4265, %v4476
        %v4478 = vpop.f32.mrb[0].mxu0
        %v4479 = vand.u32 %v521, 4294901760
        %4480 = vmatprep.mubr.f32.mxu0 %v4479
        %v4481 = vand.u32 %v467, 4294901760
        %4482 = vmatmul.mubr.f32.gmra.mrb[0].mxu0 %v4481
        %v4483 = vpop.f32.mrb[0].mxu0
        %v4484 = vadd.f32 %v4276, %v4483
        %v4485 = vpop.f32.mrb[0].mxu0
        %v4486 = vand.u32 %v524, 4294901760
        %4487 = vmatprep.mubr.f32.mxu0 %v4486
        %v4488 = vand.u32 %v468, 4294901760
        %4489 = vmatmul.mubr.f32.gmra.mrb[0].mxu0 %v4488
        %v4490 = vpop.f32.mrb[0].mxu0
        %v4491 = vadd.f32 %v4287, %v4490
        %v4492 = vpop.f32.mrb[0].mxu0
        %v4493 = vand.u32 %v527, 4294901760
        %4494 = vmatprep.mubr.f32.mxu0 %v4493
        %v4495 = vand.u32 %v469, 4294901760
        %4496 = vmatmul.mubr.f32.gmra.mrb[0].mxu0 %v4495
        %v4497 = vpop.f32.mrb[0].mxu0
        %v4498 = vadd.f32 %v4298, %v4497
        %v4499 = vpop.f32.mrb[0].mxu0
        %v4500 = vand.u32 %v530, 4294901760
        %4501 = vmatprep.mubr.f32.mxu0 %v4500
        %v4502 = vand.u32 %v470, 4294901760
        %4503 = vmatmul.mubr.f32.gmra.mrb[0].mxu0 %v4502
        %v4504 = vpop.f32.mrb[0].mxu0
        %v4505 = vadd.f32 %v4309, %v4504
        %v4506 = vpop.f32.mrb[0].mxu0
        %v4507 = vand.u32 %v533, 4294901760
        %4508 = vmatprep.mubr.f32.mxu0 %v4507
        %v4509 = vand.u32 %v471, 4294901760
        %4510 = vmatmul.mubr.f32.gmra.mrb[0].mxu0 %v4509
        %v4511 = vpop.f32.mrb[0].mxu0
        %v4512 = vadd.f32 %v4320, %v4511
        %v4513 = vpop.f32.mrb[0].mxu0
        %4514 = vdwg.mxu0
        %4515 = vmatprep.subr.mxu0 0.0
        %v4516 = vand.u32 %v323, 4294901760
        %4517 = vmatpush1.msra.mxu0 %v4516
        %4518 = vmatprep.subr.mxu0 0.0
        %v4519 = vand.u32 %v328, 4294901760
        %4520 = vmatpush1.msra.mxu0 %v4519
        %4521 = vmatprep.subr.mxu0 0.0
        %v4522 = vand.u32 %v333, 4294901760
        %4523 = vmatpush1.msra.mxu0 %v4522
        %4524 = vmatprep.subr.mxu0 0.0
        %v4525 = vand.u32 %v338, 4294901760
        %4526 = vmatpush1.msra.mxu0 %v4525
        %4527 = vmatprep.subr.mxu0 0.0
        %v4528 = vand.u32 %v343, 4294901760
        %4529 = vmatpush1.msra.mxu0 %v4528
        %4530 = vmatprep.subr.mxu0 0.0
        %v4531 = vand.u32 %v348, 4294901760
        %4532 = vmatpush1.msra.mxu0 %v4531
        %4533 = vmatprep.subr.mxu0 0.0
        %v4534 = vand.u32 %v353, 4294901760
        %4535 = vmatpush1.msra.mxu0 %v4534
        %4536 = vmatprep.subr.mxu0 0.0
        %v4537 = vand.u32 %v358, 4294901760
        %4538 = vmatpush1.msra.mxu0 %v4537
        %4539 = vmatprep.subr.mxu0 0.0
        %v4540 = vand.u32 %v363, 4294901760
        %4541 = vmatpush1.msra.mxu0 %v4540
        %4542 = vmatprep.subr.mxu0 0.0
        %v4543 = vand.u32 %v368, 4294901760
        %4544 = vmatpush1.msra.mxu0 %v4543
        %4545 = vmatprep.subr.mxu0 0.0
        %v4546 = vand.u32 %v373, 4294901760
        %4547 = vmatpush1.msra.mxu0 %v4546
        %4548 = vmatprep.subr.mxu0 0.0
        %v4549 = vand.u32 %v378, 4294901760
        %4550 = vmatpush1.msra.mxu0 %v4549
        %4551 = vmatprep.subr.mxu0 0.0
        %v4552 = vand.u32 %v383, 4294901760
        %4553 = vmatpush1.msra.mxu0 %v4552
        %4554 = vmatprep.subr.mxu0 0.0
        %v4555 = vand.u32 %v388, 4294901760
        %4556 = vmatpush1.msra.mxu0 %v4555
        %4557 = vmatprep.subr.mxu0 0.0
        %v4558 = vand.u32 %v393, 4294901760
        %4559 = vmatpush1.msra.mxu0 %v4558
        %4560 = vmatprep.subr.mxu0 0.0
        %v4561 = vand.u32 %v398, 4294901760
        %4562 = vmatpush1.msra.mxu0 %v4561
        %4563 = vmatprep.subr.mxu0 0.0
        %v4564 = vand.u32 %v403, 4294901760
        %4565 = vmatpush1.msra.mxu0 %v4564
        %4566 = vmatprep.subr.mxu0 0.0
        %v4567 = vand.u32 %v408, 4294901760
        %4568 = vmatpush1.msra.mxu0 %v4567
        %4569 = vmatprep.subr.mxu0 0.0
        %v4570 = vand.u32 %v413, 4294901760
        %4571 = vmatpush1.msra.mxu0 %v4570
        %4572 = vmatprep.subr.mxu0 0.0
        %v4573 = vand.u32 %v418, 4294901760
        %4574 = vmatpush1.msra.mxu0 %v4573
        %4575 = vmatprep.subr.mxu0 0.0
        %v4576 = vand.u32 %v423, 4294901760
        %4577 = vmatpush1.msra.mxu0 %v4576
        %4578 = vmatprep.subr.mxu0 0.0
        %v4579 = vand.u32 %v428, 4294901760
        %4580 = vmatpush1.msra.mxu0 %v4579
        %4581 = vmatprep.subr.mxu0 0.0
        %v4582 = vand.u32 %v433, 4294901760
        %4583 = vmatpush1.msra.mxu0 %v4582
        %4584 = vmatprep.subr.mxu0 0.0
        %v4585 = vand.u32 %v438, 4294901760
        %4586 = vmatpush1.msra.mxu0 %v4585
        %4587 = vmatprep.subr.mxu0 0.0
        %v4588 = vand.u32 %v443, 4294901760
        %4589 = vmatpush1.msra.mxu0 %v4588
        %4590 = vmatprep.subr.mxu0 0.0
        %v4591 = vand.u32 %v448, 4294901760
        %4592 = vmatpush1.msra.mxu0 %v4591
        %4593 = vmatprep.subr.mxu0 0.0
        %4594 = vmatpush1.msra.mxu0 0.0
        %4595 = vmatprep.subr.mxu0 0.0
        %4596 = vmatpush1.msra.mxu0 0.0
        %4597 = vmatprep.subr.mxu0 0.0
        %4598 = vmatpush1.msra.mxu0 0.0
        %4599 = vmatprep.subr.mxu0 0.0
        %4600 = vmatpush1.msra.mxu0 0.0
        %4601 = vmatprep.subr.mxu0 0.0
        %4602 = vmatpush1.msra.mxu0 0.0
        %4603 = vmatprep.subr.mxu0 0.0
        %4604 = vmatpush1.msra.mxu0 0.0
        %v4605 = vand.u32 %v515, 4294901760
        %4606 = vmatprep.mubr.f32.mxu0 %v4605
        %v4607 = vand.u32 %v465, 4294901760
        %4608 = vmatmul.mubr.f32.gmra.mrb[0].mxu0 %v4607
        %v4609 = vpop.f32.mrb[0].mxu0
        %v4610 = vadd.f32 %v4470, %v4609
        %v4611 = vpop.f32.mrb[0].mxu0
        %v4612 = vand.u32 %v518, 4294901760
        %4613 = vmatprep.mubr.f32.mxu0 %v4612
        %v4614 = vand.u32 %v466, 4294901760
        %4615 = vmatmul.mubr.f32.gmra.mrb[0].mxu0 %v4614
        %v4616 = vpop.f32.mrb[0].mxu0
        %v4617 = vadd.f32 %v4477, %v4616
        %v4618 = vpop.f32.mrb[0].mxu0
        %v4619 = vand.u32 %v521, 4294901760
        %4620 = vmatprep.mubr.f32.mxu0 %v4619
        %v4621 = vand.u32 %v467, 4294901760
        %4622 = vmatmul.mubr.f32.gmra.mrb[0].mxu0 %v4621
        %v4623 = vpop.f32.mrb[0].mxu0
        %v4624 = vadd.f32 %v4484, %v4623
        %v4625 = vpop.f32.mrb[0].mxu0
        %v4626 = vand.u32 %v524, 4294901760
        %4627 = vmatprep.mubr.f32.mxu0 %v4626
        %v4628 = vand.u32 %v468, 4294901760
        %4629 = vmatmul.mubr.f32.gmra.mrb[0].mxu0 %v4628
        %v4630 = vpop.f32.mrb[0].mxu0
        %v4631 = vadd.f32 %v4491, %v4630
        %v4632 = vpop.f32.mrb[0].mxu0
        %v4633 = vand.u32 %v527, 4294901760
        %4634 = vmatprep.mubr.f32.mxu0 %v4633
        %v4635 = vand.u32 %v469, 4294901760
        %4636 = vmatmul.mubr.f32.gmra.mrb[0].mxu0 %v4635
        %v4637 = vpop.f32.mrb[0].mxu0
        %v4638 = vadd.f32 %v4498, %v4637
        %v4639 = vpop.f32.mrb[0].mxu0
        %v4640 = vand.u32 %v530, 4294901760
        %4641 = vmatprep.mubr.f32.mxu0 %v4640
        %v4642 = vand.u32 %v470, 4294901760
        %4643 = vmatmul.mubr.f32.gmra.mrb[0].mxu0 %v4642
        %v4644 = vpop.f32.mrb[0].mxu0
        %v4645 = vadd.f32 %v4505, %v4644
        %v4646 = vpop.f32.mrb[0].mxu0
        %v4647 = vand.u32 %v533, 4294901760
        %4648 = vmatprep.mubr.f32.mxu0 %v4647
        %v4649 = vand.u32 %v471, 4294901760
        %4650 = vmatmul.mubr.f32.gmra.mrb[0].mxu0 %v4649
        %v4651 = vpop.f32.mrb[0].mxu0
        %v4652 = vadd.f32 %v4512, %v4651
        %v4653 = vpop.f32.mrb[0].mxu0
        %4654 = vdwg.mxu0
        %4655 = vst [vmem:[%s228] sm:$0xff] %v1983
        %4656 = vst [vmem:[%s228 + $0x8] sm:$0xff] %v1985
        %4657 = vst [vmem:[%s228 + $0x10] sm:$0xff] %v3483
        %4658 = vst [vmem:[%s228 + $0x18] sm:$0xff] %v3485
        %4659 = vst [vmem:[%s228 + $0x20] sm:$0xff] %v4610
        %4660 = vst [vmem:[%s228 + $0x28] sm:$0xff] %v1991
        %4661 = vst [vmem:[%s228 + $0x30] sm:$0xff] %v1993
        %4662 = vst [vmem:[%s228 + $0x38] sm:$0xff] %v3491
        %4663 = vst [vmem:[%s228 + $0x40] sm:$0xff] %v3493
        %4664 = vst [vmem:[%s228 + $0x48] sm:$0xff] %v4617
        %4665 = vst [vmem:[%s228 + $0x50] sm:$0xff] %v1999
        %4666 = vst [vmem:[%s228 + $0x58] sm:$0xff] %v2001
        %4667 = vst [vmem:[%s228 + $0x60] sm:$0xff] %v3499
        %4668 = vst [vmem:[%s228 + $0x68] sm:$0xff] %v3501
        %4669 = vst [vmem:[%s228 + $0x70] sm:$0xff] %v4624
        %4670 = vst [vmem:[%s228 + $0x78] sm:$0xff] %v2007
        %4671 = vst [vmem:[%s228 + $0x80] sm:$0xff] %v2009
        %4672 = vst [vmem:[%s228 + $0x88] sm:$0xff] %v3507
        %4673 = vst [vmem:[%s228 + $0x90] sm:$0xff] %v3509
        %4674 = vst [vmem:[%s228 + $0x98] sm:$0xff] %v4631
        %4675 = vst [vmem:[%s228 + $0xa0] sm:$0xff] %v2015
        %4676 = vst [vmem:[%s228 + $0xa8] sm:$0xff] %v2017
        %4677 = vst [vmem:[%s228 + $0xb0] sm:$0xff] %v3515
        %4678 = vst [vmem:[%s228 + $0xb8] sm:$0xff] %v3517
        %4679 = vst [vmem:[%s228 + $0xc0] sm:$0xff] %v4638
        %4680 = vst [vmem:[%s228 + $0xc8] sm:$0xff] %v2023
        %4681 = vst [vmem:[%s228 + $0xd0] sm:$0xff] %v2025
        %4682 = vst [vmem:[%s228 + $0xd8] sm:$0xff] %v3523
        %4683 = vst [vmem:[%s228 + $0xe0] sm:$0xff] %v3525
        %4684 = vst [vmem:[%s228 + $0xe8] sm:$0xff] %v4645
        %4685 = vst [vmem:[%s228 + $0xf0] sm:$0x1] %v2031
        %4686 = vst [vmem:[%s228 + $0xf8] sm:$0x1] %v2033
        %4687 = vst [vmem:[%s228 + $0x100] sm:$0x1] %v3531
        %4688 = vst [vmem:[%s228 + $0x108] sm:$0x1] %v3533
        %4689 = vst [vmem:[%s228 + $0x110] sm:$0x1] %v4652
        %s4690 = sand.u32 %s117, 1
        %s4691 = sand.u32 %s117, 1
        %s4692 = smul.addr %s4691, 280
        %s4693 = scalar_lea.vmem [#allocation4], %s4692
        // Predicated region
        $region37: #{tpu_custom_call.1} parent=31 // pred_check
          %p4694 = pneg %p127
        $region38: #{tpu_custom_call.1} parent=31 // pred_check_branch
          %4696 = sbr.rel (%p4694) target = $region40
        $region39: #{tpu_custom_call.1} parent=31 // pred_region
          %s4697 = smul.u32 5, %s22
          %s4698 = smul.addr %s21, 70
          %s4699 = sadd.s32 %s4697, %s4698
          %s4700 = smul.addr %s4699, 8
          %s4701 = scalar_lea.vmem %s3, %s4700
          // Predicated region
          $region41: #{tpu_custom_call.1} parent=39 // pred_check
            _
          $region42: #{tpu_custom_call.1} parent=39 // pred_check_branch
            %4703 = sbr.rel (0) target = $region44
          $region43: #{tpu_custom_call.1} parent=39 // pred_region
            // Predicated region
            $region45: #{tpu_custom_call.1} parent=43 // pred_check
              _
            $region46: #{tpu_custom_call.1} parent=43 // pred_check_branch
              %4705 = sbr.rel (0) target = $region48
            $region47: #{tpu_custom_call.1} parent=43 // pred_region
              loop: start=0, step=1, limit=1
              $region49: #{tpu_custom_call.1} parent=47 // loop_pre_header
                _
              $region50: #{tpu_custom_call.1} parent=47 // loop_header
                %s4707 = sphi 0, %s4711
                %p4708 = scmp.ge.s32.totalorder %s4707, 1
                %s4712 = sphi %s4693, %s4693
                %s4713 = sphi %s4701, %s4701
              $region51: #{tpu_custom_call.1} parent=47 // loop_header_branch
                %4710 = sbr.rel (%p4708) target = $region55
              $region52: #{tpu_custom_call.1} parent=47 // loop_body
                %v4714 = vld [vmem:[%s4712] sm:$0xff]
                %4715 = vst [vmem:[%s4713] sm:$0xff] %v4714
                %v4716 = vld [vmem:[%s4712 + $0x8] sm:$0xff]
                %4717 = vst [vmem:[%s4713 + $0x8] sm:$0xff] %v4716
                %v4718 = vld [vmem:[%s4712 + $0x10] sm:$0xff]
                %4719 = vst [vmem:[%s4713 + $0x10] sm:$0xff] %v4718
                %v4720 = vld [vmem:[%s4712 + $0x18] sm:$0xff]
                %4721 = vst [vmem:[%s4713 + $0x18] sm:$0xff] %v4720
                %v4722 = vld [vmem:[%s4712 + $0x20] sm:$0xff]
                %4723 = vst [vmem:[%s4713 + $0x20] sm:$0xff] %v4722
                %v4724 = vld [vmem:[%s4712 + $0x28] sm:$0xff]
                %4725 = vst [vmem:[%s4713 + $0x50] sm:$0xff] %v4724
                %v4726 = vld [vmem:[%s4712 + $0x30] sm:$0xff]
                %4727 = vst [vmem:[%s4713 + $0x58] sm:$0xff] %v4726
                %v4728 = vld [vmem:[%s4712 + $0x38] sm:$0xff]
                %4729 = vst [vmem:[%s4713 + $0x60] sm:$0xff] %v4728
                %v4730 = vld [vmem:[%s4712 + $0x40] sm:$0xff]
                %4731 = vst [vmem:[%s4713 + $0x68] sm:$0xff] %v4730
                %v4732 = vld [vmem:[%s4712 + $0x48] sm:$0xff]
                %4733 = vst [vmem:[%s4713 + $0x70] sm:$0xff] %v4732
                %v4734 = vld [vmem:[%s4712 + $0x50] sm:$0xff]
                %4735 = vst [vmem:[%s4713 + $0xa0] sm:$0xff] %v4734
                %v4736 = vld [vmem:[%s4712 + $0x58] sm:$0xff]
                %4737 = vst [vmem:[%s4713 + $0xa8] sm:$0xff] %v4736
                %v4738 = vld [vmem:[%s4712 + $0x60] sm:$0xff]
                %4739 = vst [vmem:[%s4713 + $0xb0] sm:$0xff] %v4738
                %v4740 = vld [vmem:[%s4712 + $0x68] sm:$0xff]
                %4741 = vst [vmem:[%s4713 + $0xb8] sm:$0xff] %v4740
                %v4742 = vld [vmem:[%s4712 + $0x70] sm:$0xff]
                %4743 = vst [vmem:[%s4713 + $0xc0] sm:$0xff] %v4742
                %v4744 = vld [vmem:[%s4712 + $0x78] sm:$0xff]
                %4745 = vst [vmem:[%s4713 + $0xf0] sm:$0xff] %v4744
                %v4746 = vld [vmem:[%s4712 + $0x80] sm:$0xff]
                %4747 = vst [vmem:[%s4713 + $0xf8] sm:$0xff] %v4746
                %v4748 = vld [vmem:[%s4712 + $0x88] sm:$0xff]
                %4749 = vst [vmem:[%s4713 + $0x100] sm:$0xff] %v4748
                %v4750 = vld [vmem:[%s4712 + $0x90] sm:$0xff]
                %4751 = vst [vmem:[%s4713 + $0x108] sm:$0xff] %v4750
                %v4752 = vld [vmem:[%s4712 + $0x98] sm:$0xff]
                %4753 = vst [vmem:[%s4713 + $0x110] sm:$0xff] %v4752
                %v4754 = vld [vmem:[%s4712 + $0xa0] sm:$0xff]
                %4755 = vst [vmem:[%s4713 + $0x140] sm:$0xff] %v4754
                %v4756 = vld [vmem:[%s4712 + $0xa8] sm:$0xff]
                %4757 = vst [vmem:[%s4713 + $0x148] sm:$0xff] %v4756
                %v4758 = vld [vmem:[%s4712 + $0xb0] sm:$0xff]
                %4759 = vst [vmem:[%s4713 + $0x150] sm:$0xff] %v4758
                %v4760 = vld [vmem:[%s4712 + $0xb8] sm:$0xff]
                %4761 = vst [vmem:[%s4713 + $0x158] sm:$0xff] %v4760
                %v4762 = vld [vmem:[%s4712 + $0xc0] sm:$0xff]
                %4763 = vst [vmem:[%s4713 + $0x160] sm:$0xff] %v4762
                %v4764 = vld [vmem:[%s4712 + $0xc8] sm:$0xff]
                %4765 = vst [vmem:[%s4713 + $0x190] sm:$0xff] %v4764
                %v4766 = vld [vmem:[%s4712 + $0xd0] sm:$0xff]
                %4767 = vst [vmem:[%s4713 + $0x198] sm:$0xff] %v4766
                %v4768 = vld [vmem:[%s4712 + $0xd8] sm:$0xff]
                %4769 = vst [vmem:[%s4713 + $0x1a0] sm:$0xff] %v4768
                %v4770 = vld [vmem:[%s4712 + $0xe0] sm:$0xff]
                %4771 = vst [vmem:[%s4713 + $0x1a8] sm:$0xff] %v4770
                %v4772 = vld [vmem:[%s4712 + $0xe8] sm:$0xff]
                %4773 = vst [vmem:[%s4713 + $0x1b0] sm:$0xff] %v4772
                %v4774 = vld [vmem:[%s4712 + $0xf0] sm:$0xff]
                %4775 = vst [vmem:[%s4713 + $0x1e0] sm:$0xff] %v4774
                %v4776 = vld [vmem:[%s4712 + $0xf8] sm:$0xff]
                %4777 = vst [vmem:[%s4713 + $0x1e8] sm:$0xff] %v4776
                %v4778 = vld [vmem:[%s4712 + $0x100] sm:$0xff]
                %4779 = vst [vmem:[%s4713 + $0x1f0] sm:$0xff] %v4778
                %v4780 = vld [vmem:[%s4712 + $0x108] sm:$0xff]
                %4781 = vst [vmem:[%s4713 + $0x1f8] sm:$0xff] %v4780
                %v4782 = vld [vmem:[%s4712 + $0x110] sm:$0xff]
                %4783 = vst [vmem:[%s4713 + $0x200] sm:$0xff] %v4782
              $region53: #{tpu_custom_call.1} parent=47 // loop_footer
                %s4711 = sadd.s32 1, %s4707
              $region54: #{tpu_custom_call.1} parent=47 // loop_footer_branch
                %4706 = sbr.rel target = $region50
              $region55: #{tpu_custom_call.1} parent=47 // loop_exit
                _
            $region48: #{tpu_custom_call.1} parent=43 // pred_fallthru
              _
            // Predicated region
            $region56: #{tpu_custom_call.1} parent=43 // pred_check
              _
            $region57: #{tpu_custom_call.1} parent=43 // pred_check_branch
              %4785 = sbr.rel target = $region59
            $region58: #{tpu_custom_call.1} parent=43 // pred_region
              _
            $region59: #{tpu_custom_call.1} parent=43 // pred_fallthru
              _
          $region44: #{tpu_custom_call.1} parent=39 // pred_fallthru
            _
          %4786 = vnop
        $region40: #{tpu_custom_call.1} parent=31 // pred_fallthru
          _
      $region32: #{tpu_custom_call.1} parent=5 // pred_fallthru
        _
      %p4787 = scmp.le.s32.totalorder 2, %s12
      // Predicated region
      $region60: #{tpu_custom_call.1} parent=5 // pred_check
        %p4788 = pneg %p4787
      $region61: #{tpu_custom_call.1} parent=5 // pred_check_branch
        %4790 = sbr.rel (%p4788) target = $region63
      $region62: #{tpu_custom_call.1} parent=5 // pred_region
        %s4791 = ssub.s32 %s12, 2
        // Predicated region
        $region64: #{tpu_custom_call.1} parent=62 // pred_check
          %p4792 = pneg %p133
        $region65: #{tpu_custom_call.1} parent=62 // pred_check_branch
          %4794 = sbr.rel (%p4792) target = $region67
        $region66: #{tpu_custom_call.1} parent=62 // pred_region
          %s4795 = sand.u32 %s118, 1
          %s4796 = sand.u32 %s118, 1
          %s4797 = smul.addr %s4796, 280
          %s4798 = scalar_lea.vmem [#allocation4], %s4797
        $region67: #{tpu_custom_call.1} parent=62 // pred_fallthru
          _
      $region63: #{tpu_custom_call.1} parent=5 // pred_fallthru
        _
    $region6: #{tpu_custom_call.1} parent=1 // loop_footer
      %s16 = sadd.s32 1, %s12
    $region7: #{tpu_custom_call.1} parent=1 // loop_footer_branch
      %11 = sbr.rel target = $region3
    $region8: #{tpu_custom_call.1} parent=1 // loop_exit
      _
    %4799 = vsyncpa [#allocation3], 1
    %s4800 = scalar_lea.sflag [#allocation3], 1
    %4801 = vsyncpa %s4800, 1

</llo_original>
